<compile_context>
chip_gen: v7x
topology: tpu7x:2x2x1
jax: 0.10.0
libtpu: 0.0.40
codegen_flags: <defaults>
</compile_context>

<pallas_src>
import functools

import jax
import jax.numpy as jnp
from jax.experimental import pallas as pl
from jax.experimental.pallas import tpu as pltpu

H_DIM = 400          # logical hidden width (matches the PyTorch module)
H_PAD = 512          # padded hidden width: 4x128 (v5e) / 2x256 (v6e/v7x) tiles
IN_DIM = 2
OUT_DIM = 2
OUT_PAD = 128        # lane-dense output width; real outputs live in lanes [0, 2)


def _generator_kernel(z_ref, w1_ref, b1_ref, w2_ref, b2_ref,
                      w3_ref, b3_ref, w4_ref, b4_ref, o_ref):
    # z_ref: (tb, 2) tile of latent noise.
    x = z_ref[...].astype(jnp.float32)

    # ---- Layer 1: K=2 contraction as two VPU broadcast FMAs (skip the MXU) ----
    w1 = w1_ref[...]                                              # (2, H_PAD) f32
    h = x[:, 0:1] * w1[0:1, :] + x[:, 1:2] * w1[1:2, :] + b1_ref[...]
    h = jnp.maximum(h, 0.0)

    # ---- Layer 2: (tb, 512) @ (512, 512), bf16 operands, f32 accumulation ----
    h = jnp.dot(h.astype(jnp.bfloat16), w2_ref[...],
                preferred_element_type=jnp.float32) + b2_ref[...]
    h = jnp.maximum(h, 0.0)

    # ---- Layer 3 ----
    h = jnp.dot(h.astype(jnp.bfloat16), w3_ref[...],
                preferred_element_type=jnp.float32) + b3_ref[...]
    h = jnp.maximum(h, 0.0)

    # ---- Layer 4 (output head, padded to 128 lanes for a dense store) ----
    out = jnp.dot(h.astype(jnp.bfloat16), w4_ref[...],
                  preferred_element_type=jnp.float32) + b4_ref[...]
    o_ref[...] = out.astype(o_ref.dtype)


@functools.partial(jax.jit, static_argnames=("block_b",))
def generator_forward(z, kernel_params, *, block_b=256):
    """Fused Generator MLP.  z: [B, 2] f32 -> [B, 2] f32.

    `kernel_params` must come from `prepare_kernel_params` (padded + bf16).
    `block_b` is the batch tile (multiple of 8; 256-1024 recommended).
    """
    w1, b1, w2, b2, w3, b3, w4, b4 = kernel_params
    B = z.shape[0]

    n_blocks = pl.cdiv(B, block_b)
    B_pad = n_blocks * block_b
    if B_pad != B:
        z = jnp.pad(z, ((0, B_pad - B), (0, 0)))

    z_spec = pl.BlockSpec((block_b, IN_DIM), lambda i: (i, 0))
    o_spec = pl.BlockSpec((block_b, OUT_PAD), lambda i: (i, 0))

    # Grid-invariant (VMEM-resident) weights / biases.
    def resident(arr):
        return pl.BlockSpec(arr.shape, lambda i: (0, 0))

    in_specs = [
        z_spec,
        resident(w1), resident(b1),
        resident(w2), resident(b2),
        resident(w3), resident(b3),
        resident(w4), resident(b4),
    ]

    out = pl.pallas_call(
        _generator_kernel,
        out_shape=jax.ShapeDtypeStruct((B_pad, OUT_PAD), jnp.float32),
        grid_spec=pltpu.PrefetchScalarGridSpec(
            num_scalar_prefetch=0,
            grid=(n_blocks,),
            in_specs=in_specs,
            out_specs=o_spec,
        ),
        compiler_params=pltpu.CompilerParams(
            dimension_semantics=("parallel",),      # batch shards across TCs
            vmem_limit_bytes=32 * 1024 * 1024,      # headroom for larger block_b
        ),
    )(z, w1, b1, w2, b2, w3, b3, w4, b4)

    return out[:B, :OUT_DIM]


def init_generator_params(key):
    """PyTorch-nn.Linear-style init (U[-k, k], k=1/sqrt(fan_in)) at the
    LOGICAL sizes.  Weights stored as [in_features, out_features]."""
    dims = [(IN_DIM, H_DIM), (H_DIM, H_DIM), (H_DIM, H_DIM), (H_DIM, OUT_DIM)]
    params = []
    for (fan_in, fan_out) in dims:
        key, kw, kb = jax.random.split(key, 3)
        bound = 1.0 / jnp.sqrt(jnp.float32(fan_in))
        w = jax.random.uniform(kw, (fan_in, fan_out), jnp.float32, -bound, bound)
        b = jax.random.uniform(kb, (1, fan_out), jnp.float32, -bound, bound)
        params.extend([w, b])
    return tuple(params)


def prepare_kernel_params(params):
    """Zero-pad to MXU-friendly shapes and cast the big weights to bf16.
    Zero padding is exact through bias-add + ReLU, so unpadded outputs match."""
    w1, b1, w2, b2, w3, b3, w4, b4 = params

    def pad_to(a, shape):
        return jnp.pad(a, [(0, t - s) for s, t in zip(a.shape, shape)])

    w1p = pad_to(w1, (IN_DIM, H_PAD)).astype(jnp.float32)   # layer 1 stays f32 (VPU)
    b1p = pad_to(b1, (1, H_PAD)).astype(jnp.float32)
    w2p = pad_to(w2, (H_PAD, H_PAD)).astype(jnp.bfloat16)
    b2p = pad_to(b2, (1, H_PAD)).astype(jnp.float32)
    w3p = pad_to(w3, (H_PAD, H_PAD)).astype(jnp.bfloat16)
    b3p = pad_to(b3, (1, H_PAD)).astype(jnp.float32)
    w4p = pad_to(w4, (H_PAD, OUT_PAD)).astype(jnp.bfloat16)
    b4p = pad_to(b4, (1, OUT_PAD)).astype(jnp.float32)
    return (w1p, b1p, w2p, b2p, w3p, b3p, w4p, b4p)


def generator_reference(z, params):
    """Pure-JAX reference mirroring the kernel's precision policy
    (bf16 matmul operands, f32 accumulation, f32 bias/ReLU)."""
    w1, b1, w2, b2, w3, b3, w4, b4 = params
    h = jnp.maximum(z @ w1 + b1, 0.0)
    h = jnp.dot(h.astype(jnp.bfloat16), w2.astype(jnp.bfloat16),
                preferred_element_type=jnp.float32) + b2
    h = jnp.maximum(h, 0.0)
    h = jnp.dot(h.astype(jnp.bfloat16), w3.astype(jnp.bfloat16),
                preferred_element_type=jnp.float32) + b3
    h = jnp.maximum(h, 0.0)
    return jnp.dot(h.astype(jnp.bfloat16), w4.astype(jnp.bfloat16),
                   preferred_element_type=jnp.float32) + b4


if __name__ == "__main__":
    key = jax.random.PRNGKey(0)
    key_p, key_z = jax.random.split(key)

    params = init_generator_params(key_p)          # logical f32 params
    kernel_params = prepare_kernel_params(params)  # padded / bf16 for the kernel

    batch = 8  # small latent batch, as in the GAN; wrapper pads to one full tile
    z = jax.random.normal(key_z, (batch, IN_DIM), jnp.float32)

    out = generator_forward(z, kernel_params, block_b=256)
    out = jax.block_until_ready(out)

    ref = generator_reference(z, params)
    assert out.shape == (batch, OUT_DIM)
    assert jnp.allclose(out, ref, atol=1e-3, rtol=1e-3), float(
        jnp.max(jnp.abs(out - ref)))

    print("KERNEL_OK")
</pallas_src>

<mosaic_0001>
module attributes {stable_mosaic.version = 11 : i64} {
  func.func @_generator_kernel(%arg0: i32, %arg1: memref<256x2xf32, #tpu.memory_space<vmem>>, %arg2: memref<2x512xf32, #tpu.memory_space<vmem>>, %arg3: memref<1x512xf32, #tpu.memory_space<vmem>>, %arg4: memref<512x512xbf16, #tpu.memory_space<vmem>>, %arg5: memref<1x512xf32, #tpu.memory_space<vmem>>, %arg6: memref<512x512xbf16, #tpu.memory_space<vmem>>, %arg7: memref<1x512xf32, #tpu.memory_space<vmem>>, %arg8: memref<512x128xbf16, #tpu.memory_space<vmem>>, %arg9: memref<1x128xf32, #tpu.memory_space<vmem>>, %arg10: memref<256x128xf32, #tpu.memory_space<vmem>>) attributes {dimension_semantics = [#tpu.dimension_semantics<parallel>], iteration_bounds = array<i64: 1>, scalar_prefetch = 0 : i64, scratch_operands = 0 : i64, tpu.core_type = #tpu.core_type<tc>, window_params = [{transform_indices = @transform_0, window_bounds = array<i64: 256, 2>}, {pipeline_mode = #tpu.pipeline_mode<synchronous>, transform_indices = @transform_1, window_bounds = array<i64: 2, 512>}, {pipeline_mode = #tpu.pipeline_mode<synchronous>, transform_indices = @transform_2, window_bounds = array<i64: 1, 512>}, {pipeline_mode = #tpu.pipeline_mode<synchronous>, transform_indices = @transform_3, window_bounds = array<i64: 512, 512>}, {pipeline_mode = #tpu.pipeline_mode<synchronous>, transform_indices = @transform_4, window_bounds = array<i64: 1, 512>}, {pipeline_mode = #tpu.pipeline_mode<synchronous>, transform_indices = @transform_5, window_bounds = array<i64: 512, 512>}, {pipeline_mode = #tpu.pipeline_mode<synchronous>, transform_indices = @transform_6, window_bounds = array<i64: 1, 512>}, {pipeline_mode = #tpu.pipeline_mode<synchronous>, transform_indices = @transform_7, window_bounds = array<i64: 512, 128>}, {pipeline_mode = #tpu.pipeline_mode<synchronous>, transform_indices = @transform_8, window_bounds = array<i64: 1, 128>}, {transform_indices = @transform_9, window_bounds = array<i64: 256, 128>}]} {
    %c0 = arith.constant 0 : index
    %c0_0 = arith.constant 0 : index
    %0 = vector.load %arg1[%c0, %c0_0] : memref<256x2xf32, #tpu.memory_space<vmem>>, vector<256x2xf32>
    %c0_1 = arith.constant 0 : index
    %c0_2 = arith.constant 0 : index
    %1 = vector.load %arg2[%c0_1, %c0_2] : memref<2x512xf32, #tpu.memory_space<vmem>>, vector<2x512xf32>
    %2 = vector.extract_strided_slice %0 {offsets = [0, 0], sizes = [256, 1], strides = [1, 1]} : vector<256x2xf32> to vector<256x1xf32>
    %3 = vector.extract_strided_slice %1 {offsets = [0, 0], sizes = [1, 512], strides = [1, 1]} : vector<2x512xf32> to vector<1x512xf32>
    %4 = vector.broadcast %2 : vector<256x1xf32> to vector<256x512xf32>
    %5 = vector.broadcast %3 : vector<1x512xf32> to vector<256x512xf32>
    %6 = arith.mulf %4, %5 : vector<256x512xf32>
    %7 = vector.extract_strided_slice %0 {offsets = [0, 1], sizes = [256, 1], strides = [1, 1]} : vector<256x2xf32> to vector<256x1xf32>
    %8 = vector.extract_strided_slice %1 {offsets = [1, 0], sizes = [1, 512], strides = [1, 1]} : vector<2x512xf32> to vector<1x512xf32>
    %9 = vector.broadcast %7 : vector<256x1xf32> to vector<256x512xf32>
    %10 = vector.broadcast %8 : vector<1x512xf32> to vector<256x512xf32>
    %11 = arith.mulf %9, %10 : vector<256x512xf32>
    %12 = arith.addf %6, %11 : vector<256x512xf32>
    %c0_3 = arith.constant 0 : index
    %c0_4 = arith.constant 0 : index
    %13 = vector.load %arg3[%c0_3, %c0_4] : memref<1x512xf32, #tpu.memory_space<vmem>>, vector<1x512xf32>
    %14 = vector.broadcast %13 : vector<1x512xf32> to vector<256x512xf32>
    %15 = arith.addf %12, %14 : vector<256x512xf32>
    %cst = arith.constant 0.000000e+00 : f32
    %16 = vector.broadcast %cst : f32 to vector<256x512xf32>
    %17 = arith.maximumf %15, %16 : vector<256x512xf32>
    %18 = arith.truncf %17 : vector<256x512xf32> to vector<256x512xbf16>
    %c0_5 = arith.constant 0 : index
    %c0_6 = arith.constant 0 : index
    %19 = vector.load %arg4[%c0_5, %c0_6] : memref<512x512xbf16, #tpu.memory_space<vmem>>, vector<512x512xbf16>
    %cst_7 = arith.constant dense<0.000000e+00> : vector<256x512xf32>
    %20 = tpu.matmul %18, %19, %cst_7 {dimension_numbers = #tpu.dot_dimension_numbers<[1], [0], [0], [1], [0, 0, 1, 1], [], []>} : vector<256x512xbf16>, vector<512x512xbf16>, vector<256x512xf32> -> vector<256x512xf32>
    %c0_8 = arith.constant 0 : index
    %c0_9 = arith.constant 0 : index
    %21 = vector.load %arg5[%c0_8, %c0_9] : memref<1x512xf32, #tpu.memory_space<vmem>>, vector<1x512xf32>
    %22 = vector.broadcast %21 : vector<1x512xf32> to vector<256x512xf32>
    %23 = arith.addf %20, %22 : vector<256x512xf32>
    %cst_10 = arith.constant 0.000000e+00 : f32
    %24 = vector.broadcast %cst_10 : f32 to vector<256x512xf32>
    %25 = arith.maximumf %23, %24 : vector<256x512xf32>
    %26 = arith.truncf %25 : vector<256x512xf32> to vector<256x512xbf16>
    %c0_11 = arith.constant 0 : index
    %c0_12 = arith.constant 0 : index
    %27 = vector.load %arg6[%c0_11, %c0_12] : memref<512x512xbf16, #tpu.memory_space<vmem>>, vector<512x512xbf16>
    %cst_13 = arith.constant dense<0.000000e+00> : vector<256x512xf32>
    %28 = tpu.matmul %26, %27, %cst_13 {dimension_numbers = #tpu.dot_dimension_numbers<[1], [0], [0], [1], [0, 0, 1, 1], [], []>} : vector<256x512xbf16>, vector<512x512xbf16>, vector<256x512xf32> -> vector<256x512xf32>
    %c0_14 = arith.constant 0 : index
    %c0_15 = arith.constant 0 : index
    %29 = vector.load %arg7[%c0_14, %c0_15] : memref<1x512xf32, #tpu.memory_space<vmem>>, vector<1x512xf32>
    %30 = vector.broadcast %29 : vector<1x512xf32> to vector<256x512xf32>
    %31 = arith.addf %28, %30 : vector<256x512xf32>
    %cst_16 = arith.constant 0.000000e+00 : f32
    %32 = vector.broadcast %cst_16 : f32 to vector<256x512xf32>
    %33 = arith.maximumf %31, %32 : vector<256x512xf32>
    %34 = arith.truncf %33 : vector<256x512xf32> to vector<256x512xbf16>
    %c0_17 = arith.constant 0 : index
    %c0_18 = arith.constant 0 : index
    %35 = vector.load %arg8[%c0_17, %c0_18] : memref<512x128xbf16, #tpu.memory_space<vmem>>, vector<512x128xbf16>
    %cst_19 = arith.constant dense<0.000000e+00> : vector<256x128xf32>
    %36 = tpu.matmul %34, %35, %cst_19 {dimension_numbers = #tpu.dot_dimension_numbers<[1], [0], [0], [1], [0, 0, 1, 1], [], []>} : vector<256x512xbf16>, vector<512x128xbf16>, vector<256x128xf32> -> vector<256x128xf32>
    %c0_20 = arith.constant 0 : index
    %c0_21 = arith.constant 0 : index
    %37 = vector.load %arg9[%c0_20, %c0_21] : memref<1x128xf32, #tpu.memory_space<vmem>>, vector<1x128xf32>
    %38 = vector.broadcast %37 : vector<1x128xf32> to vector<256x128xf32>
    %39 = arith.addf %36, %38 : vector<256x128xf32>
    %c0_22 = arith.constant 0 : index
    %c0_23 = arith.constant 0 : index
    %40 = vector.load %arg10[%c0_22, %c0_23] : memref<256x128xf32, #tpu.memory_space<vmem>>, vector<256x128xf32>
    tpu.vector_store %arg10[%c0_22, %c0_23], %39 {strides = array<i32>} : memref<256x128xf32, #tpu.memory_space<vmem>>, vector<256x128xf32>,
    return
  }
  func.func @transform_0(%arg0: i32) -> (i32, i32) {
    %c0_i32 = arith.constant 0 : i32
    %c0_i32_0 = arith.constant 0 : i32
    return %arg0, %c0_i32 : i32, i32
  }
  func.func @transform_1(%arg0: i32) -> (i32, i32) {
    %c0_i32 = arith.constant 0 : i32
    %c0_i32_0 = arith.constant 0 : i32
    %c0_i32_1 = arith.constant 0 : i32
    return %c0_i32, %c0_i32_0 : i32, i32
  }
  func.func @transform_2(%arg0: i32) -> (i32, i32) {
    %c0_i32 = arith.constant 0 : i32
    %c0_i32_0 = arith.constant 0 : i32
    %c0_i32_1 = arith.constant 0 : i32
    return %c0_i32, %c0_i32_0 : i32, i32
  }
  func.func @transform_3(%arg0: i32) -> (i32, i32) {
    %c0_i32 = arith.constant 0 : i32
    %c0_i32_0 = arith.constant 0 : i32
    %c0_i32_1 = arith.constant 0 : i32
    return %c0_i32, %c0_i32_0 : i32, i32
  }
  func.func @transform_4(%arg0: i32) -> (i32, i32) {
    %c0_i32 = arith.constant 0 : i32
    %c0_i32_0 = arith.constant 0 : i32
    %c0_i32_1 = arith.constant 0 : i32
    return %c0_i32, %c0_i32_0 : i32, i32
  }
  func.func @transform_5(%arg0: i32) -> (i32, i32) {
    %c0_i32 = arith.constant 0 : i32
    %c0_i32_0 = arith.constant 0 : i32
    %c0_i32_1 = arith.constant 0 : i32
    return %c0_i32, %c0_i32_0 : i32, i32
  }
  func.func @transform_6(%arg0: i32) -> (i32, i32) {
    %c0_i32 = arith.constant 0 : i32
    %c0_i32_0 = arith.constant 0 : i32
    %c0_i32_1 = arith.constant 0 : i32
    return %c0_i32, %c0_i32_0 : i32, i32
  }
  func.func @transform_7(%arg0: i32) -> (i32, i32) {
    %c0_i32 = arith.constant 0 : i32
    %c0_i32_0 = arith.constant 0 : i32
    %c0_i32_1 = arith.constant 0 : i32
    return %c0_i32, %c0_i32_0 : i32, i32
  }
  func.func @transform_8(%arg0: i32) -> (i32, i32) {
    %c0_i32 = arith.constant 0 : i32
    %c0_i32_0 = arith.constant 0 : i32
    %c0_i32_1 = arith.constant 0 : i32
    return %c0_i32, %c0_i32_0 : i32, i32
  }
  func.func @transform_9(%arg0: i32) -> (i32, i32) {
    %c0_i32 = arith.constant 0 : i32
    %c0_i32_0 = arith.constant 0 : i32
    return %arg0, %c0_i32 : i32, i32
  }
}

</mosaic_0001>

<llo_original>
// kernel: generator_forward.1
$region0: #{generator_forward.1}
  #allocation0 [shape = 'u32[]', space=smem, size = 0x4, offset = 0x4, fixed_abs, tag = 'smem constant byte address 0x4 - core index']
  #allocation1 [shape = 'u32[144,128]{1,0:T(1,128)}', space=vmem, size = 0x12000, scoped, tag = 'internal scratch']
  %s0 = inlined_call_operand.vmem [shape: f32[256,2], index: 0, kind: input, shape index: {}]
  %s1 = inlined_call_operand.vmem [shape: f32[2,512], index: 1, kind: input, shape index: {}]
  %s2 = inlined_call_operand.vmem [shape: f32[1,512], index: 2, kind: input, shape index: {}]
  %s3 = inlined_call_operand.hbm [shape: bf16[512,512], index: 3, kind: input, shape index: {}]
  %s4 = inlined_call_operand.vmem [shape: f32[1,512], index: 4, kind: input, shape index: {}]
  %s5 = inlined_call_operand.hbm [shape: bf16[512,512], index: 5, kind: input, shape index: {}]
  %s6 = inlined_call_operand.vmem [shape: f32[1,512], index: 6, kind: input, shape index: {}]
  %s7 = inlined_call_operand.vmem [shape: bf16[512,128], index: 7, kind: input, shape index: {}]
  %s8 = inlined_call_operand.vmem [shape: f32[1,128], index: 8, kind: input, shape index: {}]
  %s9 = inlined_call_operand.vmem [shape: f32[256,128], index: 9, kind: output, shape index: {}]
  %s10 = sld [smem:[#allocation0]]
  $region54: #{generator_forward.1} parent=0
    _
  %s12 = ssub.s32 1, %s10
  %s13 = scalar_select 0, %s12, %s10
  $region1: #{generator_forward.1} parent=0
    #allocation2 [shape = 'u8[524288]{0}', space=vmem, size = 0x80000, scoped, tag = 'input window, operand 3, single buffered']
    #allocation3 [shape = 's32[1]{0}', space=sflag, size = 0x4, scoped, tag = 'scoped memory for generator_forward.1']
    #allocation4 [shape = 'u8[524288]{0}', space=vmem, size = 0x80000, scoped, tag = 'input window, operand 5, single buffered']
    #allocation5 [shape = 's32[1]{0}', space=sflag, size = 0x4, scoped, tag = 'scoped memory for generator_forward.1']
    %14 = vsyncpa [#allocation3], 0
    %15 = vsyncpa [#allocation5], 0
    // Predicated region
    $region2: #{generator_forward.1} parent=1 // pred_check
      _
    $region3: #{generator_forward.1} parent=1 // pred_check_branch
      %17 = sbr.rel (0) target = $region5
    $region4: #{generator_forward.1} parent=1 // pred_region
      _
    $region5: #{generator_forward.1} parent=1 // pred_fallthru
      _
    // Predicated region
    $region6: #{generator_forward.1} parent=1 // pred_check
      _
    $region7: #{generator_forward.1} parent=1 // pred_check_branch
      %19 = sbr.rel (0) target = $region9
    $region8: #{generator_forward.1} parent=1 // pred_region
      _
    $region9: #{generator_forward.1} parent=1 // pred_fallthru
      _
    // Predicated region
    $region10: #{generator_forward.1} parent=1 // pred_check
      _
    $region11: #{generator_forward.1} parent=1 // pred_check_branch
      %21 = sbr.rel (0) target = $region13
    $region12: #{generator_forward.1} parent=1 // pred_region
      _
    $region13: #{generator_forward.1} parent=1 // pred_fallthru
      _
    // Predicated region
    $region14: #{generator_forward.1} parent=1 // pred_check
      _
    $region15: #{generator_forward.1} parent=1 // pred_check_branch
      %23 = sbr.rel (0) target = $region17
    $region16: #{generator_forward.1} parent=1 // pred_region
      %s25 = ssub.s32 16384, 16384
      %26 = vsyncadd [#allocation3], %s25
      %s27 = sshll.u32 [#allocation2], 4
      %s28 = int_to_ptr.vmem [resolvable:$true] %s27
      %33 = dma.hbm_to_vmem [thread:$0]  %s3, 16384, %s28, [#allocation3], 256, 256, 16
    $region17: #{generator_forward.1} parent=1 // pred_fallthru
      _
    // Predicated region
    $region18: #{generator_forward.1} parent=1 // pred_check
      _
    $region19: #{generator_forward.1} parent=1 // pred_check_branch
      %35 = sbr.rel (0) target = $region21
    $region20: #{generator_forward.1} parent=1 // pred_region
      _
    $region21: #{generator_forward.1} parent=1 // pred_fallthru
      _
    // Predicated region
    $region22: #{generator_forward.1} parent=1 // pred_check
      _
    $region23: #{generator_forward.1} parent=1 // pred_check_branch
      %37 = sbr.rel (0) target = $region25
    $region24: #{generator_forward.1} parent=1 // pred_region
      %s39 = ssub.s32 16384, 16384
      %40 = vsyncadd [#allocation5], %s39
      %s41 = sshll.u32 [#allocation4], 4
      %s42 = int_to_ptr.vmem [resolvable:$true] %s41
      %47 = dma.hbm_to_vmem [thread:$0]  %s5, 16384, %s42, [#allocation5], 256, 256, 16
    $region25: #{generator_forward.1} parent=1 // pred_fallthru
      _
    // Predicated region
    $region26: #{generator_forward.1} parent=1 // pred_check
      _
    $region27: #{generator_forward.1} parent=1 // pred_check_branch
      %49 = sbr.rel (0) target = $region29
    $region28: #{generator_forward.1} parent=1 // pred_region
      _
    $region29: #{generator_forward.1} parent=1 // pred_fallthru
      _
    // Predicated region
    $region30: #{generator_forward.1} parent=1 // pred_check
      _
    $region31: #{generator_forward.1} parent=1 // pred_check_branch
      %51 = sbr.rel (0) target = $region33
    $region32: #{generator_forward.1} parent=1 // pred_region
      _
    $region33: #{generator_forward.1} parent=1 // pred_fallthru
      _
    // Predicated region
    $region34: #{generator_forward.1} parent=1 // pred_check
      _
    $region35: #{generator_forward.1} parent=1 // pred_check_branch
      %53 = sbr.rel (0) target = $region37
    $region36: #{generator_forward.1} parent=1 // pred_region
      _
    $region37: #{generator_forward.1} parent=1 // pred_fallthru
      _
    // Predicated region
    $region38: #{generator_forward.1} parent=1 // pred_check
      _
    $region39: #{generator_forward.1} parent=1 // pred_check_branch
      %55 = sbr.rel (0) target = $region41
    $region40: #{generator_forward.1} parent=1 // pred_region
      %56 = dma.done [#allocation3], 16384
    $region41: #{generator_forward.1} parent=1 // pred_fallthru
      _
    // Predicated region
    $region42: #{generator_forward.1} parent=1 // pred_check
      _
    $region43: #{generator_forward.1} parent=1 // pred_check_branch
      %58 = sbr.rel (0) target = $region45
    $region44: #{generator_forward.1} parent=1 // pred_region
      %59 = dma.done [#allocation5], 16384
    $region45: #{generator_forward.1} parent=1 // pred_fallthru
      _
    %v61 = vld [vmem:[%s0] sm:$0xff]
    %v62 = vld [vmem:[%s0 + $0x8] sm:$0xff]
    %v63 = vld [vmem:[%s0 + $0x10] sm:$0xff]
    %v64 = vld [vmem:[%s0 + $0x18] sm:$0xff]
    %v65 = vld [vmem:[%s0 + $0x20] sm:$0xff]
    %v66 = vld [vmem:[%s0 + $0x28] sm:$0xff]
    %v67 = vld [vmem:[%s0 + $0x30] sm:$0xff]
    %v68 = vld [vmem:[%s0 + $0x38] sm:$0xff]
    %v69 = vld [vmem:[%s0 + $0x40] sm:$0xff]
    %v70 = vld [vmem:[%s0 + $0x48] sm:$0xff]
    %v71 = vld [vmem:[%s0 + $0x50] sm:$0xff]
    %v72 = vld [vmem:[%s0 + $0x58] sm:$0xff]
    %v73 = vld [vmem:[%s0 + $0x60] sm:$0xff]
    %v74 = vld [vmem:[%s0 + $0x68] sm:$0xff]
    %v75 = vld [vmem:[%s0 + $0x70] sm:$0xff]
    %v76 = vld [vmem:[%s0 + $0x78] sm:$0xff]
    %v77 = vld [vmem:[%s0 + $0x80] sm:$0xff]
    %v78 = vld [vmem:[%s0 + $0x88] sm:$0xff]
    %v79 = vld [vmem:[%s0 + $0x90] sm:$0xff]
    %v80 = vld [vmem:[%s0 + $0x98] sm:$0xff]
    %v81 = vld [vmem:[%s0 + $0xa0] sm:$0xff]
    %v82 = vld [vmem:[%s0 + $0xa8] sm:$0xff]
    %v83 = vld [vmem:[%s0 + $0xb0] sm:$0xff]
    %v84 = vld [vmem:[%s0 + $0xb8] sm:$0xff]
    %v85 = vld [vmem:[%s0 + $0xc0] sm:$0xff]
    %v86 = vld [vmem:[%s0 + $0xc8] sm:$0xff]
    %v87 = vld [vmem:[%s0 + $0xd0] sm:$0xff]
    %v88 = vld [vmem:[%s0 + $0xd8] sm:$0xff]
    %v89 = vld [vmem:[%s0 + $0xe0] sm:$0xff]
    %v90 = vld [vmem:[%s0 + $0xe8] sm:$0xff]
    %v91 = vld [vmem:[%s0 + $0xf0] sm:$0xff]
    %v92 = vld [vmem:[%s0 + $0xf8] sm:$0xff]
    %v93 = vld [vmem:[%s1] sm:$0xff]
    %95 = vset.pattern.permute.xlu0 0
    %96 = vperm.xlu0 %95, %v61
    %v97 = vpop.permute.xlu0 %96
    %100 = vset.pattern.permute.xlu0 0
    %101 = vperm.xlu0 %100, %v62
    %v102 = vpop.permute.xlu0 %101
    %105 = vset.pattern.permute.xlu0 0
    %106 = vperm.xlu0 %105, %v63
    %v107 = vpop.permute.xlu0 %106
    %110 = vset.pattern.permute.xlu0 0
    %111 = vperm.xlu0 %110, %v64
    %v112 = vpop.permute.xlu0 %111
    %115 = vset.pattern.permute.xlu0 0
    %116 = vperm.xlu0 %115, %v65
    %v117 = vpop.permute.xlu0 %116
    %120 = vset.pattern.permute.xlu0 0
    %121 = vperm.xlu0 %120, %v66
    %v122 = vpop.permute.xlu0 %121
    %125 = vset.pattern.permute.xlu0 0
    %126 = vperm.xlu0 %125, %v67
    %v127 = vpop.permute.xlu0 %126
    %130 = vset.pattern.permute.xlu0 0
    %131 = vperm.xlu0 %130, %v68
    %v132 = vpop.permute.xlu0 %131
    %135 = vset.pattern.permute.xlu0 0
    %136 = vperm.xlu0 %135, %v69
    %v137 = vpop.permute.xlu0 %136
    %140 = vset.pattern.permute.xlu0 0
    %141 = vperm.xlu0 %140, %v70
    %v142 = vpop.permute.xlu0 %141
    %145 = vset.pattern.permute.xlu0 0
    %146 = vperm.xlu0 %145, %v71
    %v147 = vpop.permute.xlu0 %146
    %150 = vset.pattern.permute.xlu0 0
    %151 = vperm.xlu0 %150, %v72
    %v152 = vpop.permute.xlu0 %151
    %155 = vset.pattern.permute.xlu0 0
    %156 = vperm.xlu0 %155, %v73
    %v157 = vpop.permute.xlu0 %156
    %160 = vset.pattern.permute.xlu0 0
    %161 = vperm.xlu0 %160, %v74
    %v162 = vpop.permute.xlu0 %161
    %165 = vset.pattern.permute.xlu0 0
    %166 = vperm.xlu0 %165, %v75
    %v167 = vpop.permute.xlu0 %166
    %170 = vset.pattern.permute.xlu0 0
    %171 = vperm.xlu0 %170, %v76
    %v172 = vpop.permute.xlu0 %171
    %175 = vset.pattern.permute.xlu0 0
    %176 = vperm.xlu0 %175, %v77
    %v177 = vpop.permute.xlu0 %176
    %180 = vset.pattern.permute.xlu0 0
    %181 = vperm.xlu0 %180, %v78
    %v182 = vpop.permute.xlu0 %181
    %185 = vset.pattern.permute.xlu0 0
    %186 = vperm.xlu0 %185, %v79
    %v187 = vpop.permute.xlu0 %186
    %190 = vset.pattern.permute.xlu0 0
    %191 = vperm.xlu0 %190, %v80
    %v192 = vpop.permute.xlu0 %191
    %195 = vset.pattern.permute.xlu0 0
    %196 = vperm.xlu0 %195, %v81
    %v197 = vpop.permute.xlu0 %196
    %200 = vset.pattern.permute.xlu0 0
    %201 = vperm.xlu0 %200, %v82
    %v202 = vpop.permute.xlu0 %201
    %205 = vset.pattern.permute.xlu0 0
    %206 = vperm.xlu0 %205, %v83
    %v207 = vpop.permute.xlu0 %206
    %210 = vset.pattern.permute.xlu0 0
    %211 = vperm.xlu0 %210, %v84
    %v212 = vpop.permute.xlu0 %211
    %215 = vset.pattern.permute.xlu0 0
    %216 = vperm.xlu0 %215, %v85
    %v217 = vpop.permute.xlu0 %216
    %220 = vset.pattern.permute.xlu0 0
    %221 = vperm.xlu0 %220, %v86
    %v222 = vpop.permute.xlu0 %221
    %225 = vset.pattern.permute.xlu0 0
    %226 = vperm.xlu0 %225, %v87
    %v227 = vpop.permute.xlu0 %226
    %230 = vset.pattern.permute.xlu0 0
    %231 = vperm.xlu0 %230, %v88
    %v232 = vpop.permute.xlu0 %231
    %235 = vset.pattern.permute.xlu0 0
    %236 = vperm.xlu0 %235, %v89
    %v237 = vpop.permute.xlu0 %236
    %240 = vset.pattern.permute.xlu0 0
    %241 = vperm.xlu0 %240, %v90
    %v242 = vpop.permute.xlu0 %241
    %245 = vset.pattern.permute.xlu0 0
    %246 = vperm.xlu0 %245, %v91
    %v247 = vpop.permute.xlu0 %246
    %250 = vset.pattern.permute.xlu0 0
    %251 = vperm.xlu0 %250, %v92
    %v252 = vpop.permute.xlu0 %251
    %v255 = vlaneseq
    %v256 = vshrl.u32 %v255, 7
    %v257 = vsub.s32 0, %v256
    %v258 = vrot.slane %v93, %v257
    %v259 = vlaneseq
    %v260 = vshrl.u32 %v259, 7
    %v261 = vsub.s32 2, %v260
    %v262 = vrot.slane %v93, %v261
    %v263 = vlaneseq
    %v264 = vshrl.u32 %v263, 7
    %v265 = vsub.s32 4, %v264
    %v266 = vrot.slane %v93, %v265
    %v267 = vlaneseq
    %v268 = vshrl.u32 %v267, 7
    %v269 = vsub.s32 6, %v268
    %v270 = vrot.slane %v93, %v269
    %v275 = vlaneseq
    %v276 = vshrl.u32 %v275, 7
    %v277 = vsub.s32 0, %v276
    %v278 = vrot.slane %v258, %v277
    %v279 = vlaneseq
    %v280 = vshrl.u32 %v279, 7
    %v281 = vsub.s32 0, %v280
    %v282 = vrot.slane %v262, %v281
    %v283 = vlaneseq
    %v284 = vshrl.u32 %v283, 7
    %v285 = vsub.s32 0, %v284
    %v286 = vrot.slane %v266, %v285
    %v287 = vlaneseq
    %v288 = vshrl.u32 %v287, 7
    %v289 = vsub.s32 0, %v288
    %v290 = vrot.slane %v270, %v289
    %v291 = vmul.f32 %v97, %v278
    %v292 = vmul.f32 %v97, %v282
    %v293 = vmul.f32 %v97, %v286
    %v294 = vmul.f32 %v97, %v290
    %v295 = vmul.f32 %v102, %v278
    %v296 = vmul.f32 %v102, %v282
    %v297 = vmul.f32 %v102, %v286
    %v298 = vmul.f32 %v102, %v290
    %v299 = vmul.f32 %v107, %v278
    %v300 = vmul.f32 %v107, %v282
    %v301 = vmul.f32 %v107, %v286
    %v302 = vmul.f32 %v107, %v290
    %v303 = vmul.f32 %v112, %v278
    %v304 = vmul.f32 %v112, %v282
    %v305 = vmul.f32 %v112, %v286
    %v306 = vmul.f32 %v112, %v290
    %v307 = vmul.f32 %v117, %v278
    %v308 = vmul.f32 %v117, %v282
    %v309 = vmul.f32 %v117, %v286
    %v310 = vmul.f32 %v117, %v290
    %v311 = vmul.f32 %v122, %v278
    %v312 = vmul.f32 %v122, %v282
    %v313 = vmul.f32 %v122, %v286
    %v314 = vmul.f32 %v122, %v290
    %v315 = vmul.f32 %v127, %v278
    %v316 = vmul.f32 %v127, %v282
    %v317 = vmul.f32 %v127, %v286
    %v318 = vmul.f32 %v127, %v290
    %v319 = vmul.f32 %v132, %v278
    %v320 = vmul.f32 %v132, %v282
    %v321 = vmul.f32 %v132, %v286
    %v322 = vmul.f32 %v132, %v290
    %v323 = vmul.f32 %v137, %v278
    %v324 = vmul.f32 %v137, %v282
    %v325 = vmul.f32 %v137, %v286
    %v326 = vmul.f32 %v137, %v290
    %v327 = vmul.f32 %v142, %v278
    %v328 = vmul.f32 %v142, %v282
    %v329 = vmul.f32 %v142, %v286
    %v330 = vmul.f32 %v142, %v290
    %v331 = vmul.f32 %v147, %v278
    %v332 = vmul.f32 %v147, %v282
    %v333 = vmul.f32 %v147, %v286
    %v334 = vmul.f32 %v147, %v290
    %v335 = vmul.f32 %v152, %v278
    %v336 = vmul.f32 %v152, %v282
    %v337 = vmul.f32 %v152, %v286
    %v338 = vmul.f32 %v152, %v290
    %v339 = vmul.f32 %v157, %v278
    %v340 = vmul.f32 %v157, %v282
    %v341 = vmul.f32 %v157, %v286
    %v342 = vmul.f32 %v157, %v290
    %v343 = vmul.f32 %v162, %v278
    %v344 = vmul.f32 %v162, %v282
    %v345 = vmul.f32 %v162, %v286
    %v346 = vmul.f32 %v162, %v290
    %v347 = vmul.f32 %v167, %v278
    %v348 = vmul.f32 %v167, %v282
    %v349 = vmul.f32 %v167, %v286
    %v350 = vmul.f32 %v167, %v290
    %v351 = vmul.f32 %v172, %v278
    %v352 = vmul.f32 %v172, %v282
    %v353 = vmul.f32 %v172, %v286
    %v354 = vmul.f32 %v172, %v290
    %v355 = vmul.f32 %v177, %v278
    %v356 = vmul.f32 %v177, %v282
    %v357 = vmul.f32 %v177, %v286
    %v358 = vmul.f32 %v177, %v290
    %v359 = vmul.f32 %v182, %v278
    %v360 = vmul.f32 %v182, %v282
    %v361 = vmul.f32 %v182, %v286
    %v362 = vmul.f32 %v182, %v290
    %v363 = vmul.f32 %v187, %v278
    %v364 = vmul.f32 %v187, %v282
    %v365 = vmul.f32 %v187, %v286
    %v366 = vmul.f32 %v187, %v290
    %v367 = vmul.f32 %v192, %v278
    %v368 = vmul.f32 %v192, %v282
    %v369 = vmul.f32 %v192, %v286
    %v370 = vmul.f32 %v192, %v290
    %v371 = vmul.f32 %v197, %v278
    %v372 = vmul.f32 %v197, %v282
    %v373 = vmul.f32 %v197, %v286
    %v374 = vmul.f32 %v197, %v290
    %v375 = vmul.f32 %v202, %v278
    %v376 = vmul.f32 %v202, %v282
    %v377 = vmul.f32 %v202, %v286
    %v378 = vmul.f32 %v202, %v290
    %v379 = vmul.f32 %v207, %v278
    %v380 = vmul.f32 %v207, %v282
    %v381 = vmul.f32 %v207, %v286
    %v382 = vmul.f32 %v207, %v290
    %v383 = vmul.f32 %v212, %v278
    %v384 = vmul.f32 %v212, %v282
    %v385 = vmul.f32 %v212, %v286
    %v386 = vmul.f32 %v212, %v290
    %v387 = vmul.f32 %v217, %v278
    %v388 = vmul.f32 %v217, %v282
    %v389 = vmul.f32 %v217, %v286
    %v390 = vmul.f32 %v217, %v290
    %v391 = vmul.f32 %v222, %v278
    %v392 = vmul.f32 %v222, %v282
    %v393 = vmul.f32 %v222, %v286
    %v394 = vmul.f32 %v222, %v290
    %v395 = vmul.f32 %v227, %v278
    %v396 = vmul.f32 %v227, %v282
    %v397 = vmul.f32 %v227, %v286
    %v398 = vmul.f32 %v227, %v290
    %v399 = vmul.f32 %v232, %v278
    %v400 = vmul.f32 %v232, %v282
    %v401 = vmul.f32 %v232, %v286
    %v402 = vmul.f32 %v232, %v290
    %v403 = vmul.f32 %v237, %v278
    %v404 = vmul.f32 %v237, %v282
    %v405 = vmul.f32 %v237, %v286
    %v406 = vmul.f32 %v237, %v290
    %v407 = vmul.f32 %v242, %v278
    %v408 = vmul.f32 %v242, %v282
    %v409 = vmul.f32 %v242, %v286
    %v410 = vmul.f32 %v242, %v290
    %v411 = vmul.f32 %v247, %v278
    %v412 = vmul.f32 %v247, %v282
    %v413 = vmul.f32 %v247, %v286
    %v414 = vmul.f32 %v247, %v290
    %v415 = vmul.f32 %v252, %v278
    %v416 = vmul.f32 %v252, %v282
    %v417 = vmul.f32 %v252, %v286
    %v418 = vmul.f32 %v252, %v290
    %419 = vset.pattern.permute.xlu0 1
    %420 = vperm.xlu0 %419, %v61
    %v421 = vpop.permute.xlu0 %420
    %423 = vset.pattern.permute.xlu0 1
    %424 = vperm.xlu0 %423, %v62
    %v425 = vpop.permute.xlu0 %424
    %427 = vset.pattern.permute.xlu0 1
    %428 = vperm.xlu0 %427, %v63
    %v429 = vpop.permute.xlu0 %428
    %431 = vset.pattern.permute.xlu0 1
    %432 = vperm.xlu0 %431, %v64
    %v433 = vpop.permute.xlu0 %432
    %435 = vset.pattern.permute.xlu0 1
    %436 = vperm.xlu0 %435, %v65
    %v437 = vpop.permute.xlu0 %436
    %439 = vset.pattern.permute.xlu0 1
    %440 = vperm.xlu0 %439, %v66
    %v441 = vpop.permute.xlu0 %440
    %443 = vset.pattern.permute.xlu0 1
    %444 = vperm.xlu0 %443, %v67
    %v445 = vpop.permute.xlu0 %444
    %447 = vset.pattern.permute.xlu0 1
    %448 = vperm.xlu0 %447, %v68
    %v449 = vpop.permute.xlu0 %448
    %451 = vset.pattern.permute.xlu0 1
    %452 = vperm.xlu0 %451, %v69
    %v453 = vpop.permute.xlu0 %452
    %455 = vset.pattern.permute.xlu0 1
    %456 = vperm.xlu0 %455, %v70
    %v457 = vpop.permute.xlu0 %456
    %459 = vset.pattern.permute.xlu0 1
    %460 = vperm.xlu0 %459, %v71
    %v461 = vpop.permute.xlu0 %460
    %463 = vset.pattern.permute.xlu0 1
    %464 = vperm.xlu0 %463, %v72
    %v465 = vpop.permute.xlu0 %464
    %467 = vset.pattern.permute.xlu0 1
    %468 = vperm.xlu0 %467, %v73
    %v469 = vpop.permute.xlu0 %468
    %471 = vset.pattern.permute.xlu0 1
    %472 = vperm.xlu0 %471, %v74
    %v473 = vpop.permute.xlu0 %472
    %475 = vset.pattern.permute.xlu0 1
    %476 = vperm.xlu0 %475, %v75
    %v477 = vpop.permute.xlu0 %476
    %479 = vset.pattern.permute.xlu0 1
    %480 = vperm.xlu0 %479, %v76
    %v481 = vpop.permute.xlu0 %480
    %483 = vset.pattern.permute.xlu0 1
    %484 = vperm.xlu0 %483, %v77
    %v485 = vpop.permute.xlu0 %484
    %487 = vset.pattern.permute.xlu0 1
    %488 = vperm.xlu0 %487, %v78
    %v489 = vpop.permute.xlu0 %488
    %491 = vset.pattern.permute.xlu0 1
    %492 = vperm.xlu0 %491, %v79
    %v493 = vpop.permute.xlu0 %492
    %495 = vset.pattern.permute.xlu0 1
    %496 = vperm.xlu0 %495, %v80
    %v497 = vpop.permute.xlu0 %496
    %499 = vset.pattern.permute.xlu0 1
    %500 = vperm.xlu0 %499, %v81
    %v501 = vpop.permute.xlu0 %500
    %503 = vset.pattern.permute.xlu0 1
    %504 = vperm.xlu0 %503, %v82
    %v505 = vpop.permute.xlu0 %504
    %507 = vset.pattern.permute.xlu0 1
    %508 = vperm.xlu0 %507, %v83
    %v509 = vpop.permute.xlu0 %508
    %511 = vset.pattern.permute.xlu0 1
    %512 = vperm.xlu0 %511, %v84
    %v513 = vpop.permute.xlu0 %512
    %515 = vset.pattern.permute.xlu0 1
    %516 = vperm.xlu0 %515, %v85
    %v517 = vpop.permute.xlu0 %516
    %519 = vset.pattern.permute.xlu0 1
    %520 = vperm.xlu0 %519, %v86
    %v521 = vpop.permute.xlu0 %520
    %523 = vset.pattern.permute.xlu0 1
    %524 = vperm.xlu0 %523, %v87
    %v525 = vpop.permute.xlu0 %524
    %527 = vset.pattern.permute.xlu0 1
    %528 = vperm.xlu0 %527, %v88
    %v529 = vpop.permute.xlu0 %528
    %531 = vset.pattern.permute.xlu0 1
    %532 = vperm.xlu0 %531, %v89
    %v533 = vpop.permute.xlu0 %532
    %535 = vset.pattern.permute.xlu0 1
    %536 = vperm.xlu0 %535, %v90
    %v537 = vpop.permute.xlu0 %536
    %539 = vset.pattern.permute.xlu0 1
    %540 = vperm.xlu0 %539, %v91
    %v541 = vpop.permute.xlu0 %540
    %543 = vset.pattern.permute.xlu0 1
    %544 = vperm.xlu0 %543, %v92
    %v545 = vpop.permute.xlu0 %544
    %v547 = vlaneseq
    %v548 = vshrl.u32 %v547, 7
    %v549 = vsub.s32 1, %v548
    %v550 = vrot.slane %v93, %v549
    %v551 = vlaneseq
    %v552 = vshrl.u32 %v551, 7
    %v553 = vsub.s32 3, %v552
    %v554 = vrot.slane %v93, %v553
    %v555 = vlaneseq
    %v556 = vshrl.u32 %v555, 7
    %v557 = vsub.s32 5, %v556
    %v558 = vrot.slane %v93, %v557
    %v559 = vlaneseq
    %v560 = vshrl.u32 %v559, 7
    %v561 = vsub.s32 7, %v560
    %v562 = vrot.slane %v93, %v561
    %v567 = vlaneseq
    %v568 = vshrl.u32 %v567, 7
    %v569 = vsub.s32 1, %v568
    %v570 = vrot.slane %v550, %v569
    %v571 = vlaneseq
    %v572 = vshrl.u32 %v571, 7
    %v573 = vsub.s32 1, %v572
    %v574 = vrot.slane %v554, %v573
    %v575 = vlaneseq
    %v576 = vshrl.u32 %v575, 7
    %v577 = vsub.s32 1, %v576
    %v578 = vrot.slane %v558, %v577
    %v579 = vlaneseq
    %v580 = vshrl.u32 %v579, 7
    %v581 = vsub.s32 1, %v580
    %v582 = vrot.slane %v562, %v581
    %v583 = vmul.f32 %v421, %v570
    %v584 = vmul.f32 %v421, %v574
    %v585 = vmul.f32 %v421, %v578
    %v586 = vmul.f32 %v421, %v582
    %v587 = vmul.f32 %v425, %v570
    %v588 = vmul.f32 %v425, %v574
    %v589 = vmul.f32 %v425, %v578
    %v590 = vmul.f32 %v425, %v582
    %v591 = vmul.f32 %v429, %v570
    %v592 = vmul.f32 %v429, %v574
    %v593 = vmul.f32 %v429, %v578
    %v594 = vmul.f32 %v429, %v582
    %v595 = vmul.f32 %v433, %v570
    %v596 = vmul.f32 %v433, %v574
    %v597 = vmul.f32 %v433, %v578
    %v598 = vmul.f32 %v433, %v582
    %v599 = vmul.f32 %v437, %v570
    %v600 = vmul.f32 %v437, %v574
    %v601 = vmul.f32 %v437, %v578
    %v602 = vmul.f32 %v437, %v582
    %v603 = vmul.f32 %v441, %v570
    %v604 = vmul.f32 %v441, %v574
    %v605 = vmul.f32 %v441, %v578
    %v606 = vmul.f32 %v441, %v582
    %v607 = vmul.f32 %v445, %v570
    %v608 = vmul.f32 %v445, %v574
    %v609 = vmul.f32 %v445, %v578
    %v610 = vmul.f32 %v445, %v582
    %v611 = vmul.f32 %v449, %v570
    %v612 = vmul.f32 %v449, %v574
    %v613 = vmul.f32 %v449, %v578
    %v614 = vmul.f32 %v449, %v582
    %v615 = vmul.f32 %v453, %v570
    %v616 = vmul.f32 %v453, %v574
    %v617 = vmul.f32 %v453, %v578
    %v618 = vmul.f32 %v453, %v582
    %v619 = vmul.f32 %v457, %v570
    %v620 = vmul.f32 %v457, %v574
    %v621 = vmul.f32 %v457, %v578
    %v622 = vmul.f32 %v457, %v582
    %v623 = vmul.f32 %v461, %v570
    %v624 = vmul.f32 %v461, %v574
    %v625 = vmul.f32 %v461, %v578
    %v626 = vmul.f32 %v461, %v582
    %v627 = vmul.f32 %v465, %v570
    %v628 = vmul.f32 %v465, %v574
    %v629 = vmul.f32 %v465, %v578
    %v630 = vmul.f32 %v465, %v582
    %v631 = vmul.f32 %v469, %v570
    %v632 = vmul.f32 %v469, %v574
    %v633 = vmul.f32 %v469, %v578
    %v634 = vmul.f32 %v469, %v582
    %v635 = vmul.f32 %v473, %v570
    %v636 = vmul.f32 %v473, %v574
    %v637 = vmul.f32 %v473, %v578
    %v638 = vmul.f32 %v473, %v582
    %v639 = vmul.f32 %v477, %v570
    %v640 = vmul.f32 %v477, %v574
    %v641 = vmul.f32 %v477, %v578
    %v642 = vmul.f32 %v477, %v582
    %v643 = vmul.f32 %v481, %v570
    %v644 = vmul.f32 %v481, %v574
    %v645 = vmul.f32 %v481, %v578
    %v646 = vmul.f32 %v481, %v582
    %v647 = vmul.f32 %v485, %v570
    %v648 = vmul.f32 %v485, %v574
    %v649 = vmul.f32 %v485, %v578
    %v650 = vmul.f32 %v485, %v582
    %v651 = vmul.f32 %v489, %v570
    %v652 = vmul.f32 %v489, %v574
    %v653 = vmul.f32 %v489, %v578
    %v654 = vmul.f32 %v489, %v582
    %v655 = vmul.f32 %v493, %v570
    %v656 = vmul.f32 %v493, %v574
    %v657 = vmul.f32 %v493, %v578
    %v658 = vmul.f32 %v493, %v582
    %v659 = vmul.f32 %v497, %v570
    %v660 = vmul.f32 %v497, %v574
    %v661 = vmul.f32 %v497, %v578
    %v662 = vmul.f32 %v497, %v582
    %v663 = vmul.f32 %v501, %v570
    %v664 = vmul.f32 %v501, %v574
    %v665 = vmul.f32 %v501, %v578
    %v666 = vmul.f32 %v501, %v582
    %v667 = vmul.f32 %v505, %v570
    %v668 = vmul.f32 %v505, %v574
    %v669 = vmul.f32 %v505, %v578
    %v670 = vmul.f32 %v505, %v582
    %v671 = vmul.f32 %v509, %v570
    %v672 = vmul.f32 %v509, %v574
    %v673 = vmul.f32 %v509, %v578
    %v674 = vmul.f32 %v509, %v582
    %v675 = vmul.f32 %v513, %v570
    %v676 = vmul.f32 %v513, %v574
    %v677 = vmul.f32 %v513, %v578
    %v678 = vmul.f32 %v513, %v582
    %v679 = vmul.f32 %v517, %v570
    %v680 = vmul.f32 %v517, %v574
    %v681 = vmul.f32 %v517, %v578
    %v682 = vmul.f32 %v517, %v582
    %v683 = vmul.f32 %v521, %v570
    %v684 = vmul.f32 %v521, %v574
    %v685 = vmul.f32 %v521, %v578
    %v686 = vmul.f32 %v521, %v582
    %v687 = vmul.f32 %v525, %v570
    %v688 = vmul.f32 %v525, %v574
    %v689 = vmul.f32 %v525, %v578
    %v690 = vmul.f32 %v525, %v582
    %v691 = vmul.f32 %v529, %v570
    %v692 = vmul.f32 %v529, %v574
    %v693 = vmul.f32 %v529, %v578
    %v694 = vmul.f32 %v529, %v582
    %v695 = vmul.f32 %v533, %v570
    %v696 = vmul.f32 %v533, %v574
    %v697 = vmul.f32 %v533, %v578
    %v698 = vmul.f32 %v533, %v582
    %v699 = vmul.f32 %v537, %v570
    %v700 = vmul.f32 %v537, %v574
    %v701 = vmul.f32 %v537, %v578
    %v702 = vmul.f32 %v537, %v582
    %v703 = vmul.f32 %v541, %v570
    %v704 = vmul.f32 %v541, %v574
    %v705 = vmul.f32 %v541, %v578
    %v706 = vmul.f32 %v541, %v582
    %v707 = vmul.f32 %v545, %v570
    %v708 = vmul.f32 %v545, %v574
    %v709 = vmul.f32 %v545, %v578
    %v710 = vmul.f32 %v545, %v582
    %v711 = vadd.f32 %v291, %v583
    %v712 = vadd.f32 %v292, %v584
    %v713 = vadd.f32 %v293, %v585
    %v714 = vadd.f32 %v294, %v586
    %v715 = vadd.f32 %v295, %v587
    %v716 = vadd.f32 %v296, %v588
    %v717 = vadd.f32 %v297, %v589
    %v718 = vadd.f32 %v298, %v590
    %v719 = vadd.f32 %v299, %v591
    %v720 = vadd.f32 %v300, %v592
    %v721 = vadd.f32 %v301, %v593
    %v722 = vadd.f32 %v302, %v594
    %v723 = vadd.f32 %v303, %v595
    %v724 = vadd.f32 %v304, %v596
    %v725 = vadd.f32 %v305, %v597
    %v726 = vadd.f32 %v306, %v598
    %v727 = vadd.f32 %v307, %v599
    %v728 = vadd.f32 %v308, %v600
    %v729 = vadd.f32 %v309, %v601
    %v730 = vadd.f32 %v310, %v602
    %v731 = vadd.f32 %v311, %v603
    %v732 = vadd.f32 %v312, %v604
    %v733 = vadd.f32 %v313, %v605
    %v734 = vadd.f32 %v314, %v606
    %v735 = vadd.f32 %v315, %v607
    %v736 = vadd.f32 %v316, %v608
    %v737 = vadd.f32 %v317, %v609
    %v738 = vadd.f32 %v318, %v610
    %v739 = vadd.f32 %v319, %v611
    %v740 = vadd.f32 %v320, %v612
    %v741 = vadd.f32 %v321, %v613
    %v742 = vadd.f32 %v322, %v614
    %v743 = vadd.f32 %v323, %v615
    %v744 = vadd.f32 %v324, %v616
    %v745 = vadd.f32 %v325, %v617
    %v746 = vadd.f32 %v326, %v618
    %v747 = vadd.f32 %v327, %v619
    %v748 = vadd.f32 %v328, %v620
    %v749 = vadd.f32 %v329, %v621
    %v750 = vadd.f32 %v330, %v622
    %v751 = vadd.f32 %v331, %v623
    %v752 = vadd.f32 %v332, %v624
    %v753 = vadd.f32 %v333, %v625
    %v754 = vadd.f32 %v334, %v626
    %v755 = vadd.f32 %v335, %v627
    %v756 = vadd.f32 %v336, %v628
    %v757 = vadd.f32 %v337, %v629
    %v758 = vadd.f32 %v338, %v630
    %v759 = vadd.f32 %v339, %v631
    %v760 = vadd.f32 %v340, %v632
    %v761 = vadd.f32 %v341, %v633
    %v762 = vadd.f32 %v342, %v634
    %v763 = vadd.f32 %v343, %v635
    %v764 = vadd.f32 %v344, %v636
    %v765 = vadd.f32 %v345, %v637
    %v766 = vadd.f32 %v346, %v638
    %v767 = vadd.f32 %v347, %v639
    %v768 = vadd.f32 %v348, %v640
    %v769 = vadd.f32 %v349, %v641
    %v770 = vadd.f32 %v350, %v642
    %v771 = vadd.f32 %v351, %v643
    %v772 = vadd.f32 %v352, %v644
    %v773 = vadd.f32 %v353, %v645
    %v774 = vadd.f32 %v354, %v646
    %v775 = vadd.f32 %v355, %v647
    %v776 = vadd.f32 %v356, %v648
    %v777 = vadd.f32 %v357, %v649
    %v778 = vadd.f32 %v358, %v650
    %v779 = vadd.f32 %v359, %v651
    %v780 = vadd.f32 %v360, %v652
    %v781 = vadd.f32 %v361, %v653
    %v782 = vadd.f32 %v362, %v654
    %v783 = vadd.f32 %v363, %v655
    %v784 = vadd.f32 %v364, %v656
    %v785 = vadd.f32 %v365, %v657
    %v786 = vadd.f32 %v366, %v658
    %v787 = vadd.f32 %v367, %v659
    %v788 = vadd.f32 %v368, %v660
    %v789 = vadd.f32 %v369, %v661
    %v790 = vadd.f32 %v370, %v662
    %v791 = vadd.f32 %v371, %v663
    %v792 = vadd.f32 %v372, %v664
    %v793 = vadd.f32 %v373, %v665
    %v794 = vadd.f32 %v374, %v666
    %v795 = vadd.f32 %v375, %v667
    %v796 = vadd.f32 %v376, %v668
    %v797 = vadd.f32 %v377, %v669
    %v798 = vadd.f32 %v378, %v670
    %v799 = vadd.f32 %v379, %v671
    %v800 = vadd.f32 %v380, %v672
    %v801 = vadd.f32 %v381, %v673
    %v802 = vadd.f32 %v382, %v674
    %v803 = vadd.f32 %v383, %v675
    %v804 = vadd.f32 %v384, %v676
    %v805 = vadd.f32 %v385, %v677
    %v806 = vadd.f32 %v386, %v678
    %v807 = vadd.f32 %v387, %v679
    %v808 = vadd.f32 %v388, %v680
    %v809 = vadd.f32 %v389, %v681
    %v810 = vadd.f32 %v390, %v682
    %v811 = vadd.f32 %v391, %v683
    %v812 = vadd.f32 %v392, %v684
    %v813 = vadd.f32 %v393, %v685
    %v814 = vadd.f32 %v394, %v686
    %v815 = vadd.f32 %v395, %v687
    %v816 = vadd.f32 %v396, %v688
    %v817 = vadd.f32 %v397, %v689
    %v818 = vadd.f32 %v398, %v690
    %v819 = vadd.f32 %v399, %v691
    %v820 = vadd.f32 %v400, %v692
    %v821 = vadd.f32 %v401, %v693
    %v822 = vadd.f32 %v402, %v694
    %v823 = vadd.f32 %v403, %v695
    %v824 = vadd.f32 %v404, %v696
    %v825 = vadd.f32 %v405, %v697
    %v826 = vadd.f32 %v406, %v698
    %v827 = vadd.f32 %v407, %v699
    %v828 = vadd.f32 %v408, %v700
    %v829 = vadd.f32 %v409, %v701
    %v830 = vadd.f32 %v410, %v702
    %v831 = vadd.f32 %v411, %v703
    %v832 = vadd.f32 %v412, %v704
    %v833 = vadd.f32 %v413, %v705
    %v834 = vadd.f32 %v414, %v706
    %v835 = vadd.f32 %v415, %v707
    %v836 = vadd.f32 %v416, %v708
    %v837 = vadd.f32 %v417, %v709
    %v838 = vadd.f32 %v418, %v710
    %v839 = vld [vmem:[%s2] sm:$0xf]
    %v841 = vlaneseq
    %v842 = vshrl.u32 %v841, 7
    %v843 = vsub.s32 0, %v842
    %v844 = vrot.slane %v839, %v843
    %v845 = vlaneseq
    %v846 = vshrl.u32 %v845, 7
    %v847 = vsub.s32 1, %v846
    %v848 = vrot.slane %v839, %v847
    %v849 = vlaneseq
    %v850 = vshrl.u32 %v849, 7
    %v851 = vsub.s32 2, %v850
    %v852 = vrot.slane %v839, %v851
    %v853 = vlaneseq
    %v854 = vshrl.u32 %v853, 7
    %v855 = vsub.s32 3, %v854
    %v856 = vrot.slane %v839, %v855
    %v861 = vadd.f32 %v711, %v844
    %v862 = vadd.f32 %v712, %v848
    %v863 = vadd.f32 %v713, %v852
    %v864 = vadd.f32 %v714, %v856
    %v865 = vadd.f32 %v715, %v844
    %v866 = vadd.f32 %v716, %v848
    %v867 = vadd.f32 %v717, %v852
    %v868 = vadd.f32 %v718, %v856
    %v869 = vadd.f32 %v719, %v844
    %v870 = vadd.f32 %v720, %v848
    %v871 = vadd.f32 %v721, %v852
    %v872 = vadd.f32 %v722, %v856
    %v873 = vadd.f32 %v723, %v844
    %v874 = vadd.f32 %v724, %v848
    %v875 = vadd.f32 %v725, %v852
    %v876 = vadd.f32 %v726, %v856
    %v877 = vadd.f32 %v727, %v844
    %v878 = vadd.f32 %v728, %v848
    %v879 = vadd.f32 %v729, %v852
    %v880 = vadd.f32 %v730, %v856
    %v881 = vadd.f32 %v731, %v844
    %v882 = vadd.f32 %v732, %v848
    %v883 = vadd.f32 %v733, %v852
    %v884 = vadd.f32 %v734, %v856
    %v885 = vadd.f32 %v735, %v844
    %v886 = vadd.f32 %v736, %v848
    %v887 = vadd.f32 %v737, %v852
    %v888 = vadd.f32 %v738, %v856
    %v889 = vadd.f32 %v739, %v844
    %v890 = vadd.f32 %v740, %v848
    %v891 = vadd.f32 %v741, %v852
    %v892 = vadd.f32 %v742, %v856
    %v893 = vadd.f32 %v743, %v844
    %v894 = vadd.f32 %v744, %v848
    %v895 = vadd.f32 %v745, %v852
    %v896 = vadd.f32 %v746, %v856
    %v897 = vadd.f32 %v747, %v844
    %v898 = vadd.f32 %v748, %v848
    %v899 = vadd.f32 %v749, %v852
    %v900 = vadd.f32 %v750, %v856
    %v901 = vadd.f32 %v751, %v844
    %v902 = vadd.f32 %v752, %v848
    %v903 = vadd.f32 %v753, %v852
    %v904 = vadd.f32 %v754, %v856
    %v905 = vadd.f32 %v755, %v844
    %v906 = vadd.f32 %v756, %v848
    %v907 = vadd.f32 %v757, %v852
    %v908 = vadd.f32 %v758, %v856
    %v909 = vadd.f32 %v759, %v844
    %v910 = vadd.f32 %v760, %v848
    %v911 = vadd.f32 %v761, %v852
    %v912 = vadd.f32 %v762, %v856
    %v913 = vadd.f32 %v763, %v844
    %v914 = vadd.f32 %v764, %v848
    %v915 = vadd.f32 %v765, %v852
    %v916 = vadd.f32 %v766, %v856
    %v917 = vadd.f32 %v767, %v844
    %v918 = vadd.f32 %v768, %v848
    %v919 = vadd.f32 %v769, %v852
    %v920 = vadd.f32 %v770, %v856
    %v921 = vadd.f32 %v771, %v844
    %v922 = vadd.f32 %v772, %v848
    %v923 = vadd.f32 %v773, %v852
    %v924 = vadd.f32 %v774, %v856
    %v925 = vadd.f32 %v775, %v844
    %v926 = vadd.f32 %v776, %v848
    %v927 = vadd.f32 %v777, %v852
    %v928 = vadd.f32 %v778, %v856
    %v929 = vadd.f32 %v779, %v844
    %v930 = vadd.f32 %v780, %v848
    %v931 = vadd.f32 %v781, %v852
    %v932 = vadd.f32 %v782, %v856
    %v933 = vadd.f32 %v783, %v844
    %v934 = vadd.f32 %v784, %v848
    %v935 = vadd.f32 %v785, %v852
    %v936 = vadd.f32 %v786, %v856
    %v937 = vadd.f32 %v787, %v844
    %v938 = vadd.f32 %v788, %v848
    %v939 = vadd.f32 %v789, %v852
    %v940 = vadd.f32 %v790, %v856
    %v941 = vadd.f32 %v791, %v844
    %v942 = vadd.f32 %v792, %v848
    %v943 = vadd.f32 %v793, %v852
    %v944 = vadd.f32 %v794, %v856
    %v945 = vadd.f32 %v795, %v844
    %v946 = vadd.f32 %v796, %v848
    %v947 = vadd.f32 %v797, %v852
    %v948 = vadd.f32 %v798, %v856
    %v949 = vadd.f32 %v799, %v844
    %v950 = vadd.f32 %v800, %v848
    %v951 = vadd.f32 %v801, %v852
    %v952 = vadd.f32 %v802, %v856
    %v953 = vadd.f32 %v803, %v844
    %v954 = vadd.f32 %v804, %v848
    %v955 = vadd.f32 %v805, %v852
    %v956 = vadd.f32 %v806, %v856
    %v957 = vadd.f32 %v807, %v844
    %v958 = vadd.f32 %v808, %v848
    %v959 = vadd.f32 %v809, %v852
    %v960 = vadd.f32 %v810, %v856
    %v961 = vadd.f32 %v811, %v844
    %v962 = vadd.f32 %v812, %v848
    %v963 = vadd.f32 %v813, %v852
    %v964 = vadd.f32 %v814, %v856
    %v965 = vadd.f32 %v815, %v844
    %v966 = vadd.f32 %v816, %v848
    %v967 = vadd.f32 %v817, %v852
    %v968 = vadd.f32 %v818, %v856
    %v969 = vadd.f32 %v819, %v844
    %v970 = vadd.f32 %v820, %v848
    %v971 = vadd.f32 %v821, %v852
    %v972 = vadd.f32 %v822, %v856
    %v973 = vadd.f32 %v823, %v844
    %v974 = vadd.f32 %v824, %v848
    %v975 = vadd.f32 %v825, %v852
    %v976 = vadd.f32 %v826, %v856
    %v977 = vadd.f32 %v827, %v844
    %v978 = vadd.f32 %v828, %v848
    %v979 = vadd.f32 %v829, %v852
    %v980 = vadd.f32 %v830, %v856
    %v981 = vadd.f32 %v831, %v844
    %v982 = vadd.f32 %v832, %v848
    %v983 = vadd.f32 %v833, %v852
    %v984 = vadd.f32 %v834, %v856
    %v985 = vadd.f32 %v835, %v844
    %v986 = vadd.f32 %v836, %v848
    %v987 = vadd.f32 %v837, %v852
    %v988 = vadd.f32 %v838, %v856
    %v989 = vmax.f32 %v861, 0.0
    %v990 = vmax.f32 %v862, 0.0
    %v991 = vmax.f32 %v863, 0.0
    %v992 = vmax.f32 %v864, 0.0
    %v993 = vmax.f32 %v865, 0.0
    %v994 = vmax.f32 %v866, 0.0
    %v995 = vmax.f32 %v867, 0.0
    %v996 = vmax.f32 %v868, 0.0
    %v997 = vmax.f32 %v869, 0.0
    %v998 = vmax.f32 %v870, 0.0
    %v999 = vmax.f32 %v871, 0.0
    %v1000 = vmax.f32 %v872, 0.0
    %v1001 = vmax.f32 %v873, 0.0
    %v1002 = vmax.f32 %v874, 0.0
    %v1003 = vmax.f32 %v875, 0.0
    %v1004 = vmax.f32 %v876, 0.0
    %v1005 = vmax.f32 %v877, 0.0
    %v1006 = vmax.f32 %v878, 0.0
    %v1007 = vmax.f32 %v879, 0.0
    %v1008 = vmax.f32 %v880, 0.0
    %v1009 = vmax.f32 %v881, 0.0
    %v1010 = vmax.f32 %v882, 0.0
    %v1011 = vmax.f32 %v883, 0.0
    %v1012 = vmax.f32 %v884, 0.0
    %v1013 = vmax.f32 %v885, 0.0
    %v1014 = vmax.f32 %v886, 0.0
    %v1015 = vmax.f32 %v887, 0.0
    %v1016 = vmax.f32 %v888, 0.0
    %v1017 = vmax.f32 %v889, 0.0
    %v1018 = vmax.f32 %v890, 0.0
    %v1019 = vmax.f32 %v891, 0.0
    %v1020 = vmax.f32 %v892, 0.0
    %v1021 = vmax.f32 %v893, 0.0
    %v1022 = vmax.f32 %v894, 0.0
    %v1023 = vmax.f32 %v895, 0.0
    %v1024 = vmax.f32 %v896, 0.0
    %v1025 = vmax.f32 %v897, 0.0
    %v1026 = vmax.f32 %v898, 0.0
    %v1027 = vmax.f32 %v899, 0.0
    %v1028 = vmax.f32 %v900, 0.0
    %v1029 = vmax.f32 %v901, 0.0
    %v1030 = vmax.f32 %v902, 0.0
    %v1031 = vmax.f32 %v903, 0.0
    %v1032 = vmax.f32 %v904, 0.0
    %v1033 = vmax.f32 %v905, 0.0
    %v1034 = vmax.f32 %v906, 0.0
    %v1035 = vmax.f32 %v907, 0.0
    %v1036 = vmax.f32 %v908, 0.0
    %v1037 = vmax.f32 %v909, 0.0
    %v1038 = vmax.f32 %v910, 0.0
    %v1039 = vmax.f32 %v911, 0.0
    %v1040 = vmax.f32 %v912, 0.0
    %v1041 = vmax.f32 %v913, 0.0
    %v1042 = vmax.f32 %v914, 0.0
    %v1043 = vmax.f32 %v915, 0.0
    %v1044 = vmax.f32 %v916, 0.0
    %v1045 = vmax.f32 %v917, 0.0
    %v1046 = vmax.f32 %v918, 0.0
    %v1047 = vmax.f32 %v919, 0.0
    %v1048 = vmax.f32 %v920, 0.0
    %v1049 = vmax.f32 %v921, 0.0
    %v1050 = vmax.f32 %v922, 0.0
    %v1051 = vmax.f32 %v923, 0.0
    %v1052 = vmax.f32 %v924, 0.0
    %v1053 = vmax.f32 %v925, 0.0
    %v1054 = vmax.f32 %v926, 0.0
    %v1055 = vmax.f32 %v927, 0.0
    %v1056 = vmax.f32 %v928, 0.0
    %v1057 = vmax.f32 %v929, 0.0
    %v1058 = vmax.f32 %v930, 0.0
    %v1059 = vmax.f32 %v931, 0.0
    %v1060 = vmax.f32 %v932, 0.0
    %v1061 = vmax.f32 %v933, 0.0
    %v1062 = vmax.f32 %v934, 0.0
    %v1063 = vmax.f32 %v935, 0.0
    %v1064 = vmax.f32 %v936, 0.0
    %v1065 = vmax.f32 %v937, 0.0
    %v1066 = vmax.f32 %v938, 0.0
    %v1067 = vmax.f32 %v939, 0.0
    %v1068 = vmax.f32 %v940, 0.0
    %v1069 = vmax.f32 %v941, 0.0
    %v1070 = vmax.f32 %v942, 0.0
    %v1071 = vmax.f32 %v943, 0.0
    %v1072 = vmax.f32 %v944, 0.0
    %v1073 = vmax.f32 %v945, 0.0
    %v1074 = vmax.f32 %v946, 0.0
    %v1075 = vmax.f32 %v947, 0.0
    %v1076 = vmax.f32 %v948, 0.0
    %v1077 = vmax.f32 %v949, 0.0
    %v1078 = vmax.f32 %v950, 0.0
    %v1079 = vmax.f32 %v951, 0.0
    %v1080 = vmax.f32 %v952, 0.0
    %v1081 = vmax.f32 %v953, 0.0
    %v1082 = vmax.f32 %v954, 0.0
    %v1083 = vmax.f32 %v955, 0.0
    %v1084 = vmax.f32 %v956, 0.0
    %v1085 = vmax.f32 %v957, 0.0
    %v1086 = vmax.f32 %v958, 0.0
    %v1087 = vmax.f32 %v959, 0.0
    %v1088 = vmax.f32 %v960, 0.0
    %v1089 = vmax.f32 %v961, 0.0
    %v1090 = vmax.f32 %v962, 0.0
    %v1091 = vmax.f32 %v963, 0.0
    %v1092 = vmax.f32 %v964, 0.0
    %v1093 = vmax.f32 %v965, 0.0
    %v1094 = vmax.f32 %v966, 0.0
    %v1095 = vmax.f32 %v967, 0.0
    %v1096 = vmax.f32 %v968, 0.0
    %v1097 = vmax.f32 %v969, 0.0
    %v1098 = vmax.f32 %v970, 0.0
    %v1099 = vmax.f32 %v971, 0.0
    %v1100 = vmax.f32 %v972, 0.0
    %v1101 = vmax.f32 %v973, 0.0
    %v1102 = vmax.f32 %v974, 0.0
    %v1103 = vmax.f32 %v975, 0.0
    %v1104 = vmax.f32 %v976, 0.0
    %v1105 = vmax.f32 %v977, 0.0
    %v1106 = vmax.f32 %v978, 0.0
    %v1107 = vmax.f32 %v979, 0.0
    %v1108 = vmax.f32 %v980, 0.0
    %v1109 = vmax.f32 %v981, 0.0
    %v1110 = vmax.f32 %v982, 0.0
    %v1111 = vmax.f32 %v983, 0.0
    %v1112 = vmax.f32 %v984, 0.0
    %v1113 = vmax.f32 %v985, 0.0
    %v1114 = vmax.f32 %v986, 0.0
    %v1115 = vmax.f32 %v987, 0.0
    %v1116 = vmax.f32 %v988, 0.0
    %v1117 = vpack.c.bf16 %v993, %v989
    %v1118 = vpack.c.bf16 %v994, %v990
    %v1119 = vpack.c.bf16 %v995, %v991
    %v1120 = vpack.c.bf16 %v996, %v992
    %v1121 = vpack.c.bf16 %v1001, %v997
    %v1122 = vpack.c.bf16 %v1002, %v998
    %v1123 = vpack.c.bf16 %v1003, %v999
    %v1124 = vpack.c.bf16 %v1004, %v1000
    %v1125 = vpack.c.bf16 %v1009, %v1005
    %v1126 = vpack.c.bf16 %v1010, %v1006
    %v1127 = vpack.c.bf16 %v1011, %v1007
    %v1128 = vpack.c.bf16 %v1012, %v1008
    %v1129 = vpack.c.bf16 %v1017, %v1013
    %v1130 = vpack.c.bf16 %v1018, %v1014
    %v1131 = vpack.c.bf16 %v1019, %v1015
    %v1132 = vpack.c.bf16 %v1020, %v1016
    %v1133 = vpack.c.bf16 %v1025, %v1021
    %v1134 = vpack.c.bf16 %v1026, %v1022
    %v1135 = vpack.c.bf16 %v1027, %v1023
    %v1136 = vpack.c.bf16 %v1028, %v1024
    %v1137 = vpack.c.bf16 %v1033, %v1029
    %v1138 = vpack.c.bf16 %v1034, %v1030
    %v1139 = vpack.c.bf16 %v1035, %v1031
    %v1140 = vpack.c.bf16 %v1036, %v1032
    %v1141 = vpack.c.bf16 %v1041, %v1037
    %v1142 = vpack.c.bf16 %v1042, %v1038
    %v1143 = vpack.c.bf16 %v1043, %v1039
    %v1144 = vpack.c.bf16 %v1044, %v1040
    %v1145 = vpack.c.bf16 %v1049, %v1045
    %v1146 = vpack.c.bf16 %v1050, %v1046
    %v1147 = vpack.c.bf16 %v1051, %v1047
    %v1148 = vpack.c.bf16 %v1052, %v1048
    %v1149 = vpack.c.bf16 %v1057, %v1053
    %v1150 = vpack.c.bf16 %v1058, %v1054
    %v1151 = vpack.c.bf16 %v1059, %v1055
    %v1152 = vpack.c.bf16 %v1060, %v1056
    %v1153 = vpack.c.bf16 %v1065, %v1061
    %v1154 = vpack.c.bf16 %v1066, %v1062
    %v1155 = vpack.c.bf16 %v1067, %v1063
    %v1156 = vpack.c.bf16 %v1068, %v1064
    %v1157 = vpack.c.bf16 %v1073, %v1069
    %v1158 = vpack.c.bf16 %v1074, %v1070
    %v1159 = vpack.c.bf16 %v1075, %v1071
    %v1160 = vpack.c.bf16 %v1076, %v1072
    %v1161 = vpack.c.bf16 %v1081, %v1077
    %v1162 = vpack.c.bf16 %v1082, %v1078
    %v1163 = vpack.c.bf16 %v1083, %v1079
    %v1164 = vpack.c.bf16 %v1084, %v1080
    %v1165 = vpack.c.bf16 %v1089, %v1085
    %v1166 = vpack.c.bf16 %v1090, %v1086
    %v1167 = vpack.c.bf16 %v1091, %v1087
    %v1168 = vpack.c.bf16 %v1092, %v1088
    %v1169 = vpack.c.bf16 %v1097, %v1093
    %v1170 = vpack.c.bf16 %v1098, %v1094
    %v1171 = vpack.c.bf16 %v1099, %v1095
    %v1172 = vpack.c.bf16 %v1100, %v1096
    %v1173 = vpack.c.bf16 %v1105, %v1101
    %v1174 = vpack.c.bf16 %v1106, %v1102
    %v1175 = vpack.c.bf16 %v1107, %v1103
    %v1176 = vpack.c.bf16 %v1108, %v1104
    %v1177 = vpack.c.bf16 %v1113, %v1109
    %v1178 = vpack.c.bf16 %v1114, %v1110
    %v1179 = vpack.c.bf16 %v1115, %v1111
    %v1180 = vpack.c.bf16 %v1116, %v1112
    %v1181 = vld [vmem:[#allocation2] sm:$0xff]
    %v1182 = vld [vmem:[#allocation2 + $0x8] sm:$0xff]
    %v1183 = vld [vmem:[#allocation2 + $0x10] sm:$0xff]
    %v1184 = vld [vmem:[#allocation2 + $0x18] sm:$0xff]
    %v1185 = vld [vmem:[#allocation2 + $0x20] sm:$0xff]
    %v1186 = vld [vmem:[#allocation2 + $0x28] sm:$0xff]
    %v1187 = vld [vmem:[#allocation2 + $0x30] sm:$0xff]
    %v1188 = vld [vmem:[#allocation2 + $0x38] sm:$0xff]
    %v1189 = vld [vmem:[#allocation2 + $0x40] sm:$0xff]
    %v1190 = vld [vmem:[#allocation2 + $0x48] sm:$0xff]
    %v1191 = vld [vmem:[#allocation2 + $0x50] sm:$0xff]
    %v1192 = vld [vmem:[#allocation2 + $0x58] sm:$0xff]
    %v1193 = vld [vmem:[#allocation2 + $0x60] sm:$0xff]
    %v1194 = vld [vmem:[#allocation2 + $0x68] sm:$0xff]
    %v1195 = vld [vmem:[#allocation2 + $0x70] sm:$0xff]
    %v1196 = vld [vmem:[#allocation2 + $0x78] sm:$0xff]
    %v1197 = vld [vmem:[#allocation2 + $0x80] sm:$0xff]
    %v1198 = vld [vmem:[#allocation2 + $0x88] sm:$0xff]
    %v1199 = vld [vmem:[#allocation2 + $0x90] sm:$0xff]
    %v1200 = vld [vmem:[#allocation2 + $0x98] sm:$0xff]
    %v1201 = vld [vmem:[#allocation2 + $0xa0] sm:$0xff]
    %v1202 = vld [vmem:[#allocation2 + $0xa8] sm:$0xff]
    %v1203 = vld [vmem:[#allocation2 + $0xb0] sm:$0xff]
    %v1204 = vld [vmem:[#allocation2 + $0xb8] sm:$0xff]
    %v1205 = vld [vmem:[#allocation2 + $0xc0] sm:$0xff]
    %v1206 = vld [vmem:[#allocation2 + $0xc8] sm:$0xff]
    %v1207 = vld [vmem:[#allocation2 + $0xd0] sm:$0xff]
    %v1208 = vld [vmem:[#allocation2 + $0xd8] sm:$0xff]
    %v1209 = vld [vmem:[#allocation2 + $0xe0] sm:$0xff]
    %v1210 = vld [vmem:[#allocation2 + $0xe8] sm:$0xff]
    %v1211 = vld [vmem:[#allocation2 + $0xf0] sm:$0xff]
    %v1212 = vld [vmem:[#allocation2 + $0xf8] sm:$0xff]
    %v1213 = vld [vmem:[#allocation2 + $0x100] sm:$0xff]
    %v1214 = vld [vmem:[#allocation2 + $0x108] sm:$0xff]
    %v1215 = vld [vmem:[#allocation2 + $0x110] sm:$0xff]
    %v1216 = vld [vmem:[#allocation2 + $0x118] sm:$0xff]
    %v1217 = vld [vmem:[#allocation2 + $0x120] sm:$0xff]
    %v1218 = vld [vmem:[#allocation2 + $0x128] sm:$0xff]
    %v1219 = vld [vmem:[#allocation2 + $0x130] sm:$0xff]
    %v1220 = vld [vmem:[#allocation2 + $0x138] sm:$0xff]
    %v1221 = vld [vmem:[#allocation2 + $0x140] sm:$0xff]
    %v1222 = vld [vmem:[#allocation2 + $0x148] sm:$0xff]
    %v1223 = vld [vmem:[#allocation2 + $0x150] sm:$0xff]
    %v1224 = vld [vmem:[#allocation2 + $0x158] sm:$0xff]
    %v1225 = vld [vmem:[#allocation2 + $0x160] sm:$0xff]
    %v1226 = vld [vmem:[#allocation2 + $0x168] sm:$0xff]
    %v1227 = vld [vmem:[#allocation2 + $0x170] sm:$0xff]
    %v1228 = vld [vmem:[#allocation2 + $0x178] sm:$0xff]
    %v1229 = vld [vmem:[#allocation2 + $0x180] sm:$0xff]
    %v1230 = vld [vmem:[#allocation2 + $0x188] sm:$0xff]
    %v1231 = vld [vmem:[#allocation2 + $0x190] sm:$0xff]
    %v1232 = vld [vmem:[#allocation2 + $0x198] sm:$0xff]
    %v1233 = vld [vmem:[#allocation2 + $0x1a0] sm:$0xff]
    %v1234 = vld [vmem:[#allocation2 + $0x1a8] sm:$0xff]
    %v1235 = vld [vmem:[#allocation2 + $0x1b0] sm:$0xff]
    %v1236 = vld [vmem:[#allocation2 + $0x1b8] sm:$0xff]
    %v1237 = vld [vmem:[#allocation2 + $0x1c0] sm:$0xff]
    %v1238 = vld [vmem:[#allocation2 + $0x1c8] sm:$0xff]
    %v1239 = vld [vmem:[#allocation2 + $0x1d0] sm:$0xff]
    %v1240 = vld [vmem:[#allocation2 + $0x1d8] sm:$0xff]
    %v1241 = vld [vmem:[#allocation2 + $0x1e0] sm:$0xff]
    %v1242 = vld [vmem:[#allocation2 + $0x1e8] sm:$0xff]
    %v1243 = vld [vmem:[#allocation2 + $0x1f0] sm:$0xff]
    %v1244 = vld [vmem:[#allocation2 + $0x1f8] sm:$0xff]
    %v1245 = vld [vmem:[#allocation2 + $0x200] sm:$0xff]
    %v1246 = vld [vmem:[#allocation2 + $0x208] sm:$0xff]
    %v1247 = vld [vmem:[#allocation2 + $0x210] sm:$0xff]
    %v1248 = vld [vmem:[#allocation2 + $0x218] sm:$0xff]
    %v1249 = vld [vmem:[#allocation2 + $0x220] sm:$0xff]
    %v1250 = vld [vmem:[#allocation2 + $0x228] sm:$0xff]
    %v1251 = vld [vmem:[#allocation2 + $0x230] sm:$0xff]
    %v1252 = vld [vmem:[#allocation2 + $0x238] sm:$0xff]
    %v1253 = vld [vmem:[#allocation2 + $0x240] sm:$0xff]
    %v1254 = vld [vmem:[#allocation2 + $0x248] sm:$0xff]
    %v1255 = vld [vmem:[#allocation2 + $0x250] sm:$0xff]
    %v1256 = vld [vmem:[#allocation2 + $0x258] sm:$0xff]
    %v1257 = vld [vmem:[#allocation2 + $0x260] sm:$0xff]
    %v1258 = vld [vmem:[#allocation2 + $0x268] sm:$0xff]
    %v1259 = vld [vmem:[#allocation2 + $0x270] sm:$0xff]
    %v1260 = vld [vmem:[#allocation2 + $0x278] sm:$0xff]
    %v1261 = vld [vmem:[#allocation2 + $0x280] sm:$0xff]
    %v1262 = vld [vmem:[#allocation2 + $0x288] sm:$0xff]
    %v1263 = vld [vmem:[#allocation2 + $0x290] sm:$0xff]
    %v1264 = vld [vmem:[#allocation2 + $0x298] sm:$0xff]
    %v1265 = vld [vmem:[#allocation2 + $0x2a0] sm:$0xff]
    %v1266 = vld [vmem:[#allocation2 + $0x2a8] sm:$0xff]
    %v1267 = vld [vmem:[#allocation2 + $0x2b0] sm:$0xff]
    %v1268 = vld [vmem:[#allocation2 + $0x2b8] sm:$0xff]
    %v1269 = vld [vmem:[#allocation2 + $0x2c0] sm:$0xff]
    %v1270 = vld [vmem:[#allocation2 + $0x2c8] sm:$0xff]
    %v1271 = vld [vmem:[#allocation2 + $0x2d0] sm:$0xff]
    %v1272 = vld [vmem:[#allocation2 + $0x2d8] sm:$0xff]
    %v1273 = vld [vmem:[#allocation2 + $0x2e0] sm:$0xff]
    %v1274 = vld [vmem:[#allocation2 + $0x2e8] sm:$0xff]
    %v1275 = vld [vmem:[#allocation2 + $0x2f0] sm:$0xff]
    %v1276 = vld [vmem:[#allocation2 + $0x2f8] sm:$0xff]
    %v1277 = vld [vmem:[#allocation2 + $0x300] sm:$0xff]
    %v1278 = vld [vmem:[#allocation2 + $0x308] sm:$0xff]
    %v1279 = vld [vmem:[#allocation2 + $0x310] sm:$0xff]
    %v1280 = vld [vmem:[#allocation2 + $0x318] sm:$0xff]
    %v1281 = vld [vmem:[#allocation2 + $0x320] sm:$0xff]
    %v1282 = vld [vmem:[#allocation2 + $0x328] sm:$0xff]
    %v1283 = vld [vmem:[#allocation2 + $0x330] sm:$0xff]
    %v1284 = vld [vmem:[#allocation2 + $0x338] sm:$0xff]
    %v1285 = vld [vmem:[#allocation2 + $0x340] sm:$0xff]
    %v1286 = vld [vmem:[#allocation2 + $0x348] sm:$0xff]
    %v1287 = vld [vmem:[#allocation2 + $0x350] sm:$0xff]
    %v1288 = vld [vmem:[#allocation2 + $0x358] sm:$0xff]
    %v1289 = vld [vmem:[#allocation2 + $0x360] sm:$0xff]
    %v1290 = vld [vmem:[#allocation2 + $0x368] sm:$0xff]
    %v1291 = vld [vmem:[#allocation2 + $0x370] sm:$0xff]
    %v1292 = vld [vmem:[#allocation2 + $0x378] sm:$0xff]
    %v1293 = vld [vmem:[#allocation2 + $0x380] sm:$0xff]
    %v1294 = vld [vmem:[#allocation2 + $0x388] sm:$0xff]
    %v1295 = vld [vmem:[#allocation2 + $0x390] sm:$0xff]
    %v1296 = vld [vmem:[#allocation2 + $0x398] sm:$0xff]
    %v1297 = vld [vmem:[#allocation2 + $0x3a0] sm:$0xff]
    %v1298 = vld [vmem:[#allocation2 + $0x3a8] sm:$0xff]
    %v1299 = vld [vmem:[#allocation2 + $0x3b0] sm:$0xff]
    %v1300 = vld [vmem:[#allocation2 + $0x3b8] sm:$0xff]
    %v1301 = vld [vmem:[#allocation2 + $0x3c0] sm:$0xff]
    %v1302 = vld [vmem:[#allocation2 + $0x3c8] sm:$0xff]
    %v1303 = vld [vmem:[#allocation2 + $0x3d0] sm:$0xff]
    %v1304 = vld [vmem:[#allocation2 + $0x3d8] sm:$0xff]
    %v1305 = vld [vmem:[#allocation2 + $0x3e0] sm:$0xff]
    %v1306 = vld [vmem:[#allocation2 + $0x3e8] sm:$0xff]
    %v1307 = vld [vmem:[#allocation2 + $0x3f0] sm:$0xff]
    %v1308 = vld [vmem:[#allocation2 + $0x3f8] sm:$0xff]
    %v1309 = vld [vmem:[%s4] sm:$0xf]
    %v1311 = vlaneseq
    %v1312 = vshrl.u32 %v1311, 7
    %v1313 = vsub.s32 0, %v1312
    %v1314 = vrot.slane %v1309, %v1313
    %v1315 = vlaneseq
    %v1316 = vshrl.u32 %v1315, 7
    %v1317 = vsub.s32 1, %v1316
    %v1318 = vrot.slane %v1309, %v1317
    %v1319 = vlaneseq
    %v1320 = vshrl.u32 %v1319, 7
    %v1321 = vsub.s32 2, %v1320
    %v1322 = vrot.slane %v1309, %v1321
    %v1323 = vlaneseq
    %v1324 = vshrl.u32 %v1323, 7
    %v1325 = vsub.s32 3, %v1324
    %v1326 = vrot.slane %v1309, %v1325
    %v1459 = vunpack.c.l.b16 %v1181
    %v1460 = vunpack.c.h.b16 %v1181
    %v1461 = vunpack.c.l.b16 %v1182
    %v1462 = vunpack.c.h.b16 %v1182
    %v1463 = vunpack.c.l.b16 %v1183
    %v1464 = vunpack.c.h.b16 %v1183
    %v1465 = vunpack.c.l.b16 %v1184
    %v1466 = vunpack.c.h.b16 %v1184
    %v1467 = vunpack.c.l.b16 %v1185
    %v1468 = vunpack.c.h.b16 %v1185
    %v1469 = vunpack.c.l.b16 %v1186
    %v1470 = vunpack.c.h.b16 %v1186
    %v1471 = vunpack.c.l.b16 %v1187
    %v1472 = vunpack.c.h.b16 %v1187
    %v1473 = vunpack.c.l.b16 %v1188
    %v1474 = vunpack.c.h.b16 %v1188
    %v1475 = vunpack.c.l.b16 %v1189
    %v1476 = vunpack.c.h.b16 %v1189
    %v1477 = vunpack.c.l.b16 %v1190
    %v1478 = vunpack.c.h.b16 %v1190
    %v1479 = vunpack.c.l.b16 %v1191
    %v1480 = vunpack.c.h.b16 %v1191
    %v1481 = vunpack.c.l.b16 %v1192
    %v1482 = vunpack.c.h.b16 %v1192
    %v1483 = vunpack.c.l.b16 %v1193
    %v1484 = vunpack.c.h.b16 %v1193
    %v1485 = vunpack.c.l.b16 %v1194
    %v1486 = vunpack.c.h.b16 %v1194
    %v1487 = vunpack.c.l.b16 %v1195
    %v1488 = vunpack.c.h.b16 %v1195
    %v1489 = vunpack.c.l.b16 %v1196
    %v1490 = vunpack.c.h.b16 %v1196
    %v1491 = vunpack.c.l.b16 %v1197
    %v1492 = vunpack.c.h.b16 %v1197
    %v1493 = vunpack.c.l.b16 %v1198
    %v1494 = vunpack.c.h.b16 %v1198
    %v1495 = vunpack.c.l.b16 %v1199
    %v1496 = vunpack.c.h.b16 %v1199
    %v1497 = vunpack.c.l.b16 %v1200
    %v1498 = vunpack.c.h.b16 %v1200
    %v1499 = vunpack.c.l.b16 %v1201
    %v1500 = vunpack.c.h.b16 %v1201
    %v1501 = vunpack.c.l.b16 %v1202
    %v1502 = vunpack.c.h.b16 %v1202
    %v1503 = vunpack.c.l.b16 %v1203
    %v1504 = vunpack.c.h.b16 %v1203
    %v1505 = vunpack.c.l.b16 %v1204
    %v1506 = vunpack.c.h.b16 %v1204
    %v1507 = vunpack.c.l.b16 %v1205
    %v1508 = vunpack.c.h.b16 %v1205
    %v1509 = vunpack.c.l.b16 %v1206
    %v1510 = vunpack.c.h.b16 %v1206
    %v1511 = vunpack.c.l.b16 %v1207
    %v1512 = vunpack.c.h.b16 %v1207
    %v1513 = vunpack.c.l.b16 %v1208
    %v1514 = vunpack.c.h.b16 %v1208
    %v1515 = vunpack.c.l.b16 %v1209
    %v1516 = vunpack.c.h.b16 %v1209
    %v1517 = vunpack.c.l.b16 %v1210
    %v1518 = vunpack.c.h.b16 %v1210
    %v1519 = vunpack.c.l.b16 %v1211
    %v1520 = vunpack.c.h.b16 %v1211
    %v1521 = vunpack.c.l.b16 %v1212
    %v1522 = vunpack.c.h.b16 %v1212
    %v1523 = vunpack.c.l.b16 %v1213
    %v1524 = vunpack.c.h.b16 %v1213
    %v1525 = vunpack.c.l.b16 %v1214
    %v1526 = vunpack.c.h.b16 %v1214
    %v1527 = vunpack.c.l.b16 %v1215
    %v1528 = vunpack.c.h.b16 %v1215
    %v1529 = vunpack.c.l.b16 %v1216
    %v1530 = vunpack.c.h.b16 %v1216
    %v1531 = vunpack.c.l.b16 %v1217
    %v1532 = vunpack.c.h.b16 %v1217
    %v1533 = vunpack.c.l.b16 %v1218
    %v1534 = vunpack.c.h.b16 %v1218
    %v1535 = vunpack.c.l.b16 %v1219
    %v1536 = vunpack.c.h.b16 %v1219
    %v1537 = vunpack.c.l.b16 %v1220
    %v1538 = vunpack.c.h.b16 %v1220
    %v1539 = vunpack.c.l.b16 %v1221
    %v1540 = vunpack.c.h.b16 %v1221
    %v1541 = vunpack.c.l.b16 %v1222
    %v1542 = vunpack.c.h.b16 %v1222
    %v1543 = vunpack.c.l.b16 %v1223
    %v1544 = vunpack.c.h.b16 %v1223
    %v1545 = vunpack.c.l.b16 %v1224
    %v1546 = vunpack.c.h.b16 %v1224
    %v1547 = vunpack.c.l.b16 %v1225
    %v1548 = vunpack.c.h.b16 %v1225
    %v1549 = vunpack.c.l.b16 %v1226
    %v1550 = vunpack.c.h.b16 %v1226
    %v1551 = vunpack.c.l.b16 %v1227
    %v1552 = vunpack.c.h.b16 %v1227
    %v1553 = vunpack.c.l.b16 %v1228
    %v1554 = vunpack.c.h.b16 %v1228
    %v1555 = vunpack.c.l.b16 %v1229
    %v1556 = vunpack.c.h.b16 %v1229
    %v1557 = vunpack.c.l.b16 %v1230
    %v1558 = vunpack.c.h.b16 %v1230
    %v1559 = vunpack.c.l.b16 %v1231
    %v1560 = vunpack.c.h.b16 %v1231
    %v1561 = vunpack.c.l.b16 %v1232
    %v1562 = vunpack.c.h.b16 %v1232
    %v1563 = vunpack.c.l.b16 %v1233
    %v1564 = vunpack.c.h.b16 %v1233
    %v1565 = vunpack.c.l.b16 %v1234
    %v1566 = vunpack.c.h.b16 %v1234
    %v1567 = vunpack.c.l.b16 %v1235
    %v1568 = vunpack.c.h.b16 %v1235
    %v1569 = vunpack.c.l.b16 %v1236
    %v1570 = vunpack.c.h.b16 %v1236
    %v1571 = vunpack.c.l.b16 %v1237
    %v1572 = vunpack.c.h.b16 %v1237
    %v1573 = vunpack.c.l.b16 %v1238
    %v1574 = vunpack.c.h.b16 %v1238
    %v1575 = vunpack.c.l.b16 %v1239
    %v1576 = vunpack.c.h.b16 %v1239
    %v1577 = vunpack.c.l.b16 %v1240
    %v1578 = vunpack.c.h.b16 %v1240
    %v1579 = vunpack.c.l.b16 %v1241
    %v1580 = vunpack.c.h.b16 %v1241
    %v1581 = vunpack.c.l.b16 %v1242
    %v1582 = vunpack.c.h.b16 %v1242
    %v1583 = vunpack.c.l.b16 %v1243
    %v1584 = vunpack.c.h.b16 %v1243
    %v1585 = vunpack.c.l.b16 %v1244
    %v1586 = vunpack.c.h.b16 %v1244
    %v1587 = vunpack.c.l.b16 %v1245
    %v1588 = vunpack.c.h.b16 %v1245
    %v1589 = vunpack.c.l.b16 %v1246
    %v1590 = vunpack.c.h.b16 %v1246
    %v1591 = vunpack.c.l.b16 %v1247
    %v1592 = vunpack.c.h.b16 %v1247
    %v1593 = vunpack.c.l.b16 %v1248
    %v1594 = vunpack.c.h.b16 %v1248
    %v1595 = vunpack.c.l.b16 %v1249
    %v1596 = vunpack.c.h.b16 %v1249
    %v1597 = vunpack.c.l.b16 %v1250
    %v1598 = vunpack.c.h.b16 %v1250
    %v1599 = vunpack.c.l.b16 %v1251
    %v1600 = vunpack.c.h.b16 %v1251
    %v1601 = vunpack.c.l.b16 %v1252
    %v1602 = vunpack.c.h.b16 %v1252
    %v1603 = vunpack.c.l.b16 %v1253
    %v1604 = vunpack.c.h.b16 %v1253
    %v1605 = vunpack.c.l.b16 %v1254
    %v1606 = vunpack.c.h.b16 %v1254
    %v1607 = vunpack.c.l.b16 %v1255
    %v1608 = vunpack.c.h.b16 %v1255
    %v1609 = vunpack.c.l.b16 %v1256
    %v1610 = vunpack.c.h.b16 %v1256
    %v1611 = vunpack.c.l.b16 %v1257
    %v1612 = vunpack.c.h.b16 %v1257
    %v1613 = vunpack.c.l.b16 %v1258
    %v1614 = vunpack.c.h.b16 %v1258
    %v1615 = vunpack.c.l.b16 %v1259
    %v1616 = vunpack.c.h.b16 %v1259
    %v1617 = vunpack.c.l.b16 %v1260
    %v1618 = vunpack.c.h.b16 %v1260
    %v1619 = vunpack.c.l.b16 %v1261
    %v1620 = vunpack.c.h.b16 %v1261
    %v1621 = vunpack.c.l.b16 %v1262
    %v1622 = vunpack.c.h.b16 %v1262
    %v1623 = vunpack.c.l.b16 %v1263
    %v1624 = vunpack.c.h.b16 %v1263
    %v1625 = vunpack.c.l.b16 %v1264
    %v1626 = vunpack.c.h.b16 %v1264
    %v1627 = vunpack.c.l.b16 %v1265
    %v1628 = vunpack.c.h.b16 %v1265
    %v1629 = vunpack.c.l.b16 %v1266
    %v1630 = vunpack.c.h.b16 %v1266
    %v1631 = vunpack.c.l.b16 %v1267
    %v1632 = vunpack.c.h.b16 %v1267
    %v1633 = vunpack.c.l.b16 %v1268
    %v1634 = vunpack.c.h.b16 %v1268
    %v1635 = vunpack.c.l.b16 %v1269
    %v1636 = vunpack.c.h.b16 %v1269
    %v1637 = vunpack.c.l.b16 %v1270
    %v1638 = vunpack.c.h.b16 %v1270
    %v1639 = vunpack.c.l.b16 %v1271
    %v1640 = vunpack.c.h.b16 %v1271
    %v1641 = vunpack.c.l.b16 %v1272
    %v1642 = vunpack.c.h.b16 %v1272
    %v1643 = vunpack.c.l.b16 %v1273
    %v1644 = vunpack.c.h.b16 %v1273
    %v1645 = vunpack.c.l.b16 %v1274
    %v1646 = vunpack.c.h.b16 %v1274
    %v1647 = vunpack.c.l.b16 %v1275
    %v1648 = vunpack.c.h.b16 %v1275
    %v1649 = vunpack.c.l.b16 %v1276
    %v1650 = vunpack.c.h.b16 %v1276
    %v1651 = vunpack.c.l.b16 %v1277
    %v1652 = vunpack.c.h.b16 %v1277
    %v1653 = vunpack.c.l.b16 %v1278
    %v1654 = vunpack.c.h.b16 %v1278
    %v1655 = vunpack.c.l.b16 %v1279
    %v1656 = vunpack.c.h.b16 %v1279
    %v1657 = vunpack.c.l.b16 %v1280
    %v1658 = vunpack.c.h.b16 %v1280
    %v1659 = vunpack.c.l.b16 %v1281
    %v1660 = vunpack.c.h.b16 %v1281
    %v1661 = vunpack.c.l.b16 %v1282
    %v1662 = vunpack.c.h.b16 %v1282
    %v1663 = vunpack.c.l.b16 %v1283
    %v1664 = vunpack.c.h.b16 %v1283
    %v1665 = vunpack.c.l.b16 %v1284
    %v1666 = vunpack.c.h.b16 %v1284
    %v1667 = vunpack.c.l.b16 %v1285
    %v1668 = vunpack.c.h.b16 %v1285
    %v1669 = vunpack.c.l.b16 %v1286
    %v1670 = vunpack.c.h.b16 %v1286
    %v1671 = vunpack.c.l.b16 %v1287
    %v1672 = vunpack.c.h.b16 %v1287
    %v1673 = vunpack.c.l.b16 %v1288
    %v1674 = vunpack.c.h.b16 %v1288
    %v1675 = vunpack.c.l.b16 %v1289
    %v1676 = vunpack.c.h.b16 %v1289
    %v1677 = vunpack.c.l.b16 %v1290
    %v1678 = vunpack.c.h.b16 %v1290
    %v1679 = vunpack.c.l.b16 %v1291
    %v1680 = vunpack.c.h.b16 %v1291
    %v1681 = vunpack.c.l.b16 %v1292
    %v1682 = vunpack.c.h.b16 %v1292
    %v1683 = vunpack.c.l.b16 %v1293
    %v1684 = vunpack.c.h.b16 %v1293
    %v1685 = vunpack.c.l.b16 %v1294
    %v1686 = vunpack.c.h.b16 %v1294
    %v1687 = vunpack.c.l.b16 %v1295
    %v1688 = vunpack.c.h.b16 %v1295
    %v1689 = vunpack.c.l.b16 %v1296
    %v1690 = vunpack.c.h.b16 %v1296
    %v1691 = vunpack.c.l.b16 %v1297
    %v1692 = vunpack.c.h.b16 %v1297
    %v1693 = vunpack.c.l.b16 %v1298
    %v1694 = vunpack.c.h.b16 %v1298
    %v1695 = vunpack.c.l.b16 %v1299
    %v1696 = vunpack.c.h.b16 %v1299
    %v1697 = vunpack.c.l.b16 %v1300
    %v1698 = vunpack.c.h.b16 %v1300
    %v1699 = vunpack.c.l.b16 %v1301
    %v1700 = vunpack.c.h.b16 %v1301
    %v1701 = vunpack.c.l.b16 %v1302
    %v1702 = vunpack.c.h.b16 %v1302
    %v1703 = vunpack.c.l.b16 %v1303
    %v1704 = vunpack.c.h.b16 %v1303
    %v1705 = vunpack.c.l.b16 %v1304
    %v1706 = vunpack.c.h.b16 %v1304
    %v1707 = vunpack.c.l.b16 %v1305
    %v1708 = vunpack.c.h.b16 %v1305
    %v1709 = vunpack.c.l.b16 %v1306
    %v1710 = vunpack.c.h.b16 %v1306
    %v1711 = vunpack.c.l.b16 %v1307
    %v1712 = vunpack.c.h.b16 %v1307
    %v1713 = vunpack.c.l.b16 %v1308
    %v1714 = vunpack.c.h.b16 %v1308
    %v1715 = vpack.c.b16 %v1463, %v1459
    %v1716 = vpack.c.b16 %v1464, %v1460
    %v1717 = vpack.c.b16 %v1465, %v1461
    %v1718 = vpack.c.b16 %v1466, %v1462
    %v1719 = vpack.c.b16 %v1471, %v1467
    %v1720 = vpack.c.b16 %v1472, %v1468
    %v1721 = vpack.c.b16 %v1473, %v1469
    %v1722 = vpack.c.b16 %v1474, %v1470
    %v1723 = vpack.c.b16 %v1479, %v1475
    %v1724 = vpack.c.b16 %v1480, %v1476
    %v1725 = vpack.c.b16 %v1481, %v1477
    %v1726 = vpack.c.b16 %v1482, %v1478
    %v1727 = vpack.c.b16 %v1487, %v1483
    %v1728 = vpack.c.b16 %v1488, %v1484
    %v1729 = vpack.c.b16 %v1489, %v1485
    %v1730 = vpack.c.b16 %v1490, %v1486
    %v1731 = vpack.c.b16 %v1495, %v1491
    %v1732 = vpack.c.b16 %v1496, %v1492
    %v1733 = vpack.c.b16 %v1497, %v1493
    %v1734 = vpack.c.b16 %v1498, %v1494
    %v1735 = vpack.c.b16 %v1503, %v1499
    %v1736 = vpack.c.b16 %v1504, %v1500
    %v1737 = vpack.c.b16 %v1505, %v1501
    %v1738 = vpack.c.b16 %v1506, %v1502
    %v1739 = vpack.c.b16 %v1511, %v1507
    %v1740 = vpack.c.b16 %v1512, %v1508
    %v1741 = vpack.c.b16 %v1513, %v1509
    %v1742 = vpack.c.b16 %v1514, %v1510
    %v1743 = vpack.c.b16 %v1519, %v1515
    %v1744 = vpack.c.b16 %v1520, %v1516
    %v1745 = vpack.c.b16 %v1521, %v1517
    %v1746 = vpack.c.b16 %v1522, %v1518
    %v1747 = vpack.c.b16 %v1527, %v1523
    %v1748 = vpack.c.b16 %v1528, %v1524
    %v1749 = vpack.c.b16 %v1529, %v1525
    %v1750 = vpack.c.b16 %v1530, %v1526
    %v1751 = vpack.c.b16 %v1535, %v1531
    %v1752 = vpack.c.b16 %v1536, %v1532
    %v1753 = vpack.c.b16 %v1537, %v1533
    %v1754 = vpack.c.b16 %v1538, %v1534
    %v1755 = vpack.c.b16 %v1543, %v1539
    %v1756 = vpack.c.b16 %v1544, %v1540
    %v1757 = vpack.c.b16 %v1545, %v1541
    %v1758 = vpack.c.b16 %v1546, %v1542
    %v1759 = vpack.c.b16 %v1551, %v1547
    %v1760 = vpack.c.b16 %v1552, %v1548
    %v1761 = vpack.c.b16 %v1553, %v1549
    %v1762 = vpack.c.b16 %v1554, %v1550
    %v1763 = vpack.c.b16 %v1559, %v1555
    %v1764 = vpack.c.b16 %v1560, %v1556
    %v1765 = vpack.c.b16 %v1561, %v1557
    %v1766 = vpack.c.b16 %v1562, %v1558
    %v1767 = vpack.c.b16 %v1567, %v1563
    %v1768 = vpack.c.b16 %v1568, %v1564
    %v1769 = vpack.c.b16 %v1569, %v1565
    %v1770 = vpack.c.b16 %v1570, %v1566
    %v1771 = vpack.c.b16 %v1575, %v1571
    %v1772 = vpack.c.b16 %v1576, %v1572
    %v1773 = vpack.c.b16 %v1577, %v1573
    %v1774 = vpack.c.b16 %v1578, %v1574
    %v1775 = vpack.c.b16 %v1583, %v1579
    %v1776 = vpack.c.b16 %v1584, %v1580
    %v1777 = vpack.c.b16 %v1585, %v1581
    %v1778 = vpack.c.b16 %v1586, %v1582
    %v1779 = vpack.c.b16 %v1591, %v1587
    %v1780 = vpack.c.b16 %v1592, %v1588
    %v1781 = vpack.c.b16 %v1593, %v1589
    %v1782 = vpack.c.b16 %v1594, %v1590
    %v1783 = vpack.c.b16 %v1599, %v1595
    %v1784 = vpack.c.b16 %v1600, %v1596
    %v1785 = vpack.c.b16 %v1601, %v1597
    %v1786 = vpack.c.b16 %v1602, %v1598
    %v1787 = vpack.c.b16 %v1607, %v1603
    %v1788 = vpack.c.b16 %v1608, %v1604
    %v1789 = vpack.c.b16 %v1609, %v1605
    %v1790 = vpack.c.b16 %v1610, %v1606
    %v1791 = vpack.c.b16 %v1615, %v1611
    %v1792 = vpack.c.b16 %v1616, %v1612
    %v1793 = vpack.c.b16 %v1617, %v1613
    %v1794 = vpack.c.b16 %v1618, %v1614
    %v1795 = vpack.c.b16 %v1623, %v1619
    %v1796 = vpack.c.b16 %v1624, %v1620
    %v1797 = vpack.c.b16 %v1625, %v1621
    %v1798 = vpack.c.b16 %v1626, %v1622
    %v1799 = vpack.c.b16 %v1631, %v1627
    %v1800 = vpack.c.b16 %v1632, %v1628
    %v1801 = vpack.c.b16 %v1633, %v1629
    %v1802 = vpack.c.b16 %v1634, %v1630
    %v1803 = vpack.c.b16 %v1639, %v1635
    %v1804 = vpack.c.b16 %v1640, %v1636
    %v1805 = vpack.c.b16 %v1641, %v1637
    %v1806 = vpack.c.b16 %v1642, %v1638
    %v1807 = vpack.c.b16 %v1647, %v1643
    %v1808 = vpack.c.b16 %v1648, %v1644
    %v1809 = vpack.c.b16 %v1649, %v1645
    %v1810 = vpack.c.b16 %v1650, %v1646
    %v1811 = vpack.c.b16 %v1655, %v1651
    %v1812 = vpack.c.b16 %v1656, %v1652
    %v1813 = vpack.c.b16 %v1657, %v1653
    %v1814 = vpack.c.b16 %v1658, %v1654
    %v1815 = vpack.c.b16 %v1663, %v1659
    %v1816 = vpack.c.b16 %v1664, %v1660
    %v1817 = vpack.c.b16 %v1665, %v1661
    %v1818 = vpack.c.b16 %v1666, %v1662
    %v1819 = vpack.c.b16 %v1671, %v1667
    %v1820 = vpack.c.b16 %v1672, %v1668
    %v1821 = vpack.c.b16 %v1673, %v1669
    %v1822 = vpack.c.b16 %v1674, %v1670
    %v1823 = vpack.c.b16 %v1679, %v1675
    %v1824 = vpack.c.b16 %v1680, %v1676
    %v1825 = vpack.c.b16 %v1681, %v1677
    %v1826 = vpack.c.b16 %v1682, %v1678
    %v1827 = vpack.c.b16 %v1687, %v1683
    %v1828 = vpack.c.b16 %v1688, %v1684
    %v1829 = vpack.c.b16 %v1689, %v1685
    %v1830 = vpack.c.b16 %v1690, %v1686
    %v1831 = vpack.c.b16 %v1695, %v1691
    %v1832 = vpack.c.b16 %v1696, %v1692
    %v1833 = vpack.c.b16 %v1697, %v1693
    %v1834 = vpack.c.b16 %v1698, %v1694
    %v1835 = vpack.c.b16 %v1703, %v1699
    %v1836 = vpack.c.b16 %v1704, %v1700
    %v1837 = vpack.c.b16 %v1705, %v1701
    %v1838 = vpack.c.b16 %v1706, %v1702
    %v1839 = vpack.c.b16 %v1711, %v1707
    %v1840 = vpack.c.b16 %v1712, %v1708
    %v1841 = vpack.c.b16 %v1713, %v1709
    %v1842 = vpack.c.b16 %v1714, %v1710
    %1971 = vmatprep.subr.bf16.mxu0 %v1716
    %1972 = vmatpush1.bf16.msra.mxu0 %v1715
    %1973 = vmatprep.subr.bf16.mxu0 %v1720
    %1974 = vmatpush1.bf16.msra.mxu0 %v1719
    %1975 = vmatprep.subr.bf16.mxu0 %v1724
    %1976 = vmatpush1.bf16.msra.mxu0 %v1723
    %1977 = vmatprep.subr.bf16.mxu0 %v1728
    %1978 = vmatpush1.bf16.msra.mxu0 %v1727
    %1979 = vmatprep.subr.bf16.mxu0 %v1732
    %1980 = vmatpush1.bf16.msra.mxu0 %v1731
    %1981 = vmatprep.subr.bf16.mxu0 %v1736
    %1982 = vmatpush1.bf16.msra.mxu0 %v1735
    %1983 = vmatprep.subr.bf16.mxu0 %v1740
    %1984 = vmatpush1.bf16.msra.mxu0 %v1739
    %1985 = vmatprep.subr.bf16.mxu0 %v1744
    %1986 = vmatpush1.bf16.msra.mxu0 %v1743
    %1987 = vmatprep.subr.bf16.mxu0 %v1748
    %1988 = vmatpush1.bf16.msra.mxu0 %v1747
    %1989 = vmatprep.subr.bf16.mxu0 %v1752
    %1990 = vmatpush1.bf16.msra.mxu0 %v1751
    %1991 = vmatprep.subr.bf16.mxu0 %v1756
    %1992 = vmatpush1.bf16.msra.mxu0 %v1755
    %1993 = vmatprep.subr.bf16.mxu0 %v1760
    %1994 = vmatpush1.bf16.msra.mxu0 %v1759
    %1995 = vmatprep.subr.bf16.mxu0 %v1764
    %1996 = vmatpush1.bf16.msra.mxu0 %v1763
    %1997 = vmatprep.subr.bf16.mxu0 %v1768
    %1998 = vmatpush1.bf16.msra.mxu0 %v1767
    %1999 = vmatprep.subr.bf16.mxu0 %v1772
    %2000 = vmatpush1.bf16.msra.mxu0 %v1771
    %2001 = vmatprep.subr.bf16.mxu0 %v1776
    %2002 = vmatpush1.bf16.msra.mxu0 %v1775
    %2003 = vmatprep.mubr.bf16.mxu0 %v1118
    %2004 = vmatmul.mubr.bf16.gmra.mrb[0].mxu0 %v1117
    %v2005 = vpop.f32.mrb[0].mxu0
    %v2006 = vadd.f32 %v1314, %v2005
    %v2007 = vpop.f32.mrb[0].mxu0
    %v2008 = vadd.f32 %v1318, %v2007
    %v2009 = vpop.f32.mrb[0].mxu0
    %v2010 = vadd.f32 %v1314, %v2009
    %v2011 = vpop.f32.mrb[0].mxu0
    %v2012 = vadd.f32 %v1318, %v2011
    %2013 = vmatprep.mubr.bf16.mxu0 %v1122
    %2014 = vmatmul.mubr.bf16.gmra.mrb[0].mxu0 %v1121
    %v2015 = vpop.f32.mrb[0].mxu0
    %v2016 = vadd.f32 %v1314, %v2015
    %v2017 = vpop.f32.mrb[0].mxu0
    %v2018 = vadd.f32 %v1318, %v2017
    %v2019 = vpop.f32.mrb[0].mxu0
    %v2020 = vadd.f32 %v1314, %v2019
    %v2021 = vpop.f32.mrb[0].mxu0
    %v2022 = vadd.f32 %v1318, %v2021
    %2023 = vmatprep.mubr.bf16.mxu0 %v1126
    %2024 = vmatmul.mubr.bf16.gmra.mrb[0].mxu0 %v1125
    %v2025 = vpop.f32.mrb[0].mxu0
    %v2026 = vadd.f32 %v1314, %v2025
    %v2027 = vpop.f32.mrb[0].mxu0
    %v2028 = vadd.f32 %v1318, %v2027
    %v2029 = vpop.f32.mrb[0].mxu0
    %v2030 = vadd.f32 %v1314, %v2029
    %v2031 = vpop.f32.mrb[0].mxu0
    %v2032 = vadd.f32 %v1318, %v2031
    %2033 = vmatprep.mubr.bf16.mxu0 %v1130
    %2034 = vmatmul.mubr.bf16.gmra.mrb[0].mxu0 %v1129
    %v2035 = vpop.f32.mrb[0].mxu0
    %v2036 = vadd.f32 %v1314, %v2035
    %v2037 = vpop.f32.mrb[0].mxu0
    %v2038 = vadd.f32 %v1318, %v2037
    %v2039 = vpop.f32.mrb[0].mxu0
    %v2040 = vadd.f32 %v1314, %v2039
    %v2041 = vpop.f32.mrb[0].mxu0
    %v2042 = vadd.f32 %v1318, %v2041
    %2043 = vmatprep.mubr.bf16.mxu0 %v1134
    %2044 = vmatmul.mubr.bf16.gmra.mrb[0].mxu0 %v1133
    %v2045 = vpop.f32.mrb[0].mxu0
    %v2046 = vadd.f32 %v1314, %v2045
    %v2047 = vpop.f32.mrb[0].mxu0
    %v2048 = vadd.f32 %v1318, %v2047
    %v2049 = vpop.f32.mrb[0].mxu0
    %v2050 = vadd.f32 %v1314, %v2049
    %v2051 = vpop.f32.mrb[0].mxu0
    %v2052 = vadd.f32 %v1318, %v2051
    %2053 = vmatprep.mubr.bf16.mxu0 %v1138
    %2054 = vmatmul.mubr.bf16.gmra.mrb[0].mxu0 %v1137
    %v2055 = vpop.f32.mrb[0].mxu0
    %v2056 = vadd.f32 %v1314, %v2055
    %v2057 = vpop.f32.mrb[0].mxu0
    %v2058 = vadd.f32 %v1318, %v2057
    %v2059 = vpop.f32.mrb[0].mxu0
    %v2060 = vadd.f32 %v1314, %v2059
    %v2061 = vpop.f32.mrb[0].mxu0
    %v2062 = vadd.f32 %v1318, %v2061
    %2063 = vmatprep.mubr.bf16.mxu0 %v1142
    %2064 = vmatmul.mubr.bf16.gmra.mrb[0].mxu0 %v1141
    %v2065 = vpop.f32.mrb[0].mxu0
    %v2066 = vadd.f32 %v1314, %v2065
    %v2067 = vpop.f32.mrb[0].mxu0
    %v2068 = vadd.f32 %v1318, %v2067
    %v2069 = vpop.f32.mrb[0].mxu0
    %v2070 = vadd.f32 %v1314, %v2069
    %v2071 = vpop.f32.mrb[0].mxu0
    %v2072 = vadd.f32 %v1318, %v2071
    %2073 = vmatprep.mubr.bf16.mxu0 %v1146
    %2074 = vmatmul.mubr.bf16.gmra.mrb[0].mxu0 %v1145
    %v2075 = vpop.f32.mrb[0].mxu0
    %v2076 = vadd.f32 %v1314, %v2075
    %v2077 = vpop.f32.mrb[0].mxu0
    %v2078 = vadd.f32 %v1318, %v2077
    %v2079 = vpop.f32.mrb[0].mxu0
    %v2080 = vadd.f32 %v1314, %v2079
    %v2081 = vpop.f32.mrb[0].mxu0
    %v2082 = vadd.f32 %v1318, %v2081
    %2083 = vmatprep.mubr.bf16.mxu0 %v1150
    %2084 = vmatmul.mubr.bf16.gmra.mrb[0].mxu0 %v1149
    %v2085 = vpop.f32.mrb[0].mxu0
    %v2086 = vadd.f32 %v1314, %v2085
    %v2087 = vpop.f32.mrb[0].mxu0
    %v2088 = vadd.f32 %v1318, %v2087
    %v2089 = vpop.f32.mrb[0].mxu0
    %v2090 = vadd.f32 %v1314, %v2089
    %v2091 = vpop.f32.mrb[0].mxu0
    %v2092 = vadd.f32 %v1318, %v2091
    %2093 = vmatprep.mubr.bf16.mxu0 %v1154
    %2094 = vmatmul.mubr.bf16.gmra.mrb[0].mxu0 %v1153
    %v2095 = vpop.f32.mrb[0].mxu0
    %v2096 = vadd.f32 %v1314, %v2095
    %v2097 = vpop.f32.mrb[0].mxu0
    %v2098 = vadd.f32 %v1318, %v2097
    %v2099 = vpop.f32.mrb[0].mxu0
    %v2100 = vadd.f32 %v1314, %v2099
    %v2101 = vpop.f32.mrb[0].mxu0
    %v2102 = vadd.f32 %v1318, %v2101
    %2103 = vmatprep.mubr.bf16.mxu0 %v1158
    %2104 = vmatmul.mubr.bf16.gmra.mrb[0].mxu0 %v1157
    %v2105 = vpop.f32.mrb[0].mxu0
    %v2106 = vadd.f32 %v1314, %v2105
    %v2107 = vpop.f32.mrb[0].mxu0
    %v2108 = vadd.f32 %v1318, %v2107
    %v2109 = vpop.f32.mrb[0].mxu0
    %v2110 = vadd.f32 %v1314, %v2109
    %v2111 = vpop.f32.mrb[0].mxu0
    %v2112 = vadd.f32 %v1318, %v2111
    %2113 = vmatprep.mubr.bf16.mxu0 %v1162
    %2114 = vmatmul.mubr.bf16.gmra.mrb[0].mxu0 %v1161
    %v2115 = vpop.f32.mrb[0].mxu0
    %v2116 = vadd.f32 %v1314, %v2115
    %v2117 = vpop.f32.mrb[0].mxu0
    %v2118 = vadd.f32 %v1318, %v2117
    %v2119 = vpop.f32.mrb[0].mxu0
    %v2120 = vadd.f32 %v1314, %v2119
    %v2121 = vpop.f32.mrb[0].mxu0
    %v2122 = vadd.f32 %v1318, %v2121
    %2123 = vmatprep.mubr.bf16.mxu0 %v1166
    %2124 = vmatmul.mubr.bf16.gmra.mrb[0].mxu0 %v1165
    %v2125 = vpop.f32.mrb[0].mxu0
    %v2126 = vadd.f32 %v1314, %v2125
    %v2127 = vpop.f32.mrb[0].mxu0
    %v2128 = vadd.f32 %v1318, %v2127
    %v2129 = vpop.f32.mrb[0].mxu0
    %v2130 = vadd.f32 %v1314, %v2129
    %v2131 = vpop.f32.mrb[0].mxu0
    %v2132 = vadd.f32 %v1318, %v2131
    %2133 = vmatprep.mubr.bf16.mxu0 %v1170
    %2134 = vmatmul.mubr.bf16.gmra.mrb[0].mxu0 %v1169
    %v2135 = vpop.f32.mrb[0].mxu0
    %v2136 = vadd.f32 %v1314, %v2135
    %v2137 = vpop.f32.mrb[0].mxu0
    %v2138 = vadd.f32 %v1318, %v2137
    %v2139 = vpop.f32.mrb[0].mxu0
    %v2140 = vadd.f32 %v1314, %v2139
    %v2141 = vpop.f32.mrb[0].mxu0
    %v2142 = vadd.f32 %v1318, %v2141
    %2143 = vmatprep.mubr.bf16.mxu0 %v1174
    %2144 = vmatmul.mubr.bf16.gmra.mrb[0].mxu0 %v1173
    %v2145 = vpop.f32.mrb[0].mxu0
    %v2146 = vadd.f32 %v1314, %v2145
    %v2147 = vpop.f32.mrb[0].mxu0
    %v2148 = vadd.f32 %v1318, %v2147
    %v2149 = vpop.f32.mrb[0].mxu0
    %v2150 = vadd.f32 %v1314, %v2149
    %v2151 = vpop.f32.mrb[0].mxu0
    %v2152 = vadd.f32 %v1318, %v2151
    %2153 = vmatprep.mubr.bf16.mxu0 %v1178
    %2154 = vmatmul.mubr.bf16.gmra.mrb[0].mxu0 %v1177
    %v2155 = vpop.f32.mrb[0].mxu0
    %v2156 = vadd.f32 %v1314, %v2155
    %v2157 = vpop.f32.mrb[0].mxu0
    %v2158 = vadd.f32 %v1318, %v2157
    %v2159 = vpop.f32.mrb[0].mxu0
    %v2160 = vadd.f32 %v1314, %v2159
    %v2161 = vpop.f32.mrb[0].mxu0
    %v2162 = vadd.f32 %v1318, %v2161
    %2163 = vdwg.mxu0
    %2164 = vmatprep.subr.bf16.mxu0 %v1780
    %2165 = vmatpush1.bf16.msra.mxu0 %v1779
    %2166 = vmatprep.subr.bf16.mxu0 %v1784
    %2167 = vmatpush1.bf16.msra.mxu0 %v1783
    %2168 = vmatprep.subr.bf16.mxu0 %v1788
    %2169 = vmatpush1.bf16.msra.mxu0 %v1787
    %2170 = vmatprep.subr.bf16.mxu0 %v1792
    %2171 = vmatpush1.bf16.msra.mxu0 %v1791
    %2172 = vmatprep.subr.bf16.mxu0 %v1796
    %2173 = vmatpush1.bf16.msra.mxu0 %v1795
    %2174 = vmatprep.subr.bf16.mxu0 %v1800
    %2175 = vmatpush1.bf16.msra.mxu0 %v1799
    %2176 = vmatprep.subr.bf16.mxu0 %v1804
    %2177 = vmatpush1.bf16.msra.mxu0 %v1803
    %2178 = vmatprep.subr.bf16.mxu0 %v1808
    %2179 = vmatpush1.bf16.msra.mxu0 %v1807
    %2180 = vmatprep.subr.bf16.mxu0 %v1812
    %2181 = vmatpush1.bf16.msra.mxu0 %v1811
    %2182 = vmatprep.subr.bf16.mxu0 %v1816
    %2183 = vmatpush1.bf16.msra.mxu0 %v1815
    %2184 = vmatprep.subr.bf16.mxu0 %v1820
    %2185 = vmatpush1.bf16.msra.mxu0 %v1819
    %2186 = vmatprep.subr.bf16.mxu0 %v1824
    %2187 = vmatpush1.bf16.msra.mxu0 %v1823
    %2188 = vmatprep.subr.bf16.mxu0 %v1828
    %2189 = vmatpush1.bf16.msra.mxu0 %v1827
    %2190 = vmatprep.subr.bf16.mxu0 %v1832
    %2191 = vmatpush1.bf16.msra.mxu0 %v1831
    %2192 = vmatprep.subr.bf16.mxu0 %v1836
    %2193 = vmatpush1.bf16.msra.mxu0 %v1835
    %2194 = vmatprep.subr.bf16.mxu0 %v1840
    %2195 = vmatpush1.bf16.msra.mxu0 %v1839
    %2196 = vmatprep.mubr.bf16.mxu0 %v1120
    %2197 = vmatmul.mubr.bf16.gmra.mrb[0].mxu0 %v1119
    %v2198 = vpop.f32.mrb[0].mxu0
    %v2199 = vadd.f32 %v2006, %v2198
    %v2200 = vpop.f32.mrb[0].mxu0
    %v2201 = vadd.f32 %v2008, %v2200
    %v2202 = vpop.f32.mrb[0].mxu0
    %v2203 = vadd.f32 %v2010, %v2202
    %v2204 = vpop.f32.mrb[0].mxu0
    %v2205 = vadd.f32 %v2012, %v2204
    %2206 = vmatprep.mubr.bf16.mxu0 %v1124
    %2207 = vmatmul.mubr.bf16.gmra.mrb[0].mxu0 %v1123
    %v2208 = vpop.f32.mrb[0].mxu0
    %v2209 = vadd.f32 %v2016, %v2208
    %v2210 = vpop.f32.mrb[0].mxu0
    %v2211 = vadd.f32 %v2018, %v2210
    %v2212 = vpop.f32.mrb[0].mxu0
    %v2213 = vadd.f32 %v2020, %v2212
    %v2214 = vpop.f32.mrb[0].mxu0
    %v2215 = vadd.f32 %v2022, %v2214
    %2216 = vmatprep.mubr.bf16.mxu0 %v1128
    %2217 = vmatmul.mubr.bf16.gmra.mrb[0].mxu0 %v1127
    %v2218 = vpop.f32.mrb[0].mxu0
    %v2219 = vadd.f32 %v2026, %v2218
    %v2220 = vpop.f32.mrb[0].mxu0
    %v2221 = vadd.f32 %v2028, %v2220
    %v2222 = vpop.f32.mrb[0].mxu0
    %v2223 = vadd.f32 %v2030, %v2222
    %v2224 = vpop.f32.mrb[0].mxu0
    %v2225 = vadd.f32 %v2032, %v2224
    %2226 = vmatprep.mubr.bf16.mxu0 %v1132
    %2227 = vmatmul.mubr.bf16.gmra.mrb[0].mxu0 %v1131
    %v2228 = vpop.f32.mrb[0].mxu0
    %v2229 = vadd.f32 %v2036, %v2228
    %v2230 = vpop.f32.mrb[0].mxu0
    %v2231 = vadd.f32 %v2038, %v2230
    %v2232 = vpop.f32.mrb[0].mxu0
    %v2233 = vadd.f32 %v2040, %v2232
    %v2234 = vpop.f32.mrb[0].mxu0
    %v2235 = vadd.f32 %v2042, %v2234
    %2236 = vmatprep.mubr.bf16.mxu0 %v1136
    %2237 = vmatmul.mubr.bf16.gmra.mrb[0].mxu0 %v1135
    %v2238 = vpop.f32.mrb[0].mxu0
    %v2239 = vadd.f32 %v2046, %v2238
    %v2240 = vpop.f32.mrb[0].mxu0
    %v2241 = vadd.f32 %v2048, %v2240
    %v2242 = vpop.f32.mrb[0].mxu0
    %v2243 = vadd.f32 %v2050, %v2242
    %v2244 = vpop.f32.mrb[0].mxu0
    %v2245 = vadd.f32 %v2052, %v2244
    %2246 = vmatprep.mubr.bf16.mxu0 %v1140
    %2247 = vmatmul.mubr.bf16.gmra.mrb[0].mxu0 %v1139
    %v2248 = vpop.f32.mrb[0].mxu0
    %v2249 = vadd.f32 %v2056, %v2248
    %v2250 = vpop.f32.mrb[0].mxu0
    %v2251 = vadd.f32 %v2058, %v2250
    %v2252 = vpop.f32.mrb[0].mxu0
    %v2253 = vadd.f32 %v2060, %v2252
    %v2254 = vpop.f32.mrb[0].mxu0
    %v2255 = vadd.f32 %v2062, %v2254
    %2256 = vmatprep.mubr.bf16.mxu0 %v1144
    %2257 = vmatmul.mubr.bf16.gmra.mrb[0].mxu0 %v1143
    %v2258 = vpop.f32.mrb[0].mxu0
    %v2259 = vadd.f32 %v2066, %v2258
    %v2260 = vpop.f32.mrb[0].mxu0
    %v2261 = vadd.f32 %v2068, %v2260
    %v2262 = vpop.f32.mrb[0].mxu0
    %v2263 = vadd.f32 %v2070, %v2262
    %v2264 = vpop.f32.mrb[0].mxu0
    %v2265 = vadd.f32 %v2072, %v2264
    %2266 = vmatprep.mubr.bf16.mxu0 %v1148
    %2267 = vmatmul.mubr.bf16.gmra.mrb[0].mxu0 %v1147
    %v2268 = vpop.f32.mrb[0].mxu0
    %v2269 = vadd.f32 %v2076, %v2268
    %v2270 = vpop.f32.mrb[0].mxu0
    %v2271 = vadd.f32 %v2078, %v2270
    %v2272 = vpop.f32.mrb[0].mxu0
    %v2273 = vadd.f32 %v2080, %v2272
    %v2274 = vpop.f32.mrb[0].mxu0
    %v2275 = vadd.f32 %v2082, %v2274
    %2276 = vmatprep.mubr.bf16.mxu0 %v1152
    %2277 = vmatmul.mubr.bf16.gmra.mrb[0].mxu0 %v1151
    %v2278 = vpop.f32.mrb[0].mxu0
    %v2279 = vadd.f32 %v2086, %v2278
    %v2280 = vpop.f32.mrb[0].mxu0
    %v2281 = vadd.f32 %v2088, %v2280
    %v2282 = vpop.f32.mrb[0].mxu0
    %v2283 = vadd.f32 %v2090, %v2282
    %v2284 = vpop.f32.mrb[0].mxu0
    %v2285 = vadd.f32 %v2092, %v2284
    %2286 = vmatprep.mubr.bf16.mxu0 %v1156
    %2287 = vmatmul.mubr.bf16.gmra.mrb[0].mxu0 %v1155
    %v2288 = vpop.f32.mrb[0].mxu0
    %v2289 = vadd.f32 %v2096, %v2288
    %v2290 = vpop.f32.mrb[0].mxu0
    %v2291 = vadd.f32 %v2098, %v2290
    %v2292 = vpop.f32.mrb[0].mxu0
    %v2293 = vadd.f32 %v2100, %v2292
    %v2294 = vpop.f32.mrb[0].mxu0
    %v2295 = vadd.f32 %v2102, %v2294
    %2296 = vmatprep.mubr.bf16.mxu0 %v1160
    %2297 = vmatmul.mubr.bf16.gmra.mrb[0].mxu0 %v1159
    %v2298 = vpop.f32.mrb[0].mxu0
    %v2299 = vadd.f32 %v2106, %v2298
    %v2300 = vpop.f32.mrb[0].mxu0
    %v2301 = vadd.f32 %v2108, %v2300
    %v2302 = vpop.f32.mrb[0].mxu0
    %v2303 = vadd.f32 %v2110, %v2302
    %v2304 = vpop.f32.mrb[0].mxu0
    %v2305 = vadd.f32 %v2112, %v2304
    %2306 = vmatprep.mubr.bf16.mxu0 %v1164
    %2307 = vmatmul.mubr.bf16.gmra.mrb[0].mxu0 %v1163
    %v2308 = vpop.f32.mrb[0].mxu0
    %v2309 = vadd.f32 %v2116, %v2308
    %v2310 = vpop.f32.mrb[0].mxu0
    %v2311 = vadd.f32 %v2118, %v2310
    %v2312 = vpop.f32.mrb[0].mxu0
    %v2313 = vadd.f32 %v2120, %v2312
    %v2314 = vpop.f32.mrb[0].mxu0
    %v2315 = vadd.f32 %v2122, %v2314
    %2316 = vmatprep.mubr.bf16.mxu0 %v1168
    %2317 = vmatmul.mubr.bf16.gmra.mrb[0].mxu0 %v1167
    %v2318 = vpop.f32.mrb[0].mxu0
    %v2319 = vadd.f32 %v2126, %v2318
    %v2320 = vpop.f32.mrb[0].mxu0
    %v2321 = vadd.f32 %v2128, %v2320
    %v2322 = vpop.f32.mrb[0].mxu0
    %v2323 = vadd.f32 %v2130, %v2322
    %v2324 = vpop.f32.mrb[0].mxu0
    %v2325 = vadd.f32 %v2132, %v2324
    %2326 = vmatprep.mubr.bf16.mxu0 %v1172
    %2327 = vmatmul.mubr.bf16.gmra.mrb[0].mxu0 %v1171
    %v2328 = vpop.f32.mrb[0].mxu0
    %v2329 = vadd.f32 %v2136, %v2328
    %v2330 = vpop.f32.mrb[0].mxu0
    %v2331 = vadd.f32 %v2138, %v2330
    %v2332 = vpop.f32.mrb[0].mxu0
    %v2333 = vadd.f32 %v2140, %v2332
    %v2334 = vpop.f32.mrb[0].mxu0
    %v2335 = vadd.f32 %v2142, %v2334
    %2336 = vmatprep.mubr.bf16.mxu0 %v1176
    %2337 = vmatmul.mubr.bf16.gmra.mrb[0].mxu0 %v1175
    %v2338 = vpop.f32.mrb[0].mxu0
    %v2339 = vadd.f32 %v2146, %v2338
    %v2340 = vpop.f32.mrb[0].mxu0
    %v2341 = vadd.f32 %v2148, %v2340
    %v2342 = vpop.f32.mrb[0].mxu0
    %v2343 = vadd.f32 %v2150, %v2342
    %v2344 = vpop.f32.mrb[0].mxu0
    %v2345 = vadd.f32 %v2152, %v2344
    %2346 = vmatprep.mubr.bf16.mxu0 %v1180
    %2347 = vmatmul.mubr.bf16.gmra.mrb[0].mxu0 %v1179
    %v2348 = vpop.f32.mrb[0].mxu0
    %v2349 = vadd.f32 %v2156, %v2348
    %v2350 = vpop.f32.mrb[0].mxu0
    %v2351 = vadd.f32 %v2158, %v2350
    %v2352 = vpop.f32.mrb[0].mxu0
    %v2353 = vadd.f32 %v2160, %v2352
    %v2354 = vpop.f32.mrb[0].mxu0
    %v2355 = vadd.f32 %v2162, %v2354
    %2356 = vdwg.mxu0
    %2357 = vmatprep.subr.bf16.mxu0 %v1718
    %2358 = vmatpush1.bf16.msra.mxu0 %v1717
    %2359 = vmatprep.subr.bf16.mxu0 %v1722
    %2360 = vmatpush1.bf16.msra.mxu0 %v1721
    %2361 = vmatprep.subr.bf16.mxu0 %v1726
    %2362 = vmatpush1.bf16.msra.mxu0 %v1725
    %2363 = vmatprep.subr.bf16.mxu0 %v1730
    %2364 = vmatpush1.bf16.msra.mxu0 %v1729
    %2365 = vmatprep.subr.bf16.mxu0 %v1734
    %2366 = vmatpush1.bf16.msra.mxu0 %v1733
    %2367 = vmatprep.subr.bf16.mxu0 %v1738
    %2368 = vmatpush1.bf16.msra.mxu0 %v1737
    %2369 = vmatprep.subr.bf16.mxu0 %v1742
    %2370 = vmatpush1.bf16.msra.mxu0 %v1741
    %2371 = vmatprep.subr.bf16.mxu0 %v1746
    %2372 = vmatpush1.bf16.msra.mxu0 %v1745
    %2373 = vmatprep.subr.bf16.mxu0 %v1750
    %2374 = vmatpush1.bf16.msra.mxu0 %v1749
    %2375 = vmatprep.subr.bf16.mxu0 %v1754
    %2376 = vmatpush1.bf16.msra.mxu0 %v1753
    %2377 = vmatprep.subr.bf16.mxu0 %v1758
    %2378 = vmatpush1.bf16.msra.mxu0 %v1757
    %2379 = vmatprep.subr.bf16.mxu0 %v1762
    %2380 = vmatpush1.bf16.msra.mxu0 %v1761
    %2381 = vmatprep.subr.bf16.mxu0 %v1766
    %2382 = vmatpush1.bf16.msra.mxu0 %v1765
    %2383 = vmatprep.subr.bf16.mxu0 %v1770
    %2384 = vmatpush1.bf16.msra.mxu0 %v1769
    %2385 = vmatprep.subr.bf16.mxu0 %v1774
    %2386 = vmatpush1.bf16.msra.mxu0 %v1773
    %2387 = vmatprep.subr.bf16.mxu0 %v1778
    %2388 = vmatpush1.bf16.msra.mxu0 %v1777
    %2389 = vmatprep.mubr.bf16.mxu0 %v1118
    %2390 = vmatmul.mubr.bf16.gmra.mrb[0].mxu0 %v1117
    %v2391 = vpop.f32.mrb[0].mxu0
    %v2392 = vadd.f32 %v1322, %v2391
    %v2393 = vpop.f32.mrb[0].mxu0
    %v2394 = vadd.f32 %v1326, %v2393
    %v2395 = vpop.f32.mrb[0].mxu0
    %v2396 = vadd.f32 %v1322, %v2395
    %v2397 = vpop.f32.mrb[0].mxu0
    %v2398 = vadd.f32 %v1326, %v2397
    %2399 = vmatprep.mubr.bf16.mxu0 %v1122
    %2400 = vmatmul.mubr.bf16.gmra.mrb[0].mxu0 %v1121
    %v2401 = vpop.f32.mrb[0].mxu0
    %v2402 = vadd.f32 %v1322, %v2401
    %v2403 = vpop.f32.mrb[0].mxu0
    %v2404 = vadd.f32 %v1326, %v2403
    %v2405 = vpop.f32.mrb[0].mxu0
    %v2406 = vadd.f32 %v1322, %v2405
    %v2407 = vpop.f32.mrb[0].mxu0
    %v2408 = vadd.f32 %v1326, %v2407
    %2409 = vmatprep.mubr.bf16.mxu0 %v1126
    %2410 = vmatmul.mubr.bf16.gmra.mrb[0].mxu0 %v1125
    %v2411 = vpop.f32.mrb[0].mxu0
    %v2412 = vadd.f32 %v1322, %v2411
    %v2413 = vpop.f32.mrb[0].mxu0
    %v2414 = vadd.f32 %v1326, %v2413
    %v2415 = vpop.f32.mrb[0].mxu0
    %v2416 = vadd.f32 %v1322, %v2415
    %v2417 = vpop.f32.mrb[0].mxu0
    %v2418 = vadd.f32 %v1326, %v2417
    %2419 = vmatprep.mubr.bf16.mxu0 %v1130
    %2420 = vmatmul.mubr.bf16.gmra.mrb[0].mxu0 %v1129
    %v2421 = vpop.f32.mrb[0].mxu0
    %v2422 = vadd.f32 %v1322, %v2421
    %v2423 = vpop.f32.mrb[0].mxu0
    %v2424 = vadd.f32 %v1326, %v2423
    %v2425 = vpop.f32.mrb[0].mxu0
    %v2426 = vadd.f32 %v1322, %v2425
    %v2427 = vpop.f32.mrb[0].mxu0
    %v2428 = vadd.f32 %v1326, %v2427
    %2429 = vmatprep.mubr.bf16.mxu0 %v1134
    %2430 = vmatmul.mubr.bf16.gmra.mrb[0].mxu0 %v1133
    %v2431 = vpop.f32.mrb[0].mxu0
    %v2432 = vadd.f32 %v1322, %v2431
    %v2433 = vpop.f32.mrb[0].mxu0
    %v2434 = vadd.f32 %v1326, %v2433
    %v2435 = vpop.f32.mrb[0].mxu0
    %v2436 = vadd.f32 %v1322, %v2435
    %v2437 = vpop.f32.mrb[0].mxu0
    %v2438 = vadd.f32 %v1326, %v2437
    %2439 = vmatprep.mubr.bf16.mxu0 %v1138
    %2440 = vmatmul.mubr.bf16.gmra.mrb[0].mxu0 %v1137
    %v2441 = vpop.f32.mrb[0].mxu0
    %v2442 = vadd.f32 %v1322, %v2441
    %v2443 = vpop.f32.mrb[0].mxu0
    %v2444 = vadd.f32 %v1326, %v2443
    %v2445 = vpop.f32.mrb[0].mxu0
    %v2446 = vadd.f32 %v1322, %v2445
    %v2447 = vpop.f32.mrb[0].mxu0
    %v2448 = vadd.f32 %v1326, %v2447
    %2449 = vmatprep.mubr.bf16.mxu0 %v1142
    %2450 = vmatmul.mubr.bf16.gmra.mrb[0].mxu0 %v1141
    %v2451 = vpop.f32.mrb[0].mxu0
    %v2452 = vadd.f32 %v1322, %v2451
    %v2453 = vpop.f32.mrb[0].mxu0
    %v2454 = vadd.f32 %v1326, %v2453
    %v2455 = vpop.f32.mrb[0].mxu0
    %v2456 = vadd.f32 %v1322, %v2455
    %v2457 = vpop.f32.mrb[0].mxu0
    %v2458 = vadd.f32 %v1326, %v2457
    %2459 = vmatprep.mubr.bf16.mxu0 %v1146
    %2460 = vmatmul.mubr.bf16.gmra.mrb[0].mxu0 %v1145
    %v2461 = vpop.f32.mrb[0].mxu0
    %v2462 = vadd.f32 %v1322, %v2461
    %v2463 = vpop.f32.mrb[0].mxu0
    %v2464 = vadd.f32 %v1326, %v2463
    %v2465 = vpop.f32.mrb[0].mxu0
    %v2466 = vadd.f32 %v1322, %v2465
    %v2467 = vpop.f32.mrb[0].mxu0
    %v2468 = vadd.f32 %v1326, %v2467
    %2469 = vmatprep.mubr.bf16.mxu0 %v1150
    %2470 = vmatmul.mubr.bf16.gmra.mrb[0].mxu0 %v1149
    %v2471 = vpop.f32.mrb[0].mxu0
    %v2472 = vadd.f32 %v1322, %v2471
    %v2473 = vpop.f32.mrb[0].mxu0
    %v2474 = vadd.f32 %v1326, %v2473
    %v2475 = vpop.f32.mrb[0].mxu0
    %v2476 = vadd.f32 %v1322, %v2475
    %v2477 = vpop.f32.mrb[0].mxu0
    %v2478 = vadd.f32 %v1326, %v2477
    %2479 = vmatprep.mubr.bf16.mxu0 %v1154
    %2480 = vmatmul.mubr.bf16.gmra.mrb[0].mxu0 %v1153
    %v2481 = vpop.f32.mrb[0].mxu0
    %v2482 = vadd.f32 %v1322, %v2481
    %v2483 = vpop.f32.mrb[0].mxu0
    %v2484 = vadd.f32 %v1326, %v2483
    %v2485 = vpop.f32.mrb[0].mxu0
    %v2486 = vadd.f32 %v1322, %v2485
    %v2487 = vpop.f32.mrb[0].mxu0
    %v2488 = vadd.f32 %v1326, %v2487
    %2489 = vmatprep.mubr.bf16.mxu0 %v1158
    %2490 = vmatmul.mubr.bf16.gmra.mrb[0].mxu0 %v1157
    %v2491 = vpop.f32.mrb[0].mxu0
    %v2492 = vadd.f32 %v1322, %v2491
    %v2493 = vpop.f32.mrb[0].mxu0
    %v2494 = vadd.f32 %v1326, %v2493
    %v2495 = vpop.f32.mrb[0].mxu0
    %v2496 = vadd.f32 %v1322, %v2495
    %v2497 = vpop.f32.mrb[0].mxu0
    %v2498 = vadd.f32 %v1326, %v2497
    %2499 = vmatprep.mubr.bf16.mxu0 %v1162
    %2500 = vmatmul.mubr.bf16.gmra.mrb[0].mxu0 %v1161
    %v2501 = vpop.f32.mrb[0].mxu0
    %v2502 = vadd.f32 %v1322, %v2501
    %v2503 = vpop.f32.mrb[0].mxu0
    %v2504 = vadd.f32 %v1326, %v2503
    %v2505 = vpop.f32.mrb[0].mxu0
    %v2506 = vadd.f32 %v1322, %v2505
    %v2507 = vpop.f32.mrb[0].mxu0
    %v2508 = vadd.f32 %v1326, %v2507
    %2509 = vmatprep.mubr.bf16.mxu0 %v1166
    %2510 = vmatmul.mubr.bf16.gmra.mrb[0].mxu0 %v1165
    %v2511 = vpop.f32.mrb[0].mxu0
    %v2512 = vadd.f32 %v1322, %v2511
    %v2513 = vpop.f32.mrb[0].mxu0
    %v2514 = vadd.f32 %v1326, %v2513
    %v2515 = vpop.f32.mrb[0].mxu0
    %v2516 = vadd.f32 %v1322, %v2515
    %v2517 = vpop.f32.mrb[0].mxu0
    %v2518 = vadd.f32 %v1326, %v2517
    %2519 = vmatprep.mubr.bf16.mxu0 %v1170
    %2520 = vmatmul.mubr.bf16.gmra.mrb[0].mxu0 %v1169
    %v2521 = vpop.f32.mrb[0].mxu0
    %v2522 = vadd.f32 %v1322, %v2521
    %v2523 = vpop.f32.mrb[0].mxu0
    %v2524 = vadd.f32 %v1326, %v2523
    %v2525 = vpop.f32.mrb[0].mxu0
    %v2526 = vadd.f32 %v1322, %v2525
    %v2527 = vpop.f32.mrb[0].mxu0
    %v2528 = vadd.f32 %v1326, %v2527
    %2529 = vmatprep.mubr.bf16.mxu0 %v1174
    %2530 = vmatmul.mubr.bf16.gmra.mrb[0].mxu0 %v1173
    %v2531 = vpop.f32.mrb[0].mxu0
    %v2532 = vadd.f32 %v1322, %v2531
    %v2533 = vpop.f32.mrb[0].mxu0
    %v2534 = vadd.f32 %v1326, %v2533
    %v2535 = vpop.f32.mrb[0].mxu0
    %v2536 = vadd.f32 %v1322, %v2535
    %v2537 = vpop.f32.mrb[0].mxu0
    %v2538 = vadd.f32 %v1326, %v2537
    %2539 = vmatprep.mubr.bf16.mxu0 %v1178
    %2540 = vmatmul.mubr.bf16.gmra.mrb[0].mxu0 %v1177
    %v2541 = vpop.f32.mrb[0].mxu0
    %v2542 = vadd.f32 %v1322, %v2541
    %v2543 = vpop.f32.mrb[0].mxu0
    %v2544 = vadd.f32 %v1326, %v2543
    %v2545 = vpop.f32.mrb[0].mxu0
    %v2546 = vadd.f32 %v1322, %v2545
    %v2547 = vpop.f32.mrb[0].mxu0
    %v2548 = vadd.f32 %v1326, %v2547
    %2549 = vdwg.mxu0
    %2550 = vmatprep.subr.bf16.mxu0 %v1782
    %2551 = vmatpush1.bf16.msra.mxu0 %v1781
    %2552 = vmatprep.subr.bf16.mxu0 %v1786
    %2553 = vmatpush1.bf16.msra.mxu0 %v1785
    %2554 = vmatprep.subr.bf16.mxu0 %v1790
    %2555 = vmatpush1.bf16.msra.mxu0 %v1789
    %2556 = vmatprep.subr.bf16.mxu0 %v1794
    %2557 = vmatpush1.bf16.msra.mxu0 %v1793
    %2558 = vmatprep.subr.bf16.mxu0 %v1798
    %2559 = vmatpush1.bf16.msra.mxu0 %v1797
    %2560 = vmatprep.subr.bf16.mxu0 %v1802
    %2561 = vmatpush1.bf16.msra.mxu0 %v1801
    %2562 = vmatprep.subr.bf16.mxu0 %v1806
    %2563 = vmatpush1.bf16.msra.mxu0 %v1805
    %2564 = vmatprep.subr.bf16.mxu0 %v1810
    %2565 = vmatpush1.bf16.msra.mxu0 %v1809
    %2566 = vmatprep.subr.bf16.mxu0 %v1814
    %2567 = vmatpush1.bf16.msra.mxu0 %v1813
    %2568 = vmatprep.subr.bf16.mxu0 %v1818
    %2569 = vmatpush1.bf16.msra.mxu0 %v1817
    %2570 = vmatprep.subr.bf16.mxu0 %v1822
    %2571 = vmatpush1.bf16.msra.mxu0 %v1821
    %2572 = vmatprep.subr.bf16.mxu0 %v1826
    %2573 = vmatpush1.bf16.msra.mxu0 %v1825
    %2574 = vmatprep.subr.bf16.mxu0 %v1830
    %2575 = vmatpush1.bf16.msra.mxu0 %v1829
    %2576 = vmatprep.subr.bf16.mxu0 %v1834
    %2577 = vmatpush1.bf16.msra.mxu0 %v1833
    %2578 = vmatprep.subr.bf16.mxu0 %v1838
    %2579 = vmatpush1.bf16.msra.mxu0 %v1837
    %2580 = vmatprep.subr.bf16.mxu0 %v1842
    %2581 = vmatpush1.bf16.msra.mxu0 %v1841
    %2582 = vmatprep.mubr.bf16.mxu0 %v1120
    %2583 = vmatmul.mubr.bf16.gmra.mrb[0].mxu0 %v1119
    %v2584 = vpop.f32.mrb[0].mxu0
    %v2585 = vadd.f32 %v2392, %v2584
    %v2586 = vpop.f32.mrb[0].mxu0
    %v2587 = vadd.f32 %v2394, %v2586
    %v2588 = vpop.f32.mrb[0].mxu0
    %v2589 = vadd.f32 %v2396, %v2588
    %v2590 = vpop.f32.mrb[0].mxu0
    %v2591 = vadd.f32 %v2398, %v2590
    %2592 = vmatprep.mubr.bf16.mxu0 %v1124
    %2593 = vmatmul.mubr.bf16.gmra.mrb[0].mxu0 %v1123
    %v2594 = vpop.f32.mrb[0].mxu0
    %v2595 = vadd.f32 %v2402, %v2594
    %v2596 = vpop.f32.mrb[0].mxu0
    %v2597 = vadd.f32 %v2404, %v2596
    %v2598 = vpop.f32.mrb[0].mxu0
    %v2599 = vadd.f32 %v2406, %v2598
    %v2600 = vpop.f32.mrb[0].mxu0
    %v2601 = vadd.f32 %v2408, %v2600
    %2602 = vmatprep.mubr.bf16.mxu0 %v1128
    %2603 = vmatmul.mubr.bf16.gmra.mrb[0].mxu0 %v1127
    %v2604 = vpop.f32.mrb[0].mxu0
    %v2605 = vadd.f32 %v2412, %v2604
    %v2606 = vpop.f32.mrb[0].mxu0
    %v2607 = vadd.f32 %v2414, %v2606
    %v2608 = vpop.f32.mrb[0].mxu0
    %v2609 = vadd.f32 %v2416, %v2608
    %v2610 = vpop.f32.mrb[0].mxu0
    %v2611 = vadd.f32 %v2418, %v2610
    %2612 = vmatprep.mubr.bf16.mxu0 %v1132
    %2613 = vmatmul.mubr.bf16.gmra.mrb[0].mxu0 %v1131
    %v2614 = vpop.f32.mrb[0].mxu0
    %v2615 = vadd.f32 %v2422, %v2614
    %v2616 = vpop.f32.mrb[0].mxu0
    %v2617 = vadd.f32 %v2424, %v2616
    %v2618 = vpop.f32.mrb[0].mxu0
    %v2619 = vadd.f32 %v2426, %v2618
    %v2620 = vpop.f32.mrb[0].mxu0
    %v2621 = vadd.f32 %v2428, %v2620
    %2622 = vmatprep.mubr.bf16.mxu0 %v1136
    %2623 = vmatmul.mubr.bf16.gmra.mrb[0].mxu0 %v1135
    %v2624 = vpop.f32.mrb[0].mxu0
    %v2625 = vadd.f32 %v2432, %v2624
    %v2626 = vpop.f32.mrb[0].mxu0
    %v2627 = vadd.f32 %v2434, %v2626
    %v2628 = vpop.f32.mrb[0].mxu0
    %v2629 = vadd.f32 %v2436, %v2628
    %v2630 = vpop.f32.mrb[0].mxu0
    %v2631 = vadd.f32 %v2438, %v2630
    %2632 = vmatprep.mubr.bf16.mxu0 %v1140
    %2633 = vmatmul.mubr.bf16.gmra.mrb[0].mxu0 %v1139
    %v2634 = vpop.f32.mrb[0].mxu0
    %v2635 = vadd.f32 %v2442, %v2634
    %v2636 = vpop.f32.mrb[0].mxu0
    %v2637 = vadd.f32 %v2444, %v2636
    %v2638 = vpop.f32.mrb[0].mxu0
    %v2639 = vadd.f32 %v2446, %v2638
    %v2640 = vpop.f32.mrb[0].mxu0
    %v2641 = vadd.f32 %v2448, %v2640
    %2642 = vmatprep.mubr.bf16.mxu0 %v1144
    %2643 = vmatmul.mubr.bf16.gmra.mrb[0].mxu0 %v1143
    %v2644 = vpop.f32.mrb[0].mxu0
    %v2645 = vadd.f32 %v2452, %v2644
    %v2646 = vpop.f32.mrb[0].mxu0
    %v2647 = vadd.f32 %v2454, %v2646
    %v2648 = vpop.f32.mrb[0].mxu0
    %v2649 = vadd.f32 %v2456, %v2648
    %v2650 = vpop.f32.mrb[0].mxu0
    %v2651 = vadd.f32 %v2458, %v2650
    %2652 = vmatprep.mubr.bf16.mxu0 %v1148
    %2653 = vmatmul.mubr.bf16.gmra.mrb[0].mxu0 %v1147
    %v2654 = vpop.f32.mrb[0].mxu0
    %v2655 = vadd.f32 %v2462, %v2654
    %v2656 = vpop.f32.mrb[0].mxu0
    %v2657 = vadd.f32 %v2464, %v2656
    %v2658 = vpop.f32.mrb[0].mxu0
    %v2659 = vadd.f32 %v2466, %v2658
    %v2660 = vpop.f32.mrb[0].mxu0
    %v2661 = vadd.f32 %v2468, %v2660
    %2662 = vmatprep.mubr.bf16.mxu0 %v1152
    %2663 = vmatmul.mubr.bf16.gmra.mrb[0].mxu0 %v1151
    %v2664 = vpop.f32.mrb[0].mxu0
    %v2665 = vadd.f32 %v2472, %v2664
    %v2666 = vpop.f32.mrb[0].mxu0
    %v2667 = vadd.f32 %v2474, %v2666
    %v2668 = vpop.f32.mrb[0].mxu0
    %v2669 = vadd.f32 %v2476, %v2668
    %v2670 = vpop.f32.mrb[0].mxu0
    %v2671 = vadd.f32 %v2478, %v2670
    %2672 = vmatprep.mubr.bf16.mxu0 %v1156
    %2673 = vmatmul.mubr.bf16.gmra.mrb[0].mxu0 %v1155
    %v2674 = vpop.f32.mrb[0].mxu0
    %v2675 = vadd.f32 %v2482, %v2674
    %v2676 = vpop.f32.mrb[0].mxu0
    %v2677 = vadd.f32 %v2484, %v2676
    %v2678 = vpop.f32.mrb[0].mxu0
    %v2679 = vadd.f32 %v2486, %v2678
    %v2680 = vpop.f32.mrb[0].mxu0
    %v2681 = vadd.f32 %v2488, %v2680
    %2682 = vmatprep.mubr.bf16.mxu0 %v1160
    %2683 = vmatmul.mubr.bf16.gmra.mrb[0].mxu0 %v1159
    %v2684 = vpop.f32.mrb[0].mxu0
    %v2685 = vadd.f32 %v2492, %v2684
    %v2686 = vpop.f32.mrb[0].mxu0
    %v2687 = vadd.f32 %v2494, %v2686
    %v2688 = vpop.f32.mrb[0].mxu0
    %v2689 = vadd.f32 %v2496, %v2688
    %v2690 = vpop.f32.mrb[0].mxu0
    %v2691 = vadd.f32 %v2498, %v2690
    %2692 = vmatprep.mubr.bf16.mxu0 %v1164
    %2693 = vmatmul.mubr.bf16.gmra.mrb[0].mxu0 %v1163
    %v2694 = vpop.f32.mrb[0].mxu0
    %v2695 = vadd.f32 %v2502, %v2694
    %v2696 = vpop.f32.mrb[0].mxu0
    %v2697 = vadd.f32 %v2504, %v2696
    %v2698 = vpop.f32.mrb[0].mxu0
    %v2699 = vadd.f32 %v2506, %v2698
    %v2700 = vpop.f32.mrb[0].mxu0
    %v2701 = vadd.f32 %v2508, %v2700
    %2702 = vmatprep.mubr.bf16.mxu0 %v1168
    %2703 = vmatmul.mubr.bf16.gmra.mrb[0].mxu0 %v1167
    %v2704 = vpop.f32.mrb[0].mxu0
    %v2705 = vadd.f32 %v2512, %v2704
    %v2706 = vpop.f32.mrb[0].mxu0
    %v2707 = vadd.f32 %v2514, %v2706
    %v2708 = vpop.f32.mrb[0].mxu0
    %v2709 = vadd.f32 %v2516, %v2708
    %v2710 = vpop.f32.mrb[0].mxu0
    %v2711 = vadd.f32 %v2518, %v2710
    %2712 = vmatprep.mubr.bf16.mxu0 %v1172
    %2713 = vmatmul.mubr.bf16.gmra.mrb[0].mxu0 %v1171
    %v2714 = vpop.f32.mrb[0].mxu0
    %v2715 = vadd.f32 %v2522, %v2714
    %v2716 = vpop.f32.mrb[0].mxu0
    %v2717 = vadd.f32 %v2524, %v2716
    %v2718 = vpop.f32.mrb[0].mxu0
    %v2719 = vadd.f32 %v2526, %v2718
    %v2720 = vpop.f32.mrb[0].mxu0
    %v2721 = vadd.f32 %v2528, %v2720
    %2722 = vmatprep.mubr.bf16.mxu0 %v1176
    %2723 = vmatmul.mubr.bf16.gmra.mrb[0].mxu0 %v1175
    %v2724 = vpop.f32.mrb[0].mxu0
    %v2725 = vadd.f32 %v2532, %v2724
    %v2726 = vpop.f32.mrb[0].mxu0
    %v2727 = vadd.f32 %v2534, %v2726
    %v2728 = vpop.f32.mrb[0].mxu0
    %v2729 = vadd.f32 %v2536, %v2728
    %v2730 = vpop.f32.mrb[0].mxu0
    %v2731 = vadd.f32 %v2538, %v2730
    %2732 = vmatprep.mubr.bf16.mxu0 %v1180
    %2733 = vmatmul.mubr.bf16.gmra.mrb[0].mxu0 %v1179
    %v2734 = vpop.f32.mrb[0].mxu0
    %v2735 = vadd.f32 %v2542, %v2734
    %v2736 = vpop.f32.mrb[0].mxu0
    %v2737 = vadd.f32 %v2544, %v2736
    %v2738 = vpop.f32.mrb[0].mxu0
    %v2739 = vadd.f32 %v2546, %v2738
    %v2740 = vpop.f32.mrb[0].mxu0
    %v2741 = vadd.f32 %v2548, %v2740
    %2742 = vdwg.mxu0
    %v2743 = vmax.f32 %v2199, 0.0
    %v2744 = vmax.f32 %v2201, 0.0
    %v2745 = vmax.f32 %v2585, 0.0
    %v2746 = vmax.f32 %v2587, 0.0
    %v2747 = vmax.f32 %v2203, 0.0
    %v2748 = vmax.f32 %v2205, 0.0
    %v2749 = vmax.f32 %v2589, 0.0
    %v2750 = vmax.f32 %v2591, 0.0
    %v2751 = vmax.f32 %v2209, 0.0
    %v2752 = vmax.f32 %v2211, 0.0
    %v2753 = vmax.f32 %v2595, 0.0
    %v2754 = vmax.f32 %v2597, 0.0
    %v2755 = vmax.f32 %v2213, 0.0
    %v2756 = vmax.f32 %v2215, 0.0
    %v2757 = vmax.f32 %v2599, 0.0
    %v2758 = vmax.f32 %v2601, 0.0
    %v2759 = vmax.f32 %v2219, 0.0
    %v2760 = vmax.f32 %v2221, 0.0
    %v2761 = vmax.f32 %v2605, 0.0
    %v2762 = vmax.f32 %v2607, 0.0
    %v2763 = vmax.f32 %v2223, 0.0
    %v2764 = vmax.f32 %v2225, 0.0
    %v2765 = vmax.f32 %v2609, 0.0
    %v2766 = vmax.f32 %v2611, 0.0
    %v2767 = vmax.f32 %v2229, 0.0
    %v2768 = vmax.f32 %v2231, 0.0
    %v2769 = vmax.f32 %v2615, 0.0
    %v2770 = vmax.f32 %v2617, 0.0
    %v2771 = vmax.f32 %v2233, 0.0
    %v2772 = vmax.f32 %v2235, 0.0
    %v2773 = vmax.f32 %v2619, 0.0
    %v2774 = vmax.f32 %v2621, 0.0
    %v2775 = vmax.f32 %v2239, 0.0
    %v2776 = vmax.f32 %v2241, 0.0
    %v2777 = vmax.f32 %v2625, 0.0
    %v2778 = vmax.f32 %v2627, 0.0
    %v2779 = vmax.f32 %v2243, 0.0
    %v2780 = vmax.f32 %v2245, 0.0
    %v2781 = vmax.f32 %v2629, 0.0
    %v2782 = vmax.f32 %v2631, 0.0
    %v2783 = vmax.f32 %v2249, 0.0
    %v2784 = vmax.f32 %v2251, 0.0
    %v2785 = vmax.f32 %v2635, 0.0
    %v2786 = vmax.f32 %v2637, 0.0
    %v2787 = vmax.f32 %v2253, 0.0
    %v2788 = vmax.f32 %v2255, 0.0
    %v2789 = vmax.f32 %v2639, 0.0
    %v2790 = vmax.f32 %v2641, 0.0
    %v2791 = vmax.f32 %v2259, 0.0
    %v2792 = vmax.f32 %v2261, 0.0
    %v2793 = vmax.f32 %v2645, 0.0
    %v2794 = vmax.f32 %v2647, 0.0
    %v2795 = vmax.f32 %v2263, 0.0
    %v2796 = vmax.f32 %v2265, 0.0
    %v2797 = vmax.f32 %v2649, 0.0
    %v2798 = vmax.f32 %v2651, 0.0
    %v2799 = vmax.f32 %v2269, 0.0
    %v2800 = vmax.f32 %v2271, 0.0
    %v2801 = vmax.f32 %v2655, 0.0
    %v2802 = vmax.f32 %v2657, 0.0
    %v2803 = vmax.f32 %v2273, 0.0
    %v2804 = vmax.f32 %v2275, 0.0
    %v2805 = vmax.f32 %v2659, 0.0
    %v2806 = vmax.f32 %v2661, 0.0
    %v2807 = vmax.f32 %v2279, 0.0
    %v2808 = vmax.f32 %v2281, 0.0
    %v2809 = vmax.f32 %v2665, 0.0
    %v2810 = vmax.f32 %v2667, 0.0
    %v2811 = vmax.f32 %v2283, 0.0
    %v2812 = vmax.f32 %v2285, 0.0
    %v2813 = vmax.f32 %v2669, 0.0
    %v2814 = vmax.f32 %v2671, 0.0
    %v2815 = vmax.f32 %v2289, 0.0
    %v2816 = vmax.f32 %v2291, 0.0
    %v2817 = vmax.f32 %v2675, 0.0
    %v2818 = vmax.f32 %v2677, 0.0
    %v2819 = vmax.f32 %v2293, 0.0
    %v2820 = vmax.f32 %v2295, 0.0
    %v2821 = vmax.f32 %v2679, 0.0
    %v2822 = vmax.f32 %v2681, 0.0
    %v2823 = vmax.f32 %v2299, 0.0
    %v2824 = vmax.f32 %v2301, 0.0
    %v2825 = vmax.f32 %v2685, 0.0
    %v2826 = vmax.f32 %v2687, 0.0
    %v2827 = vmax.f32 %v2303, 0.0
    %v2828 = vmax.f32 %v2305, 0.0
    %v2829 = vmax.f32 %v2689, 0.0
    %v2830 = vmax.f32 %v2691, 0.0
    %v2831 = vmax.f32 %v2309, 0.0
    %v2832 = vmax.f32 %v2311, 0.0
    %v2833 = vmax.f32 %v2695, 0.0
    %v2834 = vmax.f32 %v2697, 0.0
    %v2835 = vmax.f32 %v2313, 0.0
    %v2836 = vmax.f32 %v2315, 0.0
    %v2837 = vmax.f32 %v2699, 0.0
    %v2838 = vmax.f32 %v2701, 0.0
    %v2839 = vmax.f32 %v2319, 0.0
    %v2840 = vmax.f32 %v2321, 0.0
    %v2841 = vmax.f32 %v2705, 0.0
    %v2842 = vmax.f32 %v2707, 0.0
    %v2843 = vmax.f32 %v2323, 0.0
    %v2844 = vmax.f32 %v2325, 0.0
    %v2845 = vmax.f32 %v2709, 0.0
    %v2846 = vmax.f32 %v2711, 0.0
    %v2847 = vmax.f32 %v2329, 0.0
    %v2848 = vmax.f32 %v2331, 0.0
    %v2849 = vmax.f32 %v2715, 0.0
    %v2850 = vmax.f32 %v2717, 0.0
    %v2851 = vmax.f32 %v2333, 0.0
    %v2852 = vmax.f32 %v2335, 0.0
    %v2853 = vmax.f32 %v2719, 0.0
    %v2854 = vmax.f32 %v2721, 0.0
    %v2855 = vmax.f32 %v2339, 0.0
    %v2856 = vmax.f32 %v2341, 0.0
    %v2857 = vmax.f32 %v2725, 0.0
    %v2858 = vmax.f32 %v2727, 0.0
    %v2859 = vmax.f32 %v2343, 0.0
    %v2860 = vmax.f32 %v2345, 0.0
    %v2861 = vmax.f32 %v2729, 0.0
    %v2862 = vmax.f32 %v2731, 0.0
    %v2863 = vmax.f32 %v2349, 0.0
    %v2864 = vmax.f32 %v2351, 0.0
    %v2865 = vmax.f32 %v2735, 0.0
    %v2866 = vmax.f32 %v2737, 0.0
    %v2867 = vmax.f32 %v2353, 0.0
    %v2868 = vmax.f32 %v2355, 0.0
    %v2869 = vmax.f32 %v2739, 0.0
    %v2870 = vmax.f32 %v2741, 0.0
    %v2871 = vpack.c.bf16 %v2747, %v2743
    %v2872 = vpack.c.bf16 %v2748, %v2744
    %v2873 = vpack.c.bf16 %v2749, %v2745
    %v2874 = vpack.c.bf16 %v2750, %v2746
    %v2875 = vpack.c.bf16 %v2755, %v2751
    %v2876 = vpack.c.bf16 %v2756, %v2752
    %v2877 = vpack.c.bf16 %v2757, %v2753
    %v2878 = vpack.c.bf16 %v2758, %v2754
    %v2879 = vpack.c.bf16 %v2763, %v2759
    %v2880 = vpack.c.bf16 %v2764, %v2760
    %v2881 = vpack.c.bf16 %v2765, %v2761
    %v2882 = vpack.c.bf16 %v2766, %v2762
    %v2883 = vpack.c.bf16 %v2771, %v2767
    %v2884 = vpack.c.bf16 %v2772, %v2768
    %v2885 = vpack.c.bf16 %v2773, %v2769
    %v2886 = vpack.c.bf16 %v2774, %v2770
    %v2887 = vpack.c.bf16 %v2779, %v2775
    %v2888 = vpack.c.bf16 %v2780, %v2776
    %v2889 = vpack.c.bf16 %v2781, %v2777
    %v2890 = vpack.c.bf16 %v2782, %v2778
    %v2891 = vpack.c.bf16 %v2787, %v2783
    %v2892 = vpack.c.bf16 %v2788, %v2784
    %v2893 = vpack.c.bf16 %v2789, %v2785
    %v2894 = vpack.c.bf16 %v2790, %v2786
    %v2895 = vpack.c.bf16 %v2795, %v2791
    %v2896 = vpack.c.bf16 %v2796, %v2792
    %v2897 = vpack.c.bf16 %v2797, %v2793
    %v2898 = vpack.c.bf16 %v2798, %v2794
    %v2899 = vpack.c.bf16 %v2803, %v2799
    %v2900 = vpack.c.bf16 %v2804, %v2800
    %v2901 = vpack.c.bf16 %v2805, %v2801
    %v2902 = vpack.c.bf16 %v2806, %v2802
    %v2903 = vpack.c.bf16 %v2811, %v2807
    %v2904 = vpack.c.bf16 %v2812, %v2808
    %v2905 = vpack.c.bf16 %v2813, %v2809
    %v2906 = vpack.c.bf16 %v2814, %v2810
    %v2907 = vpack.c.bf16 %v2819, %v2815
    %v2908 = vpack.c.bf16 %v2820, %v2816
    %v2909 = vpack.c.bf16 %v2821, %v2817
    %v2910 = vpack.c.bf16 %v2822, %v2818
    %v2911 = vpack.c.bf16 %v2827, %v2823
    %v2912 = vpack.c.bf16 %v2828, %v2824
    %v2913 = vpack.c.bf16 %v2829, %v2825
    %v2914 = vpack.c.bf16 %v2830, %v2826
    %v2915 = vpack.c.bf16 %v2835, %v2831
    %v2916 = vpack.c.bf16 %v2836, %v2832
    %v2917 = vpack.c.bf16 %v2837, %v2833
    %v2918 = vpack.c.bf16 %v2838, %v2834
    %v2919 = vpack.c.bf16 %v2843, %v2839
    %v2920 = vpack.c.bf16 %v2844, %v2840
    %v2921 = vpack.c.bf16 %v2845, %v2841
    %v2922 = vpack.c.bf16 %v2846, %v2842
    %v2923 = vpack.c.bf16 %v2851, %v2847
    %v2924 = vpack.c.bf16 %v2852, %v2848
    %v2925 = vpack.c.bf16 %v2853, %v2849
    %v2926 = vpack.c.bf16 %v2854, %v2850
    %v2927 = vpack.c.bf16 %v2859, %v2855
    %v2928 = vpack.c.bf16 %v2860, %v2856
    %v2929 = vpack.c.bf16 %v2861, %v2857
    %v2930 = vpack.c.bf16 %v2862, %v2858
    %v2931 = vpack.c.bf16 %v2867, %v2863
    %v2932 = vpack.c.bf16 %v2868, %v2864
    %v2933 = vpack.c.bf16 %v2869, %v2865
    %v2934 = vpack.c.bf16 %v2870, %v2866
    %v2935 = vld [vmem:[#allocation4] sm:$0xff]
    %v2936 = vld [vmem:[#allocation4 + $0x8] sm:$0xff]
    %v2937 = vld [vmem:[#allocation4 + $0x10] sm:$0xff]
    %v2938 = vld [vmem:[#allocation4 + $0x18] sm:$0xff]
    %v2939 = vld [vmem:[#allocation4 + $0x20] sm:$0xff]
    %v2940 = vld [vmem:[#allocation4 + $0x28] sm:$0xff]
    %v2941 = vld [vmem:[#allocation4 + $0x30] sm:$0xff]
    %v2942 = vld [vmem:[#allocation4 + $0x38] sm:$0xff]
    %v2943 = vld [vmem:[#allocation4 + $0x40] sm:$0xff]
    %v2944 = vld [vmem:[#allocation4 + $0x48] sm:$0xff]
    %v2945 = vld [vmem:[#allocation4 + $0x50] sm:$0xff]
    %v2946 = vld [vmem:[#allocation4 + $0x58] sm:$0xff]
    %v2947 = vld [vmem:[#allocation4 + $0x60] sm:$0xff]
    %v2948 = vld [vmem:[#allocation4 + $0x68] sm:$0xff]
    %v2949 = vld [vmem:[#allocation4 + $0x70] sm:$0xff]
    %v2950 = vld [vmem:[#allocation4 + $0x78] sm:$0xff]
    %v2951 = vld [vmem:[#allocation4 + $0x80] sm:$0xff]
    %v2952 = vld [vmem:[#allocation4 + $0x88] sm:$0xff]
    %v2953 = vld [vmem:[#allocation4 + $0x90] sm:$0xff]
    %v2954 = vld [vmem:[#allocation4 + $0x98] sm:$0xff]
    %v2955 = vld [vmem:[#allocation4 + $0xa0] sm:$0xff]
    %v2956 = vld [vmem:[#allocation4 + $0xa8] sm:$0xff]
    %v2957 = vld [vmem:[#allocation4 + $0xb0] sm:$0xff]
    %v2958 = vld [vmem:[#allocation4 + $0xb8] sm:$0xff]
    %v2959 = vld [vmem:[#allocation4 + $0xc0] sm:$0xff]
    %v2960 = vld [vmem:[#allocation4 + $0xc8] sm:$0xff]
    %v2961 = vld [vmem:[#allocation4 + $0xd0] sm:$0xff]
    %v2962 = vld [vmem:[#allocation4 + $0xd8] sm:$0xff]
    %v2963 = vld [vmem:[#allocation4 + $0xe0] sm:$0xff]
    %v2964 = vld [vmem:[#allocation4 + $0xe8] sm:$0xff]
    %v2965 = vld [vmem:[#allocation4 + $0xf0] sm:$0xff]
    %v2966 = vld [vmem:[#allocation4 + $0xf8] sm:$0xff]
    %v2967 = vld [vmem:[#allocation4 + $0x100] sm:$0xff]
    %v2968 = vld [vmem:[#allocation4 + $0x108] sm:$0xff]
    %v2969 = vld [vmem:[#allocation4 + $0x110] sm:$0xff]
    %v2970 = vld [vmem:[#allocation4 + $0x118] sm:$0xff]
    %v2971 = vld [vmem:[#allocation4 + $0x120] sm:$0xff]
    %v2972 = vld [vmem:[#allocation4 + $0x128] sm:$0xff]
    %v2973 = vld [vmem:[#allocation4 + $0x130] sm:$0xff]
    %v2974 = vld [vmem:[#allocation4 + $0x138] sm:$0xff]
    %v2975 = vld [vmem:[#allocation4 + $0x140] sm:$0xff]
    %v2976 = vld [vmem:[#allocation4 + $0x148] sm:$0xff]
    %v2977 = vld [vmem:[#allocation4 + $0x150] sm:$0xff]
    %v2978 = vld [vmem:[#allocation4 + $0x158] sm:$0xff]
    %v2979 = vld [vmem:[#allocation4 + $0x160] sm:$0xff]
    %v2980 = vld [vmem:[#allocation4 + $0x168] sm:$0xff]
    %v2981 = vld [vmem:[#allocation4 + $0x170] sm:$0xff]
    %v2982 = vld [vmem:[#allocation4 + $0x178] sm:$0xff]
    %v2983 = vld [vmem:[#allocation4 + $0x180] sm:$0xff]
    %v2984 = vld [vmem:[#allocation4 + $0x188] sm:$0xff]
    %v2985 = vld [vmem:[#allocation4 + $0x190] sm:$0xff]
    %v2986 = vld [vmem:[#allocation4 + $0x198] sm:$0xff]
    %v2987 = vld [vmem:[#allocation4 + $0x1a0] sm:$0xff]
    %v2988 = vld [vmem:[#allocation4 + $0x1a8] sm:$0xff]
    %v2989 = vld [vmem:[#allocation4 + $0x1b0] sm:$0xff]
    %v2990 = vld [vmem:[#allocation4 + $0x1b8] sm:$0xff]
    %v2991 = vld [vmem:[#allocation4 + $0x1c0] sm:$0xff]
    %v2992 = vld [vmem:[#allocation4 + $0x1c8] sm:$0xff]
    %v2993 = vld [vmem:[#allocation4 + $0x1d0] sm:$0xff]
    %v2994 = vld [vmem:[#allocation4 + $0x1d8] sm:$0xff]
    %v2995 = vld [vmem:[#allocation4 + $0x1e0] sm:$0xff]
    %v2996 = vld [vmem:[#allocation4 + $0x1e8] sm:$0xff]
    %v2997 = vld [vmem:[#allocation4 + $0x1f0] sm:$0xff]
    %v2998 = vld [vmem:[#allocation4 + $0x1f8] sm:$0xff]
    %v2999 = vld [vmem:[#allocation4 + $0x200] sm:$0xff]
    %v3000 = vld [vmem:[#allocation4 + $0x208] sm:$0xff]
    %v3001 = vld [vmem:[#allocation4 + $0x210] sm:$0xff]
    %v3002 = vld [vmem:[#allocation4 + $0x218] sm:$0xff]
    %v3003 = vld [vmem:[#allocation4 + $0x220] sm:$0xff]
    %v3004 = vld [vmem:[#allocation4 + $0x228] sm:$0xff]
    %v3005 = vld [vmem:[#allocation4 + $0x230] sm:$0xff]
    %v3006 = vld [vmem:[#allocation4 + $0x238] sm:$0xff]
    %v3007 = vld [vmem:[#allocation4 + $0x240] sm:$0xff]
    %v3008 = vld [vmem:[#allocation4 + $0x248] sm:$0xff]
    %v3009 = vld [vmem:[#allocation4 + $0x250] sm:$0xff]
    %v3010 = vld [vmem:[#allocation4 + $0x258] sm:$0xff]
    %v3011 = vld [vmem:[#allocation4 + $0x260] sm:$0xff]
    %v3012 = vld [vmem:[#allocation4 + $0x268] sm:$0xff]
    %v3013 = vld [vmem:[#allocation4 + $0x270] sm:$0xff]
    %v3014 = vld [vmem:[#allocation4 + $0x278] sm:$0xff]
    %v3015 = vld [vmem:[#allocation4 + $0x280] sm:$0xff]
    %v3016 = vld [vmem:[#allocation4 + $0x288] sm:$0xff]
    %v3017 = vld [vmem:[#allocation4 + $0x290] sm:$0xff]
    %v3018 = vld [vmem:[#allocation4 + $0x298] sm:$0xff]
    %v3019 = vld [vmem:[#allocation4 + $0x2a0] sm:$0xff]
    %v3020 = vld [vmem:[#allocation4 + $0x2a8] sm:$0xff]
    %v3021 = vld [vmem:[#allocation4 + $0x2b0] sm:$0xff]
    %v3022 = vld [vmem:[#allocation4 + $0x2b8] sm:$0xff]
    %v3023 = vld [vmem:[#allocation4 + $0x2c0] sm:$0xff]
    %v3024 = vld [vmem:[#allocation4 + $0x2c8] sm:$0xff]
    %v3025 = vld [vmem:[#allocation4 + $0x2d0] sm:$0xff]
    %v3026 = vld [vmem:[#allocation4 + $0x2d8] sm:$0xff]
    %v3027 = vld [vmem:[#allocation4 + $0x2e0] sm:$0xff]
    %v3028 = vld [vmem:[#allocation4 + $0x2e8] sm:$0xff]
    %v3029 = vld [vmem:[#allocation4 + $0x2f0] sm:$0xff]
    %v3030 = vld [vmem:[#allocation4 + $0x2f8] sm:$0xff]
    %v3031 = vld [vmem:[#allocation4 + $0x300] sm:$0xff]
    %v3032 = vld [vmem:[#allocation4 + $0x308] sm:$0xff]
    %v3033 = vld [vmem:[#allocation4 + $0x310] sm:$0xff]
    %v3034 = vld [vmem:[#allocation4 + $0x318] sm:$0xff]
    %v3035 = vld [vmem:[#allocation4 + $0x320] sm:$0xff]
    %v3036 = vld [vmem:[#allocation4 + $0x328] sm:$0xff]
    %v3037 = vld [vmem:[#allocation4 + $0x330] sm:$0xff]
    %v3038 = vld [vmem:[#allocation4 + $0x338] sm:$0xff]
    %v3039 = vld [vmem:[#allocation4 + $0x340] sm:$0xff]
    %v3040 = vld [vmem:[#allocation4 + $0x348] sm:$0xff]
    %v3041 = vld [vmem:[#allocation4 + $0x350] sm:$0xff]
    %v3042 = vld [vmem:[#allocation4 + $0x358] sm:$0xff]
    %v3043 = vld [vmem:[#allocation4 + $0x360] sm:$0xff]
    %v3044 = vld [vmem:[#allocation4 + $0x368] sm:$0xff]
    %v3045 = vld [vmem:[#allocation4 + $0x370] sm:$0xff]
    %v3046 = vld [vmem:[#allocation4 + $0x378] sm:$0xff]
    %v3047 = vld [vmem:[#allocation4 + $0x380] sm:$0xff]
    %v3048 = vld [vmem:[#allocation4 + $0x388] sm:$0xff]
    %v3049 = vld [vmem:[#allocation4 + $0x390] sm:$0xff]
    %v3050 = vld [vmem:[#allocation4 + $0x398] sm:$0xff]
    %v3051 = vld [vmem:[#allocation4 + $0x3a0] sm:$0xff]
    %v3052 = vld [vmem:[#allocation4 + $0x3a8] sm:$0xff]
    %v3053 = vld [vmem:[#allocation4 + $0x3b0] sm:$0xff]
    %v3054 = vld [vmem:[#allocation4 + $0x3b8] sm:$0xff]
    %v3055 = vld [vmem:[#allocation4 + $0x3c0] sm:$0xff]
    %v3056 = vld [vmem:[#allocation4 + $0x3c8] sm:$0xff]
    %v3057 = vld [vmem:[#allocation4 + $0x3d0] sm:$0xff]
    %v3058 = vld [vmem:[#allocation4 + $0x3d8] sm:$0xff]
    %v3059 = vld [vmem:[#allocation4 + $0x3e0] sm:$0xff]
    %v3060 = vld [vmem:[#allocation4 + $0x3e8] sm:$0xff]
    %v3061 = vld [vmem:[#allocation4 + $0x3f0] sm:$0xff]
    %v3062 = vld [vmem:[#allocation4 + $0x3f8] sm:$0xff]
    %v3063 = vld [vmem:[%s6] sm:$0xf]
    %v3065 = vlaneseq
    %v3066 = vshrl.u32 %v3065, 7
    %v3067 = vsub.s32 0, %v3066
    %v3068 = vrot.slane %v3063, %v3067
    %v3069 = vlaneseq
    %v3070 = vshrl.u32 %v3069, 7
    %v3071 = vsub.s32 1, %v3070
    %v3072 = vrot.slane %v3063, %v3071
    %v3073 = vlaneseq
    %v3074 = vshrl.u32 %v3073, 7
    %v3075 = vsub.s32 2, %v3074
    %v3076 = vrot.slane %v3063, %v3075
    %v3077 = vlaneseq
    %v3078 = vshrl.u32 %v3077, 7
    %v3079 = vsub.s32 3, %v3078
    %v3080 = vrot.slane %v3063, %v3079
    %v3213 = vunpack.c.l.b16 %v2935
    %v3214 = vunpack.c.h.b16 %v2935
    %v3215 = vunpack.c.l.b16 %v2936
    %v3216 = vunpack.c.h.b16 %v2936
    %v3217 = vunpack.c.l.b16 %v2937
    %v3218 = vunpack.c.h.b16 %v2937
    %v3219 = vunpack.c.l.b16 %v2938
    %v3220 = vunpack.c.h.b16 %v2938
    %v3221 = vunpack.c.l.b16 %v2939
    %v3222 = vunpack.c.h.b16 %v2939
    %v3223 = vunpack.c.l.b16 %v2940
    %v3224 = vunpack.c.h.b16 %v2940
    %v3225 = vunpack.c.l.b16 %v2941
    %v3226 = vunpack.c.h.b16 %v2941
    %v3227 = vunpack.c.l.b16 %v2942
    %v3228 = vunpack.c.h.b16 %v2942
    %v3229 = vunpack.c.l.b16 %v2943
    %v3230 = vunpack.c.h.b16 %v2943
    %v3231 = vunpack.c.l.b16 %v2944
    %v3232 = vunpack.c.h.b16 %v2944
    %v3233 = vunpack.c.l.b16 %v2945
    %v3234 = vunpack.c.h.b16 %v2945
    %v3235 = vunpack.c.l.b16 %v2946
    %v3236 = vunpack.c.h.b16 %v2946
    %v3237 = vunpack.c.l.b16 %v2947
    %v3238 = vunpack.c.h.b16 %v2947
    %v3239 = vunpack.c.l.b16 %v2948
    %v3240 = vunpack.c.h.b16 %v2948
    %v3241 = vunpack.c.l.b16 %v2949
    %v3242 = vunpack.c.h.b16 %v2949
    %v3243 = vunpack.c.l.b16 %v2950
    %v3244 = vunpack.c.h.b16 %v2950
    %v3245 = vunpack.c.l.b16 %v2951
    %v3246 = vunpack.c.h.b16 %v2951
    %v3247 = vunpack.c.l.b16 %v2952
    %v3248 = vunpack.c.h.b16 %v2952
    %v3249 = vunpack.c.l.b16 %v2953
    %v3250 = vunpack.c.h.b16 %v2953
    %v3251 = vunpack.c.l.b16 %v2954
    %v3252 = vunpack.c.h.b16 %v2954
    %v3253 = vunpack.c.l.b16 %v2955
    %v3254 = vunpack.c.h.b16 %v2955
    %v3255 = vunpack.c.l.b16 %v2956
    %v3256 = vunpack.c.h.b16 %v2956
    %v3257 = vunpack.c.l.b16 %v2957
    %v3258 = vunpack.c.h.b16 %v2957
    %v3259 = vunpack.c.l.b16 %v2958
    %v3260 = vunpack.c.h.b16 %v2958
    %v3261 = vunpack.c.l.b16 %v2959
    %v3262 = vunpack.c.h.b16 %v2959
    %v3263 = vunpack.c.l.b16 %v2960
    %v3264 = vunpack.c.h.b16 %v2960
    %v3265 = vunpack.c.l.b16 %v2961
    %v3266 = vunpack.c.h.b16 %v2961
    %v3267 = vunpack.c.l.b16 %v2962
    %v3268 = vunpack.c.h.b16 %v2962
    %v3269 = vunpack.c.l.b16 %v2963
    %v3270 = vunpack.c.h.b16 %v2963
    %v3271 = vunpack.c.l.b16 %v2964
    %v3272 = vunpack.c.h.b16 %v2964
    %v3273 = vunpack.c.l.b16 %v2965
    %v3274 = vunpack.c.h.b16 %v2965
    %v3275 = vunpack.c.l.b16 %v2966
    %v3276 = vunpack.c.h.b16 %v2966
    %v3277 = vunpack.c.l.b16 %v2967
    %v3278 = vunpack.c.h.b16 %v2967
    %v3279 = vunpack.c.l.b16 %v2968
    %v3280 = vunpack.c.h.b16 %v2968
    %v3281 = vunpack.c.l.b16 %v2969
    %v3282 = vunpack.c.h.b16 %v2969
    %v3283 = vunpack.c.l.b16 %v2970
    %v3284 = vunpack.c.h.b16 %v2970
    %v3285 = vunpack.c.l.b16 %v2971
    %v3286 = vunpack.c.h.b16 %v2971
    %v3287 = vunpack.c.l.b16 %v2972
    %v3288 = vunpack.c.h.b16 %v2972
    %v3289 = vunpack.c.l.b16 %v2973
    %v3290 = vunpack.c.h.b16 %v2973
    %v3291 = vunpack.c.l.b16 %v2974
    %v3292 = vunpack.c.h.b16 %v2974
    %v3293 = vunpack.c.l.b16 %v2975
    %v3294 = vunpack.c.h.b16 %v2975
    %v3295 = vunpack.c.l.b16 %v2976
    %v3296 = vunpack.c.h.b16 %v2976
    %v3297 = vunpack.c.l.b16 %v2977
    %v3298 = vunpack.c.h.b16 %v2977
    %v3299 = vunpack.c.l.b16 %v2978
    %v3300 = vunpack.c.h.b16 %v2978
    %v3301 = vunpack.c.l.b16 %v2979
    %v3302 = vunpack.c.h.b16 %v2979
    %v3303 = vunpack.c.l.b16 %v2980
    %v3304 = vunpack.c.h.b16 %v2980
    %v3305 = vunpack.c.l.b16 %v2981
    %v3306 = vunpack.c.h.b16 %v2981
    %v3307 = vunpack.c.l.b16 %v2982
    %v3308 = vunpack.c.h.b16 %v2982
    %v3309 = vunpack.c.l.b16 %v2983
    %v3310 = vunpack.c.h.b16 %v2983
    %v3311 = vunpack.c.l.b16 %v2984
    %v3312 = vunpack.c.h.b16 %v2984
    %v3313 = vunpack.c.l.b16 %v2985
    %v3314 = vunpack.c.h.b16 %v2985
    %v3315 = vunpack.c.l.b16 %v2986
    %v3316 = vunpack.c.h.b16 %v2986
    %v3317 = vunpack.c.l.b16 %v2987
    %v3318 = vunpack.c.h.b16 %v2987
    %v3319 = vunpack.c.l.b16 %v2988
    %v3320 = vunpack.c.h.b16 %v2988
    %v3321 = vunpack.c.l.b16 %v2989
    %v3322 = vunpack.c.h.b16 %v2989
    %v3323 = vunpack.c.l.b16 %v2990
    %v3324 = vunpack.c.h.b16 %v2990
    %v3325 = vunpack.c.l.b16 %v2991
    %v3326 = vunpack.c.h.b16 %v2991
    %v3327 = vunpack.c.l.b16 %v2992
    %v3328 = vunpack.c.h.b16 %v2992
    %v3329 = vunpack.c.l.b16 %v2993
    %v3330 = vunpack.c.h.b16 %v2993
    %v3331 = vunpack.c.l.b16 %v2994
    %v3332 = vunpack.c.h.b16 %v2994
    %v3333 = vunpack.c.l.b16 %v2995
    %v3334 = vunpack.c.h.b16 %v2995
    %v3335 = vunpack.c.l.b16 %v2996
    %v3336 = vunpack.c.h.b16 %v2996
    %v3337 = vunpack.c.l.b16 %v2997
    %v3338 = vunpack.c.h.b16 %v2997
    %v3339 = vunpack.c.l.b16 %v2998
    %v3340 = vunpack.c.h.b16 %v2998
    %v3341 = vunpack.c.l.b16 %v2999
    %v3342 = vunpack.c.h.b16 %v2999
    %v3343 = vunpack.c.l.b16 %v3000
    %v3344 = vunpack.c.h.b16 %v3000
    %v3345 = vunpack.c.l.b16 %v3001
    %v3346 = vunpack.c.h.b16 %v3001
    %v3347 = vunpack.c.l.b16 %v3002
    %v3348 = vunpack.c.h.b16 %v3002
    %v3349 = vunpack.c.l.b16 %v3003
    %v3350 = vunpack.c.h.b16 %v3003
    %v3351 = vunpack.c.l.b16 %v3004
    %v3352 = vunpack.c.h.b16 %v3004
    %v3353 = vunpack.c.l.b16 %v3005
    %v3354 = vunpack.c.h.b16 %v3005
    %v3355 = vunpack.c.l.b16 %v3006
    %v3356 = vunpack.c.h.b16 %v3006
    %v3357 = vunpack.c.l.b16 %v3007
    %v3358 = vunpack.c.h.b16 %v3007
    %v3359 = vunpack.c.l.b16 %v3008
    %v3360 = vunpack.c.h.b16 %v3008
    %v3361 = vunpack.c.l.b16 %v3009
    %v3362 = vunpack.c.h.b16 %v3009
    %v3363 = vunpack.c.l.b16 %v3010
    %v3364 = vunpack.c.h.b16 %v3010
    %v3365 = vunpack.c.l.b16 %v3011
    %v3366 = vunpack.c.h.b16 %v3011
    %v3367 = vunpack.c.l.b16 %v3012
    %v3368 = vunpack.c.h.b16 %v3012
    %v3369 = vunpack.c.l.b16 %v3013
    %v3370 = vunpack.c.h.b16 %v3013
    %v3371 = vunpack.c.l.b16 %v3014
    %v3372 = vunpack.c.h.b16 %v3014
    %v3373 = vunpack.c.l.b16 %v3015
    %v3374 = vunpack.c.h.b16 %v3015
    %v3375 = vunpack.c.l.b16 %v3016
    %v3376 = vunpack.c.h.b16 %v3016
    %v3377 = vunpack.c.l.b16 %v3017
    %v3378 = vunpack.c.h.b16 %v3017
    %v3379 = vunpack.c.l.b16 %v3018
    %v3380 = vunpack.c.h.b16 %v3018
    %v3381 = vunpack.c.l.b16 %v3019
    %v3382 = vunpack.c.h.b16 %v3019
    %v3383 = vunpack.c.l.b16 %v3020
    %v3384 = vunpack.c.h.b16 %v3020
    %v3385 = vunpack.c.l.b16 %v3021
    %v3386 = vunpack.c.h.b16 %v3021
    %v3387 = vunpack.c.l.b16 %v3022
    %v3388 = vunpack.c.h.b16 %v3022
    %v3389 = vunpack.c.l.b16 %v3023
    %v3390 = vunpack.c.h.b16 %v3023
    %v3391 = vunpack.c.l.b16 %v3024
    %v3392 = vunpack.c.h.b16 %v3024
    %v3393 = vunpack.c.l.b16 %v3025
    %v3394 = vunpack.c.h.b16 %v3025
    %v3395 = vunpack.c.l.b16 %v3026
    %v3396 = vunpack.c.h.b16 %v3026
    %v3397 = vunpack.c.l.b16 %v3027
    %v3398 = vunpack.c.h.b16 %v3027
    %v3399 = vunpack.c.l.b16 %v3028
    %v3400 = vunpack.c.h.b16 %v3028
    %v3401 = vunpack.c.l.b16 %v3029
    %v3402 = vunpack.c.h.b16 %v3029
    %v3403 = vunpack.c.l.b16 %v3030
    %v3404 = vunpack.c.h.b16 %v3030
    %v3405 = vunpack.c.l.b16 %v3031
    %v3406 = vunpack.c.h.b16 %v3031
    %v3407 = vunpack.c.l.b16 %v3032
    %v3408 = vunpack.c.h.b16 %v3032
    %v3409 = vunpack.c.l.b16 %v3033
    %v3410 = vunpack.c.h.b16 %v3033
    %v3411 = vunpack.c.l.b16 %v3034
    %v3412 = vunpack.c.h.b16 %v3034
    %v3413 = vunpack.c.l.b16 %v3035
    %v3414 = vunpack.c.h.b16 %v3035
    %v3415 = vunpack.c.l.b16 %v3036
    %v3416 = vunpack.c.h.b16 %v3036
    %v3417 = vunpack.c.l.b16 %v3037
    %v3418 = vunpack.c.h.b16 %v3037
    %v3419 = vunpack.c.l.b16 %v3038
    %v3420 = vunpack.c.h.b16 %v3038
    %v3421 = vunpack.c.l.b16 %v3039
    %v3422 = vunpack.c.h.b16 %v3039
    %v3423 = vunpack.c.l.b16 %v3040
    %v3424 = vunpack.c.h.b16 %v3040
    %v3425 = vunpack.c.l.b16 %v3041
    %v3426 = vunpack.c.h.b16 %v3041
    %v3427 = vunpack.c.l.b16 %v3042
    %v3428 = vunpack.c.h.b16 %v3042
    %v3429 = vunpack.c.l.b16 %v3043
    %v3430 = vunpack.c.h.b16 %v3043
    %v3431 = vunpack.c.l.b16 %v3044
    %v3432 = vunpack.c.h.b16 %v3044
    %v3433 = vunpack.c.l.b16 %v3045
    %v3434 = vunpack.c.h.b16 %v3045
    %v3435 = vunpack.c.l.b16 %v3046
    %v3436 = vunpack.c.h.b16 %v3046
    %v3437 = vunpack.c.l.b16 %v3047
    %v3438 = vunpack.c.h.b16 %v3047
    %v3439 = vunpack.c.l.b16 %v3048
    %v3440 = vunpack.c.h.b16 %v3048
    %v3441 = vunpack.c.l.b16 %v3049
    %v3442 = vunpack.c.h.b16 %v3049
    %v3443 = vunpack.c.l.b16 %v3050
    %v3444 = vunpack.c.h.b16 %v3050
    %v3445 = vunpack.c.l.b16 %v3051
    %v3446 = vunpack.c.h.b16 %v3051
    %v3447 = vunpack.c.l.b16 %v3052
    %v3448 = vunpack.c.h.b16 %v3052
    %v3449 = vunpack.c.l.b16 %v3053
    %v3450 = vunpack.c.h.b16 %v3053
    %v3451 = vunpack.c.l.b16 %v3054
    %v3452 = vunpack.c.h.b16 %v3054
    %v3453 = vunpack.c.l.b16 %v3055
    %v3454 = vunpack.c.h.b16 %v3055
    %v3455 = vunpack.c.l.b16 %v3056
    %v3456 = vunpack.c.h.b16 %v3056
    %v3457 = vunpack.c.l.b16 %v3057
    %v3458 = vunpack.c.h.b16 %v3057
    %v3459 = vunpack.c.l.b16 %v3058
    %v3460 = vunpack.c.h.b16 %v3058
    %v3461 = vunpack.c.l.b16 %v3059
    %v3462 = vunpack.c.h.b16 %v3059
    %v3463 = vunpack.c.l.b16 %v3060
    %v3464 = vunpack.c.h.b16 %v3060
    %v3465 = vunpack.c.l.b16 %v3061
    %v3466 = vunpack.c.h.b16 %v3061
    %v3467 = vunpack.c.l.b16 %v3062
    %v3468 = vunpack.c.h.b16 %v3062
    %v3469 = vpack.c.b16 %v3217, %v3213
    %v3470 = vpack.c.b16 %v3218, %v3214
    %v3471 = vpack.c.b16 %v3219, %v3215
    %v3472 = vpack.c.b16 %v3220, %v3216
    %v3473 = vpack.c.b16 %v3225, %v3221
    %v3474 = vpack.c.b16 %v3226, %v3222
    %v3475 = vpack.c.b16 %v3227, %v3223
    %v3476 = vpack.c.b16 %v3228, %v3224
    %v3477 = vpack.c.b16 %v3233, %v3229
    %v3478 = vpack.c.b16 %v3234, %v3230
    %v3479 = vpack.c.b16 %v3235, %v3231
    %v3480 = vpack.c.b16 %v3236, %v3232
    %v3481 = vpack.c.b16 %v3241, %v3237
    %v3482 = vpack.c.b16 %v3242, %v3238
    %v3483 = vpack.c.b16 %v3243, %v3239
    %v3484 = vpack.c.b16 %v3244, %v3240
    %v3485 = vpack.c.b16 %v3249, %v3245
    %v3486 = vpack.c.b16 %v3250, %v3246
    %v3487 = vpack.c.b16 %v3251, %v3247
    %v3488 = vpack.c.b16 %v3252, %v3248
    %v3489 = vpack.c.b16 %v3257, %v3253
    %v3490 = vpack.c.b16 %v3258, %v3254
    %v3491 = vpack.c.b16 %v3259, %v3255
    %v3492 = vpack.c.b16 %v3260, %v3256
    %v3493 = vpack.c.b16 %v3265, %v3261
    %v3494 = vpack.c.b16 %v3266, %v3262
    %v3495 = vpack.c.b16 %v3267, %v3263
    %v3496 = vpack.c.b16 %v3268, %v3264
    %v3497 = vpack.c.b16 %v3273, %v3269
    %v3498 = vpack.c.b16 %v3274, %v3270
    %v3499 = vpack.c.b16 %v3275, %v3271
    %v3500 = vpack.c.b16 %v3276, %v3272
    %v3501 = vpack.c.b16 %v3281, %v3277
    %v3502 = vpack.c.b16 %v3282, %v3278
    %v3503 = vpack.c.b16 %v3283, %v3279
    %v3504 = vpack.c.b16 %v3284, %v3280
    %v3505 = vpack.c.b16 %v3289, %v3285
    %v3506 = vpack.c.b16 %v3290, %v3286
    %v3507 = vpack.c.b16 %v3291, %v3287
    %v3508 = vpack.c.b16 %v3292, %v3288
    %v3509 = vpack.c.b16 %v3297, %v3293
    %v3510 = vpack.c.b16 %v3298, %v3294
    %v3511 = vpack.c.b16 %v3299, %v3295
    %v3512 = vpack.c.b16 %v3300, %v3296
    %v3513 = vpack.c.b16 %v3305, %v3301
    %v3514 = vpack.c.b16 %v3306, %v3302
    %v3515 = vpack.c.b16 %v3307, %v3303
    %v3516 = vpack.c.b16 %v3308, %v3304
    %v3517 = vpack.c.b16 %v3313, %v3309
    %v3518 = vpack.c.b16 %v3314, %v3310
    %v3519 = vpack.c.b16 %v3315, %v3311
    %v3520 = vpack.c.b16 %v3316, %v3312
    %v3521 = vpack.c.b16 %v3321, %v3317
    %v3522 = vpack.c.b16 %v3322, %v3318
    %v3523 = vpack.c.b16 %v3323, %v3319
    %v3524 = vpack.c.b16 %v3324, %v3320
    %v3525 = vpack.c.b16 %v3329, %v3325
    %v3526 = vpack.c.b16 %v3330, %v3326
    %v3527 = vpack.c.b16 %v3331, %v3327
    %v3528 = vpack.c.b16 %v3332, %v3328
    %v3529 = vpack.c.b16 %v3337, %v3333
    %v3530 = vpack.c.b16 %v3338, %v3334
    %v3531 = vpack.c.b16 %v3339, %v3335
    %v3532 = vpack.c.b16 %v3340, %v3336
    %v3533 = vpack.c.b16 %v3345, %v3341
    %v3534 = vpack.c.b16 %v3346, %v3342
    %v3535 = vpack.c.b16 %v3347, %v3343
    %v3536 = vpack.c.b16 %v3348, %v3344
    %v3537 = vpack.c.b16 %v3353, %v3349
    %v3538 = vpack.c.b16 %v3354, %v3350
    %v3539 = vpack.c.b16 %v3355, %v3351
    %v3540 = vpack.c.b16 %v3356, %v3352
    %v3541 = vpack.c.b16 %v3361, %v3357
    %v3542 = vpack.c.b16 %v3362, %v3358
    %v3543 = vpack.c.b16 %v3363, %v3359
    %v3544 = vpack.c.b16 %v3364, %v3360
    %v3545 = vpack.c.b16 %v3369, %v3365
    %v3546 = vpack.c.b16 %v3370, %v3366
    %v3547 = vpack.c.b16 %v3371, %v3367
    %v3548 = vpack.c.b16 %v3372, %v3368
    %v3549 = vpack.c.b16 %v3377, %v3373
    %v3550 = vpack.c.b16 %v3378, %v3374
    %v3551 = vpack.c.b16 %v3379, %v3375
    %v3552 = vpack.c.b16 %v3380, %v3376
    %v3553 = vpack.c.b16 %v3385, %v3381
    %v3554 = vpack.c.b16 %v3386, %v3382
    %v3555 = vpack.c.b16 %v3387, %v3383
    %v3556 = vpack.c.b16 %v3388, %v3384
    %v3557 = vpack.c.b16 %v3393, %v3389
    %v3558 = vpack.c.b16 %v3394, %v3390
    %v3559 = vpack.c.b16 %v3395, %v3391
    %v3560 = vpack.c.b16 %v3396, %v3392
    %v3561 = vpack.c.b16 %v3401, %v3397
    %v3562 = vpack.c.b16 %v3402, %v3398
    %v3563 = vpack.c.b16 %v3403, %v3399
    %v3564 = vpack.c.b16 %v3404, %v3400
    %v3565 = vpack.c.b16 %v3409, %v3405
    %v3566 = vpack.c.b16 %v3410, %v3406
    %v3567 = vpack.c.b16 %v3411, %v3407
    %v3568 = vpack.c.b16 %v3412, %v3408
    %v3569 = vpack.c.b16 %v3417, %v3413
    %v3570 = vpack.c.b16 %v3418, %v3414
    %v3571 = vpack.c.b16 %v3419, %v3415
    %v3572 = vpack.c.b16 %v3420, %v3416
    %v3573 = vpack.c.b16 %v3425, %v3421
    %v3574 = vpack.c.b16 %v3426, %v3422
    %v3575 = vpack.c.b16 %v3427, %v3423
    %v3576 = vpack.c.b16 %v3428, %v3424
    %v3577 = vpack.c.b16 %v3433, %v3429
    %v3578 = vpack.c.b16 %v3434, %v3430
    %v3579 = vpack.c.b16 %v3435, %v3431
    %v3580 = vpack.c.b16 %v3436, %v3432
    %v3581 = vpack.c.b16 %v3441, %v3437
    %v3582 = vpack.c.b16 %v3442, %v3438
    %v3583 = vpack.c.b16 %v3443, %v3439
    %v3584 = vpack.c.b16 %v3444, %v3440
    %v3585 = vpack.c.b16 %v3449, %v3445
    %v3586 = vpack.c.b16 %v3450, %v3446
    %v3587 = vpack.c.b16 %v3451, %v3447
    %v3588 = vpack.c.b16 %v3452, %v3448
    %v3589 = vpack.c.b16 %v3457, %v3453
    %v3590 = vpack.c.b16 %v3458, %v3454
    %v3591 = vpack.c.b16 %v3459, %v3455
    %v3592 = vpack.c.b16 %v3460, %v3456
    %v3593 = vpack.c.b16 %v3465, %v3461
    %v3594 = vpack.c.b16 %v3466, %v3462
    %v3595 = vpack.c.b16 %v3467, %v3463
    %v3596 = vpack.c.b16 %v3468, %v3464
    %3725 = vmatprep.subr.bf16.mxu0 %v3470
    %3726 = vmatpush1.bf16.msra.mxu0 %v3469
    %3727 = vmatprep.subr.bf16.mxu0 %v3474
    %3728 = vmatpush1.bf16.msra.mxu0 %v3473
    %3729 = vmatprep.subr.bf16.mxu0 %v3478
    %3730 = vmatpush1.bf16.msra.mxu0 %v3477
    %3731 = vmatprep.subr.bf16.mxu0 %v3482
    %3732 = vmatpush1.bf16.msra.mxu0 %v3481
    %3733 = vmatprep.subr.bf16.mxu0 %v3486
    %3734 = vmatpush1.bf16.msra.mxu0 %v3485
    %3735 = vmatprep.subr.bf16.mxu0 %v3490
    %3736 = vmatpush1.bf16.msra.mxu0 %v3489
    %3737 = vmatprep.subr.bf16.mxu0 %v3494
    %3738 = vmatpush1.bf16.msra.mxu0 %v3493
    %3739 = vmatprep.subr.bf16.mxu0 %v3498
    %3740 = vmatpush1.bf16.msra.mxu0 %v3497
    %3741 = vmatprep.subr.bf16.mxu0 %v3502
    %3742 = vmatpush1.bf16.msra.mxu0 %v3501
    %3743 = vmatprep.subr.bf16.mxu0 %v3506
    %3744 = vmatpush1.bf16.msra.mxu0 %v3505
    %3745 = vmatprep.subr.bf16.mxu0 %v3510
    %3746 = vmatpush1.bf16.msra.mxu0 %v3509
    %3747 = vmatprep.subr.bf16.mxu0 %v3514
    %3748 = vmatpush1.bf16.msra.mxu0 %v3513
    %3749 = vmatprep.subr.bf16.mxu0 %v3518
    %3750 = vmatpush1.bf16.msra.mxu0 %v3517
    %3751 = vmatprep.subr.bf16.mxu0 %v3522
    %3752 = vmatpush1.bf16.msra.mxu0 %v3521
    %3753 = vmatprep.subr.bf16.mxu0 %v3526
    %3754 = vmatpush1.bf16.msra.mxu0 %v3525
    %3755 = vmatprep.subr.bf16.mxu0 %v3530
    %3756 = vmatpush1.bf16.msra.mxu0 %v3529
    %3757 = vmatprep.mubr.bf16.mxu0 %v2872
    %3758 = vmatmul.mubr.bf16.gmra.mrb[0].mxu0 %v2871
    %v3759 = vpop.f32.mrb[0].mxu0
    %v3760 = vadd.f32 %v3068, %v3759
    %v3761 = vpop.f32.mrb[0].mxu0
    %v3762 = vadd.f32 %v3072, %v3761
    %v3763 = vpop.f32.mrb[0].mxu0
    %v3764 = vadd.f32 %v3068, %v3763
    %v3765 = vpop.f32.mrb[0].mxu0
    %v3766 = vadd.f32 %v3072, %v3765
    %3767 = vmatprep.mubr.bf16.mxu0 %v2876
    %3768 = vmatmul.mubr.bf16.gmra.mrb[0].mxu0 %v2875
    %v3769 = vpop.f32.mrb[0].mxu0
    %v3770 = vadd.f32 %v3068, %v3769
    %v3771 = vpop.f32.mrb[0].mxu0
    %v3772 = vadd.f32 %v3072, %v3771
    %v3773 = vpop.f32.mrb[0].mxu0
    %v3774 = vadd.f32 %v3068, %v3773
    %v3775 = vpop.f32.mrb[0].mxu0
    %v3776 = vadd.f32 %v3072, %v3775
    %3777 = vmatprep.mubr.bf16.mxu0 %v2880
    %3778 = vmatmul.mubr.bf16.gmra.mrb[0].mxu0 %v2879
    %v3779 = vpop.f32.mrb[0].mxu0
    %v3780 = vadd.f32 %v3068, %v3779
    %v3781 = vpop.f32.mrb[0].mxu0
    %v3782 = vadd.f32 %v3072, %v3781
    %v3783 = vpop.f32.mrb[0].mxu0
    %v3784 = vadd.f32 %v3068, %v3783
    %v3785 = vpop.f32.mrb[0].mxu0
    %v3786 = vadd.f32 %v3072, %v3785
    %3787 = vmatprep.mubr.bf16.mxu0 %v2884
    %3788 = vmatmul.mubr.bf16.gmra.mrb[0].mxu0 %v2883
    %v3789 = vpop.f32.mrb[0].mxu0
    %v3790 = vadd.f32 %v3068, %v3789
    %v3791 = vpop.f32.mrb[0].mxu0
    %v3792 = vadd.f32 %v3072, %v3791
    %v3793 = vpop.f32.mrb[0].mxu0
    %v3794 = vadd.f32 %v3068, %v3793
    %v3795 = vpop.f32.mrb[0].mxu0
    %v3796 = vadd.f32 %v3072, %v3795
    %3797 = vmatprep.mubr.bf16.mxu0 %v2888
    %3798 = vmatmul.mubr.bf16.gmra.mrb[0].mxu0 %v2887
    %v3799 = vpop.f32.mrb[0].mxu0
    %v3800 = vadd.f32 %v3068, %v3799
    %v3801 = vpop.f32.mrb[0].mxu0
    %v3802 = vadd.f32 %v3072, %v3801
    %v3803 = vpop.f32.mrb[0].mxu0
    %v3804 = vadd.f32 %v3068, %v3803
    %v3805 = vpop.f32.mrb[0].mxu0
    %v3806 = vadd.f32 %v3072, %v3805
    %3807 = vmatprep.mubr.bf16.mxu0 %v2892
    %3808 = vmatmul.mubr.bf16.gmra.mrb[0].mxu0 %v2891
    %v3809 = vpop.f32.mrb[0].mxu0
    %v3810 = vadd.f32 %v3068, %v3809
    %v3811 = vpop.f32.mrb[0].mxu0
    %v3812 = vadd.f32 %v3072, %v3811
    %v3813 = vpop.f32.mrb[0].mxu0
    %v3814 = vadd.f32 %v3068, %v3813
    %v3815 = vpop.f32.mrb[0].mxu0
    %v3816 = vadd.f32 %v3072, %v3815
    %3817 = vmatprep.mubr.bf16.mxu0 %v2896
    %3818 = vmatmul.mubr.bf16.gmra.mrb[0].mxu0 %v2895
    %v3819 = vpop.f32.mrb[0].mxu0
    %v3820 = vadd.f32 %v3068, %v3819
    %v3821 = vpop.f32.mrb[0].mxu0
    %v3822 = vadd.f32 %v3072, %v3821
    %v3823 = vpop.f32.mrb[0].mxu0
    %v3824 = vadd.f32 %v3068, %v3823
    %v3825 = vpop.f32.mrb[0].mxu0
    %v3826 = vadd.f32 %v3072, %v3825
    %3827 = vmatprep.mubr.bf16.mxu0 %v2900
    %3828 = vmatmul.mubr.bf16.gmra.mrb[0].mxu0 %v2899
    %v3829 = vpop.f32.mrb[0].mxu0
    %v3830 = vadd.f32 %v3068, %v3829
    %v3831 = vpop.f32.mrb[0].mxu0
    %v3832 = vadd.f32 %v3072, %v3831
    %v3833 = vpop.f32.mrb[0].mxu0
    %v3834 = vadd.f32 %v3068, %v3833
    %v3835 = vpop.f32.mrb[0].mxu0
    %v3836 = vadd.f32 %v3072, %v3835
    %3837 = vmatprep.mubr.bf16.mxu0 %v2904
    %3838 = vmatmul.mubr.bf16.gmra.mrb[0].mxu0 %v2903
    %v3839 = vpop.f32.mrb[0].mxu0
    %v3840 = vadd.f32 %v3068, %v3839
    %v3841 = vpop.f32.mrb[0].mxu0
    %v3842 = vadd.f32 %v3072, %v3841
    %v3843 = vpop.f32.mrb[0].mxu0
    %v3844 = vadd.f32 %v3068, %v3843
    %v3845 = vpop.f32.mrb[0].mxu0
    %v3846 = vadd.f32 %v3072, %v3845
    %3847 = vmatprep.mubr.bf16.mxu0 %v2908
    %3848 = vmatmul.mubr.bf16.gmra.mrb[0].mxu0 %v2907
    %v3849 = vpop.f32.mrb[0].mxu0
    %v3850 = vadd.f32 %v3068, %v3849
    %v3851 = vpop.f32.mrb[0].mxu0
    %v3852 = vadd.f32 %v3072, %v3851
    %v3853 = vpop.f32.mrb[0].mxu0
    %v3854 = vadd.f32 %v3068, %v3853
    %v3855 = vpop.f32.mrb[0].mxu0
    %v3856 = vadd.f32 %v3072, %v3855
    %3857 = vmatprep.mubr.bf16.mxu0 %v2912
    %3858 = vmatmul.mubr.bf16.gmra.mrb[0].mxu0 %v2911
    %v3859 = vpop.f32.mrb[0].mxu0
    %v3860 = vadd.f32 %v3068, %v3859
    %v3861 = vpop.f32.mrb[0].mxu0
    %v3862 = vadd.f32 %v3072, %v3861
    %v3863 = vpop.f32.mrb[0].mxu0
    %v3864 = vadd.f32 %v3068, %v3863
    %v3865 = vpop.f32.mrb[0].mxu0
    %v3866 = vadd.f32 %v3072, %v3865
    %3867 = vmatprep.mubr.bf16.mxu0 %v2916
    %3868 = vmatmul.mubr.bf16.gmra.mrb[0].mxu0 %v2915
    %v3869 = vpop.f32.mrb[0].mxu0
    %v3870 = vadd.f32 %v3068, %v3869
    %v3871 = vpop.f32.mrb[0].mxu0
    %v3872 = vadd.f32 %v3072, %v3871
    %v3873 = vpop.f32.mrb[0].mxu0
    %v3874 = vadd.f32 %v3068, %v3873
    %v3875 = vpop.f32.mrb[0].mxu0
    %v3876 = vadd.f32 %v3072, %v3875
    %3877 = vmatprep.mubr.bf16.mxu0 %v2920
    %3878 = vmatmul.mubr.bf16.gmra.mrb[0].mxu0 %v2919
    %v3879 = vpop.f32.mrb[0].mxu0
    %v3880 = vadd.f32 %v3068, %v3879
    %v3881 = vpop.f32.mrb[0].mxu0
    %v3882 = vadd.f32 %v3072, %v3881
    %v3883 = vpop.f32.mrb[0].mxu0
    %v3884 = vadd.f32 %v3068, %v3883
    %v3885 = vpop.f32.mrb[0].mxu0
    %v3886 = vadd.f32 %v3072, %v3885
    %3887 = vmatprep.mubr.bf16.mxu0 %v2924
    %3888 = vmatmul.mubr.bf16.gmra.mrb[0].mxu0 %v2923
    %v3889 = vpop.f32.mrb[0].mxu0
    %v3890 = vadd.f32 %v3068, %v3889
    %v3891 = vpop.f32.mrb[0].mxu0
    %v3892 = vadd.f32 %v3072, %v3891
    %v3893 = vpop.f32.mrb[0].mxu0
    %v3894 = vadd.f32 %v3068, %v3893
    %v3895 = vpop.f32.mrb[0].mxu0
    %v3896 = vadd.f32 %v3072, %v3895
    %3897 = vmatprep.mubr.bf16.mxu0 %v2928
    %3898 = vmatmul.mubr.bf16.gmra.mrb[0].mxu0 %v2927
    %v3899 = vpop.f32.mrb[0].mxu0
    %v3900 = vadd.f32 %v3068, %v3899
    %v3901 = vpop.f32.mrb[0].mxu0
    %v3902 = vadd.f32 %v3072, %v3901
    %v3903 = vpop.f32.mrb[0].mxu0
    %v3904 = vadd.f32 %v3068, %v3903
    %v3905 = vpop.f32.mrb[0].mxu0
    %v3906 = vadd.f32 %v3072, %v3905
    %3907 = vmatprep.mubr.bf16.mxu0 %v2932
    %3908 = vmatmul.mubr.bf16.gmra.mrb[0].mxu0 %v2931
    %v3909 = vpop.f32.mrb[0].mxu0
    %v3910 = vadd.f32 %v3068, %v3909
    %v3911 = vpop.f32.mrb[0].mxu0
    %v3912 = vadd.f32 %v3072, %v3911
    %v3913 = vpop.f32.mrb[0].mxu0
    %v3914 = vadd.f32 %v3068, %v3913
    %v3915 = vpop.f32.mrb[0].mxu0
    %v3916 = vadd.f32 %v3072, %v3915
    %3917 = vdwg.mxu0
    %3918 = vmatprep.subr.bf16.mxu0 %v3534
    %3919 = vmatpush1.bf16.msra.mxu0 %v3533
    %3920 = vmatprep.subr.bf16.mxu0 %v3538
    %3921 = vmatpush1.bf16.msra.mxu0 %v3537
    %3922 = vmatprep.subr.bf16.mxu0 %v3542
    %3923 = vmatpush1.bf16.msra.mxu0 %v3541
    %3924 = vmatprep.subr.bf16.mxu0 %v3546
    %3925 = vmatpush1.bf16.msra.mxu0 %v3545
    %3926 = vmatprep.subr.bf16.mxu0 %v3550
    %3927 = vmatpush1.bf16.msra.mxu0 %v3549
    %3928 = vmatprep.subr.bf16.mxu0 %v3554
    %3929 = vmatpush1.bf16.msra.mxu0 %v3553
    %3930 = vmatprep.subr.bf16.mxu0 %v3558
    %3931 = vmatpush1.bf16.msra.mxu0 %v3557
    %3932 = vmatprep.subr.bf16.mxu0 %v3562
    %3933 = vmatpush1.bf16.msra.mxu0 %v3561
    %3934 = vmatprep.subr.bf16.mxu0 %v3566
    %3935 = vmatpush1.bf16.msra.mxu0 %v3565
    %3936 = vmatprep.subr.bf16.mxu0 %v3570
    %3937 = vmatpush1.bf16.msra.mxu0 %v3569
    %3938 = vmatprep.subr.bf16.mxu0 %v3574
    %3939 = vmatpush1.bf16.msra.mxu0 %v3573
    %3940 = vmatprep.subr.bf16.mxu0 %v3578
    %3941 = vmatpush1.bf16.msra.mxu0 %v3577
    %3942 = vmatprep.subr.bf16.mxu0 %v3582
    %3943 = vmatpush1.bf16.msra.mxu0 %v3581
    %3944 = vmatprep.subr.bf16.mxu0 %v3586
    %3945 = vmatpush1.bf16.msra.mxu0 %v3585
    %3946 = vmatprep.subr.bf16.mxu0 %v3590
    %3947 = vmatpush1.bf16.msra.mxu0 %v3589
    %3948 = vmatprep.subr.bf16.mxu0 %v3594
    %3949 = vmatpush1.bf16.msra.mxu0 %v3593
    %3950 = vmatprep.mubr.bf16.mxu0 %v2874
    %3951 = vmatmul.mubr.bf16.gmra.mrb[0].mxu0 %v2873
    %v3952 = vpop.f32.mrb[0].mxu0
    %v3953 = vadd.f32 %v3760, %v3952
    %v3954 = vpop.f32.mrb[0].mxu0
    %v3955 = vadd.f32 %v3762, %v3954
    %v3956 = vpop.f32.mrb[0].mxu0
    %v3957 = vadd.f32 %v3764, %v3956
    %v3958 = vpop.f32.mrb[0].mxu0
    %v3959 = vadd.f32 %v3766, %v3958
    %3960 = vmatprep.mubr.bf16.mxu0 %v2878
    %3961 = vmatmul.mubr.bf16.gmra.mrb[0].mxu0 %v2877
    %v3962 = vpop.f32.mrb[0].mxu0
    %v3963 = vadd.f32 %v3770, %v3962
    %v3964 = vpop.f32.mrb[0].mxu0
    %v3965 = vadd.f32 %v3772, %v3964
    %v3966 = vpop.f32.mrb[0].mxu0
    %v3967 = vadd.f32 %v3774, %v3966
    %v3968 = vpop.f32.mrb[0].mxu0
    %v3969 = vadd.f32 %v3776, %v3968
    %3970 = vmatprep.mubr.bf16.mxu0 %v2882
    %3971 = vmatmul.mubr.bf16.gmra.mrb[0].mxu0 %v2881
    %v3972 = vpop.f32.mrb[0].mxu0
    %v3973 = vadd.f32 %v3780, %v3972
    %v3974 = vpop.f32.mrb[0].mxu0
    %v3975 = vadd.f32 %v3782, %v3974
    %v3976 = vpop.f32.mrb[0].mxu0
    %v3977 = vadd.f32 %v3784, %v3976
    %v3978 = vpop.f32.mrb[0].mxu0
    %v3979 = vadd.f32 %v3786, %v3978
    %3980 = vmatprep.mubr.bf16.mxu0 %v2886
    %3981 = vmatmul.mubr.bf16.gmra.mrb[0].mxu0 %v2885
    %v3982 = vpop.f32.mrb[0].mxu0
    %v3983 = vadd.f32 %v3790, %v3982
    %v3984 = vpop.f32.mrb[0].mxu0
    %v3985 = vadd.f32 %v3792, %v3984
    %v3986 = vpop.f32.mrb[0].mxu0
    %v3987 = vadd.f32 %v3794, %v3986
    %v3988 = vpop.f32.mrb[0].mxu0
    %v3989 = vadd.f32 %v3796, %v3988
    %3990 = vmatprep.mubr.bf16.mxu0 %v2890
    %3991 = vmatmul.mubr.bf16.gmra.mrb[0].mxu0 %v2889
    %v3992 = vpop.f32.mrb[0].mxu0
    %v3993 = vadd.f32 %v3800, %v3992
    %v3994 = vpop.f32.mrb[0].mxu0
    %v3995 = vadd.f32 %v3802, %v3994
    %v3996 = vpop.f32.mrb[0].mxu0
    %v3997 = vadd.f32 %v3804, %v3996
    %v3998 = vpop.f32.mrb[0].mxu0
    %v3999 = vadd.f32 %v3806, %v3998
    %4000 = vmatprep.mubr.bf16.mxu0 %v2894
    %4001 = vmatmul.mubr.bf16.gmra.mrb[0].mxu0 %v2893
    %v4002 = vpop.f32.mrb[0].mxu0
    %v4003 = vadd.f32 %v3810, %v4002
    %v4004 = vpop.f32.mrb[0].mxu0
    %v4005 = vadd.f32 %v3812, %v4004
    %v4006 = vpop.f32.mrb[0].mxu0
    %v4007 = vadd.f32 %v3814, %v4006
    %v4008 = vpop.f32.mrb[0].mxu0
    %v4009 = vadd.f32 %v3816, %v4008
    %4010 = vmatprep.mubr.bf16.mxu0 %v2898
    %4011 = vmatmul.mubr.bf16.gmra.mrb[0].mxu0 %v2897
    %v4012 = vpop.f32.mrb[0].mxu0
    %v4013 = vadd.f32 %v3820, %v4012
    %v4014 = vpop.f32.mrb[0].mxu0
    %v4015 = vadd.f32 %v3822, %v4014
    %v4016 = vpop.f32.mrb[0].mxu0
    %v4017 = vadd.f32 %v3824, %v4016
    %v4018 = vpop.f32.mrb[0].mxu0
    %v4019 = vadd.f32 %v3826, %v4018
    %4020 = vmatprep.mubr.bf16.mxu0 %v2902
    %4021 = vmatmul.mubr.bf16.gmra.mrb[0].mxu0 %v2901
    %v4022 = vpop.f32.mrb[0].mxu0
    %v4023 = vadd.f32 %v3830, %v4022
    %v4024 = vpop.f32.mrb[0].mxu0
    %v4025 = vadd.f32 %v3832, %v4024
    %v4026 = vpop.f32.mrb[0].mxu0
    %v4027 = vadd.f32 %v3834, %v4026
    %v4028 = vpop.f32.mrb[0].mxu0
    %v4029 = vadd.f32 %v3836, %v4028
    %4030 = vmatprep.mubr.bf16.mxu0 %v2906
    %4031 = vmatmul.mubr.bf16.gmra.mrb[0].mxu0 %v2905
    %v4032 = vpop.f32.mrb[0].mxu0
    %v4033 = vadd.f32 %v3840, %v4032
    %v4034 = vpop.f32.mrb[0].mxu0
    %v4035 = vadd.f32 %v3842, %v4034
    %v4036 = vpop.f32.mrb[0].mxu0
    %v4037 = vadd.f32 %v3844, %v4036
    %v4038 = vpop.f32.mrb[0].mxu0
    %v4039 = vadd.f32 %v3846, %v4038
    %4040 = vmatprep.mubr.bf16.mxu0 %v2910
    %4041 = vmatmul.mubr.bf16.gmra.mrb[0].mxu0 %v2909
    %v4042 = vpop.f32.mrb[0].mxu0
    %v4043 = vadd.f32 %v3850, %v4042
    %v4044 = vpop.f32.mrb[0].mxu0
    %v4045 = vadd.f32 %v3852, %v4044
    %v4046 = vpop.f32.mrb[0].mxu0
    %v4047 = vadd.f32 %v3854, %v4046
    %v4048 = vpop.f32.mrb[0].mxu0
    %v4049 = vadd.f32 %v3856, %v4048
    %4050 = vmatprep.mubr.bf16.mxu0 %v2914
    %4051 = vmatmul.mubr.bf16.gmra.mrb[0].mxu0 %v2913
    %v4052 = vpop.f32.mrb[0].mxu0
    %v4053 = vadd.f32 %v3860, %v4052
    %v4054 = vpop.f32.mrb[0].mxu0
    %v4055 = vadd.f32 %v3862, %v4054
    %v4056 = vpop.f32.mrb[0].mxu0
    %v4057 = vadd.f32 %v3864, %v4056
    %v4058 = vpop.f32.mrb[0].mxu0
    %v4059 = vadd.f32 %v3866, %v4058
    %4060 = vmatprep.mubr.bf16.mxu0 %v2918
    %4061 = vmatmul.mubr.bf16.gmra.mrb[0].mxu0 %v2917
    %v4062 = vpop.f32.mrb[0].mxu0
    %v4063 = vadd.f32 %v3870, %v4062
    %v4064 = vpop.f32.mrb[0].mxu0
    %v4065 = vadd.f32 %v3872, %v4064
    %v4066 = vpop.f32.mrb[0].mxu0
    %v4067 = vadd.f32 %v3874, %v4066
    %v4068 = vpop.f32.mrb[0].mxu0
    %v4069 = vadd.f32 %v3876, %v4068
    %4070 = vmatprep.mubr.bf16.mxu0 %v2922
    %4071 = vmatmul.mubr.bf16.gmra.mrb[0].mxu0 %v2921
    %v4072 = vpop.f32.mrb[0].mxu0
    %v4073 = vadd.f32 %v3880, %v4072
    %v4074 = vpop.f32.mrb[0].mxu0
    %v4075 = vadd.f32 %v3882, %v4074
    %v4076 = vpop.f32.mrb[0].mxu0
    %v4077 = vadd.f32 %v3884, %v4076
    %v4078 = vpop.f32.mrb[0].mxu0
    %v4079 = vadd.f32 %v3886, %v4078
    %4080 = vmatprep.mubr.bf16.mxu0 %v2926
    %4081 = vmatmul.mubr.bf16.gmra.mrb[0].mxu0 %v2925
    %v4082 = vpop.f32.mrb[0].mxu0
    %v4083 = vadd.f32 %v3890, %v4082
    %v4084 = vpop.f32.mrb[0].mxu0
    %v4085 = vadd.f32 %v3892, %v4084
    %v4086 = vpop.f32.mrb[0].mxu0
    %v4087 = vadd.f32 %v3894, %v4086
    %v4088 = vpop.f32.mrb[0].mxu0
    %v4089 = vadd.f32 %v3896, %v4088
    %4090 = vmatprep.mubr.bf16.mxu0 %v2930
    %4091 = vmatmul.mubr.bf16.gmra.mrb[0].mxu0 %v2929
    %v4092 = vpop.f32.mrb[0].mxu0
    %v4093 = vadd.f32 %v3900, %v4092
    %v4094 = vpop.f32.mrb[0].mxu0
    %v4095 = vadd.f32 %v3902, %v4094
    %v4096 = vpop.f32.mrb[0].mxu0
    %v4097 = vadd.f32 %v3904, %v4096
    %v4098 = vpop.f32.mrb[0].mxu0
    %v4099 = vadd.f32 %v3906, %v4098
    %4100 = vmatprep.mubr.bf16.mxu0 %v2934
    %4101 = vmatmul.mubr.bf16.gmra.mrb[0].mxu0 %v2933
    %v4102 = vpop.f32.mrb[0].mxu0
    %v4103 = vadd.f32 %v3910, %v4102
    %v4104 = vpop.f32.mrb[0].mxu0
    %v4105 = vadd.f32 %v3912, %v4104
    %v4106 = vpop.f32.mrb[0].mxu0
    %v4107 = vadd.f32 %v3914, %v4106
    %v4108 = vpop.f32.mrb[0].mxu0
    %v4109 = vadd.f32 %v3916, %v4108
    %4110 = vdwg.mxu0
    %4111 = vmatprep.subr.bf16.mxu0 %v3472
    %4112 = vmatpush1.bf16.msra.mxu0 %v3471
    %4113 = vmatprep.subr.bf16.mxu0 %v3476
    %4114 = vmatpush1.bf16.msra.mxu0 %v3475
    %4115 = vmatprep.subr.bf16.mxu0 %v3480
    %4116 = vmatpush1.bf16.msra.mxu0 %v3479
    %4117 = vmatprep.subr.bf16.mxu0 %v3484
    %4118 = vmatpush1.bf16.msra.mxu0 %v3483
    %4119 = vmatprep.subr.bf16.mxu0 %v3488
    %4120 = vmatpush1.bf16.msra.mxu0 %v3487
    %4121 = vmatprep.subr.bf16.mxu0 %v3492
    %4122 = vmatpush1.bf16.msra.mxu0 %v3491
    %4123 = vmatprep.subr.bf16.mxu0 %v3496
    %4124 = vmatpush1.bf16.msra.mxu0 %v3495
    %4125 = vmatprep.subr.bf16.mxu0 %v3500
    %4126 = vmatpush1.bf16.msra.mxu0 %v3499
    %4127 = vmatprep.subr.bf16.mxu0 %v3504
    %4128 = vmatpush1.bf16.msra.mxu0 %v3503
    %4129 = vmatprep.subr.bf16.mxu0 %v3508
    %4130 = vmatpush1.bf16.msra.mxu0 %v3507
    %4131 = vmatprep.subr.bf16.mxu0 %v3512
    %4132 = vmatpush1.bf16.msra.mxu0 %v3511
    %4133 = vmatprep.subr.bf16.mxu0 %v3516
    %4134 = vmatpush1.bf16.msra.mxu0 %v3515
    %4135 = vmatprep.subr.bf16.mxu0 %v3520
    %4136 = vmatpush1.bf16.msra.mxu0 %v3519
    %4137 = vmatprep.subr.bf16.mxu0 %v3524
    %4138 = vmatpush1.bf16.msra.mxu0 %v3523
    %4139 = vmatprep.subr.bf16.mxu0 %v3528
    %4140 = vmatpush1.bf16.msra.mxu0 %v3527
    %4141 = vmatprep.subr.bf16.mxu0 %v3532
    %4142 = vmatpush1.bf16.msra.mxu0 %v3531
    %4143 = vmatprep.mubr.bf16.mxu0 %v2872
    %4144 = vmatmul.mubr.bf16.gmra.mrb[0].mxu0 %v2871
    %v4145 = vpop.f32.mrb[0].mxu0
    %v4146 = vadd.f32 %v3076, %v4145
    %v4147 = vpop.f32.mrb[0].mxu0
    %v4148 = vadd.f32 %v3080, %v4147
    %v4149 = vpop.f32.mrb[0].mxu0
    %v4150 = vadd.f32 %v3076, %v4149
    %v4151 = vpop.f32.mrb[0].mxu0
    %v4152 = vadd.f32 %v3080, %v4151
    %4153 = vmatprep.mubr.bf16.mxu0 %v2876
    %4154 = vmatmul.mubr.bf16.gmra.mrb[0].mxu0 %v2875
    %v4155 = vpop.f32.mrb[0].mxu0
    %v4156 = vadd.f32 %v3076, %v4155
    %v4157 = vpop.f32.mrb[0].mxu0
    %v4158 = vadd.f32 %v3080, %v4157
    %v4159 = vpop.f32.mrb[0].mxu0
    %v4160 = vadd.f32 %v3076, %v4159
    %v4161 = vpop.f32.mrb[0].mxu0
    %v4162 = vadd.f32 %v3080, %v4161
    %4163 = vmatprep.mubr.bf16.mxu0 %v2880
    %4164 = vmatmul.mubr.bf16.gmra.mrb[0].mxu0 %v2879
    %v4165 = vpop.f32.mrb[0].mxu0
    %v4166 = vadd.f32 %v3076, %v4165
    %v4167 = vpop.f32.mrb[0].mxu0
    %v4168 = vadd.f32 %v3080, %v4167
    %v4169 = vpop.f32.mrb[0].mxu0
    %v4170 = vadd.f32 %v3076, %v4169
    %v4171 = vpop.f32.mrb[0].mxu0
    %v4172 = vadd.f32 %v3080, %v4171
    %4173 = vmatprep.mubr.bf16.mxu0 %v2884
    %4174 = vmatmul.mubr.bf16.gmra.mrb[0].mxu0 %v2883
    %v4175 = vpop.f32.mrb[0].mxu0
    %v4176 = vadd.f32 %v3076, %v4175
    %v4177 = vpop.f32.mrb[0].mxu0
    %v4178 = vadd.f32 %v3080, %v4177
    %v4179 = vpop.f32.mrb[0].mxu0
    %v4180 = vadd.f32 %v3076, %v4179
    %v4181 = vpop.f32.mrb[0].mxu0
    %v4182 = vadd.f32 %v3080, %v4181
    %4183 = vmatprep.mubr.bf16.mxu0 %v2888
    %4184 = vmatmul.mubr.bf16.gmra.mrb[0].mxu0 %v2887
    %v4185 = vpop.f32.mrb[0].mxu0
    %v4186 = vadd.f32 %v3076, %v4185
    %v4187 = vpop.f32.mrb[0].mxu0
    %v4188 = vadd.f32 %v3080, %v4187
    %v4189 = vpop.f32.mrb[0].mxu0
    %v4190 = vadd.f32 %v3076, %v4189
    %v4191 = vpop.f32.mrb[0].mxu0
    %v4192 = vadd.f32 %v3080, %v4191
    %4193 = vmatprep.mubr.bf16.mxu0 %v2892
    %4194 = vmatmul.mubr.bf16.gmra.mrb[0].mxu0 %v2891
    %v4195 = vpop.f32.mrb[0].mxu0
    %v4196 = vadd.f32 %v3076, %v4195
    %v4197 = vpop.f32.mrb[0].mxu0
    %v4198 = vadd.f32 %v3080, %v4197
    %v4199 = vpop.f32.mrb[0].mxu0
    %v4200 = vadd.f32 %v3076, %v4199
    %v4201 = vpop.f32.mrb[0].mxu0
    %v4202 = vadd.f32 %v3080, %v4201
    %4203 = vmatprep.mubr.bf16.mxu0 %v2896
    %4204 = vmatmul.mubr.bf16.gmra.mrb[0].mxu0 %v2895
    %v4205 = vpop.f32.mrb[0].mxu0
    %v4206 = vadd.f32 %v3076, %v4205
    %v4207 = vpop.f32.mrb[0].mxu0
    %v4208 = vadd.f32 %v3080, %v4207
    %v4209 = vpop.f32.mrb[0].mxu0
    %v4210 = vadd.f32 %v3076, %v4209
    %v4211 = vpop.f32.mrb[0].mxu0
    %v4212 = vadd.f32 %v3080, %v4211
    %4213 = vmatprep.mubr.bf16.mxu0 %v2900
    %4214 = vmatmul.mubr.bf16.gmra.mrb[0].mxu0 %v2899
    %v4215 = vpop.f32.mrb[0].mxu0
    %v4216 = vadd.f32 %v3076, %v4215
    %v4217 = vpop.f32.mrb[0].mxu0
    %v4218 = vadd.f32 %v3080, %v4217
    %v4219 = vpop.f32.mrb[0].mxu0
    %v4220 = vadd.f32 %v3076, %v4219
    %v4221 = vpop.f32.mrb[0].mxu0
    %v4222 = vadd.f32 %v3080, %v4221
    %4223 = vmatprep.mubr.bf16.mxu0 %v2904
    %4224 = vmatmul.mubr.bf16.gmra.mrb[0].mxu0 %v2903
    %v4225 = vpop.f32.mrb[0].mxu0
    %v4226 = vadd.f32 %v3076, %v4225
    %v4227 = vpop.f32.mrb[0].mxu0
    %v4228 = vadd.f32 %v3080, %v4227
    %v4229 = vpop.f32.mrb[0].mxu0
    %v4230 = vadd.f32 %v3076, %v4229
    %v4231 = vpop.f32.mrb[0].mxu0
    %v4232 = vadd.f32 %v3080, %v4231
    %4233 = vmatprep.mubr.bf16.mxu0 %v2908
    %4234 = vmatmul.mubr.bf16.gmra.mrb[0].mxu0 %v2907
    %v4235 = vpop.f32.mrb[0].mxu0
    %v4236 = vadd.f32 %v3076, %v4235
    %v4237 = vpop.f32.mrb[0].mxu0
    %v4238 = vadd.f32 %v3080, %v4237
    %v4239 = vpop.f32.mrb[0].mxu0
    %v4240 = vadd.f32 %v3076, %v4239
    %v4241 = vpop.f32.mrb[0].mxu0
    %v4242 = vadd.f32 %v3080, %v4241
    %4243 = vmatprep.mubr.bf16.mxu0 %v2912
    %4244 = vmatmul.mubr.bf16.gmra.mrb[0].mxu0 %v2911
    %v4245 = vpop.f32.mrb[0].mxu0
    %v4246 = vadd.f32 %v3076, %v4245
    %v4247 = vpop.f32.mrb[0].mxu0
    %v4248 = vadd.f32 %v3080, %v4247
    %v4249 = vpop.f32.mrb[0].mxu0
    %v4250 = vadd.f32 %v3076, %v4249
    %v4251 = vpop.f32.mrb[0].mxu0
    %v4252 = vadd.f32 %v3080, %v4251
    %4253 = vmatprep.mubr.bf16.mxu0 %v2916
    %4254 = vmatmul.mubr.bf16.gmra.mrb[0].mxu0 %v2915
    %v4255 = vpop.f32.mrb[0].mxu0
    %v4256 = vadd.f32 %v3076, %v4255
    %v4257 = vpop.f32.mrb[0].mxu0
    %v4258 = vadd.f32 %v3080, %v4257
    %v4259 = vpop.f32.mrb[0].mxu0
    %v4260 = vadd.f32 %v3076, %v4259
    %v4261 = vpop.f32.mrb[0].mxu0
    %v4262 = vadd.f32 %v3080, %v4261
    %4263 = vmatprep.mubr.bf16.mxu0 %v2920
    %4264 = vmatmul.mubr.bf16.gmra.mrb[0].mxu0 %v2919
    %v4265 = vpop.f32.mrb[0].mxu0
    %v4266 = vadd.f32 %v3076, %v4265
    %v4267 = vpop.f32.mrb[0].mxu0
    %v4268 = vadd.f32 %v3080, %v4267
    %v4269 = vpop.f32.mrb[0].mxu0
    %v4270 = vadd.f32 %v3076, %v4269
    %v4271 = vpop.f32.mrb[0].mxu0
    %v4272 = vadd.f32 %v3080, %v4271
    %4273 = vmatprep.mubr.bf16.mxu0 %v2924
    %4274 = vmatmul.mubr.bf16.gmra.mrb[0].mxu0 %v2923
    %v4275 = vpop.f32.mrb[0].mxu0
    %v4276 = vadd.f32 %v3076, %v4275
    %v4277 = vpop.f32.mrb[0].mxu0
    %v4278 = vadd.f32 %v3080, %v4277
    %v4279 = vpop.f32.mrb[0].mxu0
    %v4280 = vadd.f32 %v3076, %v4279
    %v4281 = vpop.f32.mrb[0].mxu0
    %v4282 = vadd.f32 %v3080, %v4281
    %4283 = vmatprep.mubr.bf16.mxu0 %v2928
    %4284 = vmatmul.mubr.bf16.gmra.mrb[0].mxu0 %v2927
    %v4285 = vpop.f32.mrb[0].mxu0
    %v4286 = vadd.f32 %v3076, %v4285
    %v4287 = vpop.f32.mrb[0].mxu0
    %v4288 = vadd.f32 %v3080, %v4287
    %v4289 = vpop.f32.mrb[0].mxu0
    %v4290 = vadd.f32 %v3076, %v4289
    %v4291 = vpop.f32.mrb[0].mxu0
    %v4292 = vadd.f32 %v3080, %v4291
    %4293 = vmatprep.mubr.bf16.mxu0 %v2932
    %4294 = vmatmul.mubr.bf16.gmra.mrb[0].mxu0 %v2931
    %v4295 = vpop.f32.mrb[0].mxu0
    %v4296 = vadd.f32 %v3076, %v4295
    %v4297 = vpop.f32.mrb[0].mxu0
    %v4298 = vadd.f32 %v3080, %v4297
    %v4299 = vpop.f32.mrb[0].mxu0
    %v4300 = vadd.f32 %v3076, %v4299
    %v4301 = vpop.f32.mrb[0].mxu0
    %v4302 = vadd.f32 %v3080, %v4301
    %4303 = vdwg.mxu0
    %4304 = vmatprep.subr.bf16.mxu0 %v3536
    %4305 = vmatpush1.bf16.msra.mxu0 %v3535
    %4306 = vmatprep.subr.bf16.mxu0 %v3540
    %4307 = vmatpush1.bf16.msra.mxu0 %v3539
    %4308 = vmatprep.subr.bf16.mxu0 %v3544
    %4309 = vmatpush1.bf16.msra.mxu0 %v3543
    %4310 = vmatprep.subr.bf16.mxu0 %v3548
    %4311 = vmatpush1.bf16.msra.mxu0 %v3547
    %4312 = vmatprep.subr.bf16.mxu0 %v3552
    %4313 = vmatpush1.bf16.msra.mxu0 %v3551
    %4314 = vmatprep.subr.bf16.mxu0 %v3556
    %4315 = vmatpush1.bf16.msra.mxu0 %v3555
    %4316 = vmatprep.subr.bf16.mxu0 %v3560
    %4317 = vmatpush1.bf16.msra.mxu0 %v3559
    %4318 = vmatprep.subr.bf16.mxu0 %v3564
    %4319 = vmatpush1.bf16.msra.mxu0 %v3563
    %4320 = vmatprep.subr.bf16.mxu0 %v3568
    %4321 = vmatpush1.bf16.msra.mxu0 %v3567
    %4322 = vmatprep.subr.bf16.mxu0 %v3572
    %4323 = vmatpush1.bf16.msra.mxu0 %v3571
    %4324 = vmatprep.subr.bf16.mxu0 %v3576
    %4325 = vmatpush1.bf16.msra.mxu0 %v3575
    %4326 = vmatprep.subr.bf16.mxu0 %v3580
    %4327 = vmatpush1.bf16.msra.mxu0 %v3579
    %4328 = vmatprep.subr.bf16.mxu0 %v3584
    %4329 = vmatpush1.bf16.msra.mxu0 %v3583
    %4330 = vmatprep.subr.bf16.mxu0 %v3588
    %4331 = vmatpush1.bf16.msra.mxu0 %v3587
    %4332 = vmatprep.subr.bf16.mxu0 %v3592
    %4333 = vmatpush1.bf16.msra.mxu0 %v3591
    %4334 = vmatprep.subr.bf16.mxu0 %v3596
    %4335 = vmatpush1.bf16.msra.mxu0 %v3595
    %4336 = vmatprep.mubr.bf16.mxu0 %v2874
    %4337 = vmatmul.mubr.bf16.gmra.mrb[0].mxu0 %v2873
    %v4338 = vpop.f32.mrb[0].mxu0
    %v4339 = vadd.f32 %v4146, %v4338
    %v4340 = vpop.f32.mrb[0].mxu0
    %v4341 = vadd.f32 %v4148, %v4340
    %v4342 = vpop.f32.mrb[0].mxu0
    %v4343 = vadd.f32 %v4150, %v4342
    %v4344 = vpop.f32.mrb[0].mxu0
    %v4345 = vadd.f32 %v4152, %v4344
    %4346 = vmatprep.mubr.bf16.mxu0 %v2878
    %4347 = vmatmul.mubr.bf16.gmra.mrb[0].mxu0 %v2877
    %v4348 = vpop.f32.mrb[0].mxu0
    %v4349 = vadd.f32 %v4156, %v4348
    %v4350 = vpop.f32.mrb[0].mxu0
    %v4351 = vadd.f32 %v4158, %v4350
    %v4352 = vpop.f32.mrb[0].mxu0
    %v4353 = vadd.f32 %v4160, %v4352
    %v4354 = vpop.f32.mrb[0].mxu0
    %v4355 = vadd.f32 %v4162, %v4354
    %4356 = vmatprep.mubr.bf16.mxu0 %v2882
    %4357 = vmatmul.mubr.bf16.gmra.mrb[0].mxu0 %v2881
    %v4358 = vpop.f32.mrb[0].mxu0
    %v4359 = vadd.f32 %v4166, %v4358
    %v4360 = vpop.f32.mrb[0].mxu0
    %v4361 = vadd.f32 %v4168, %v4360
    %v4362 = vpop.f32.mrb[0].mxu0
    %v4363 = vadd.f32 %v4170, %v4362
    %v4364 = vpop.f32.mrb[0].mxu0
    %v4365 = vadd.f32 %v4172, %v4364
    %4366 = vmatprep.mubr.bf16.mxu0 %v2886
    %4367 = vmatmul.mubr.bf16.gmra.mrb[0].mxu0 %v2885
    %v4368 = vpop.f32.mrb[0].mxu0
    %v4369 = vadd.f32 %v4176, %v4368
    %v4370 = vpop.f32.mrb[0].mxu0
    %v4371 = vadd.f32 %v4178, %v4370
    %v4372 = vpop.f32.mrb[0].mxu0
    %v4373 = vadd.f32 %v4180, %v4372
    %v4374 = vpop.f32.mrb[0].mxu0
    %v4375 = vadd.f32 %v4182, %v4374
    %4376 = vmatprep.mubr.bf16.mxu0 %v2890
    %4377 = vmatmul.mubr.bf16.gmra.mrb[0].mxu0 %v2889
    %v4378 = vpop.f32.mrb[0].mxu0
    %v4379 = vadd.f32 %v4186, %v4378
    %v4380 = vpop.f32.mrb[0].mxu0
    %v4381 = vadd.f32 %v4188, %v4380
    %v4382 = vpop.f32.mrb[0].mxu0
    %v4383 = vadd.f32 %v4190, %v4382
    %v4384 = vpop.f32.mrb[0].mxu0
    %v4385 = vadd.f32 %v4192, %v4384
    %4386 = vmatprep.mubr.bf16.mxu0 %v2894
    %4387 = vmatmul.mubr.bf16.gmra.mrb[0].mxu0 %v2893
    %v4388 = vpop.f32.mrb[0].mxu0
    %v4389 = vadd.f32 %v4196, %v4388
    %v4390 = vpop.f32.mrb[0].mxu0
    %v4391 = vadd.f32 %v4198, %v4390
    %v4392 = vpop.f32.mrb[0].mxu0
    %v4393 = vadd.f32 %v4200, %v4392
    %v4394 = vpop.f32.mrb[0].mxu0
    %v4395 = vadd.f32 %v4202, %v4394
    %4396 = vmatprep.mubr.bf16.mxu0 %v2898
    %4397 = vmatmul.mubr.bf16.gmra.mrb[0].mxu0 %v2897
    %v4398 = vpop.f32.mrb[0].mxu0
    %v4399 = vadd.f32 %v4206, %v4398
    %v4400 = vpop.f32.mrb[0].mxu0
    %v4401 = vadd.f32 %v4208, %v4400
    %v4402 = vpop.f32.mrb[0].mxu0
    %v4403 = vadd.f32 %v4210, %v4402
    %v4404 = vpop.f32.mrb[0].mxu0
    %v4405 = vadd.f32 %v4212, %v4404
    %4406 = vmatprep.mubr.bf16.mxu0 %v2902
    %4407 = vmatmul.mubr.bf16.gmra.mrb[0].mxu0 %v2901
    %v4408 = vpop.f32.mrb[0].mxu0
    %v4409 = vadd.f32 %v4216, %v4408
    %v4410 = vpop.f32.mrb[0].mxu0
    %v4411 = vadd.f32 %v4218, %v4410
    %v4412 = vpop.f32.mrb[0].mxu0
    %v4413 = vadd.f32 %v4220, %v4412
    %v4414 = vpop.f32.mrb[0].mxu0
    %v4415 = vadd.f32 %v4222, %v4414
    %4416 = vmatprep.mubr.bf16.mxu0 %v2906
    %4417 = vmatmul.mubr.bf16.gmra.mrb[0].mxu0 %v2905
    %v4418 = vpop.f32.mrb[0].mxu0
    %v4419 = vadd.f32 %v4226, %v4418
    %v4420 = vpop.f32.mrb[0].mxu0
    %v4421 = vadd.f32 %v4228, %v4420
    %v4422 = vpop.f32.mrb[0].mxu0
    %v4423 = vadd.f32 %v4230, %v4422
    %v4424 = vpop.f32.mrb[0].mxu0
    %v4425 = vadd.f32 %v4232, %v4424
    %4426 = vmatprep.mubr.bf16.mxu0 %v2910
    %4427 = vmatmul.mubr.bf16.gmra.mrb[0].mxu0 %v2909
    %v4428 = vpop.f32.mrb[0].mxu0
    %v4429 = vadd.f32 %v4236, %v4428
    %v4430 = vpop.f32.mrb[0].mxu0
    %v4431 = vadd.f32 %v4238, %v4430
    %v4432 = vpop.f32.mrb[0].mxu0
    %v4433 = vadd.f32 %v4240, %v4432
    %v4434 = vpop.f32.mrb[0].mxu0
    %v4435 = vadd.f32 %v4242, %v4434
    %4436 = vmatprep.mubr.bf16.mxu0 %v2914
    %4437 = vmatmul.mubr.bf16.gmra.mrb[0].mxu0 %v2913
    %v4438 = vpop.f32.mrb[0].mxu0
    %v4439 = vadd.f32 %v4246, %v4438
    %v4440 = vpop.f32.mrb[0].mxu0
    %v4441 = vadd.f32 %v4248, %v4440
    %v4442 = vpop.f32.mrb[0].mxu0
    %v4443 = vadd.f32 %v4250, %v4442
    %v4444 = vpop.f32.mrb[0].mxu0
    %v4445 = vadd.f32 %v4252, %v4444
    %4446 = vmatprep.mubr.bf16.mxu0 %v2918
    %4447 = vmatmul.mubr.bf16.gmra.mrb[0].mxu0 %v2917
    %v4448 = vpop.f32.mrb[0].mxu0
    %v4449 = vadd.f32 %v4256, %v4448
    %v4450 = vpop.f32.mrb[0].mxu0
    %v4451 = vadd.f32 %v4258, %v4450
    %v4452 = vpop.f32.mrb[0].mxu0
    %v4453 = vadd.f32 %v4260, %v4452
    %v4454 = vpop.f32.mrb[0].mxu0
    %v4455 = vadd.f32 %v4262, %v4454
    %4456 = vmatprep.mubr.bf16.mxu0 %v2922
    %4457 = vmatmul.mubr.bf16.gmra.mrb[0].mxu0 %v2921
    %v4458 = vpop.f32.mrb[0].mxu0
    %v4459 = vadd.f32 %v4266, %v4458
    %v4460 = vpop.f32.mrb[0].mxu0
    %v4461 = vadd.f32 %v4268, %v4460
    %v4462 = vpop.f32.mrb[0].mxu0
    %v4463 = vadd.f32 %v4270, %v4462
    %v4464 = vpop.f32.mrb[0].mxu0
    %v4465 = vadd.f32 %v4272, %v4464
    %4466 = vmatprep.mubr.bf16.mxu0 %v2926
    %4467 = vmatmul.mubr.bf16.gmra.mrb[0].mxu0 %v2925
    %v4468 = vpop.f32.mrb[0].mxu0
    %v4469 = vadd.f32 %v4276, %v4468
    %v4470 = vpop.f32.mrb[0].mxu0
    %v4471 = vadd.f32 %v4278, %v4470
    %v4472 = vpop.f32.mrb[0].mxu0
    %v4473 = vadd.f32 %v4280, %v4472
    %v4474 = vpop.f32.mrb[0].mxu0
    %v4475 = vadd.f32 %v4282, %v4474
    %4476 = vmatprep.mubr.bf16.mxu0 %v2930
    %4477 = vmatmul.mubr.bf16.gmra.mrb[0].mxu0 %v2929
    %v4478 = vpop.f32.mrb[0].mxu0
    %v4479 = vadd.f32 %v4286, %v4478
    %v4480 = vpop.f32.mrb[0].mxu0
    %v4481 = vadd.f32 %v4288, %v4480
    %v4482 = vpop.f32.mrb[0].mxu0
    %v4483 = vadd.f32 %v4290, %v4482
    %v4484 = vpop.f32.mrb[0].mxu0
    %v4485 = vadd.f32 %v4292, %v4484
    %4486 = vmatprep.mubr.bf16.mxu0 %v2934
    %4487 = vmatmul.mubr.bf16.gmra.mrb[0].mxu0 %v2933
    %v4488 = vpop.f32.mrb[0].mxu0
    %v4489 = vadd.f32 %v4296, %v4488
    %v4490 = vpop.f32.mrb[0].mxu0
    %v4491 = vadd.f32 %v4298, %v4490
    %v4492 = vpop.f32.mrb[0].mxu0
    %v4493 = vadd.f32 %v4300, %v4492
    %v4494 = vpop.f32.mrb[0].mxu0
    %v4495 = vadd.f32 %v4302, %v4494
    %4496 = vdwg.mxu0
    %v4497 = vmax.f32 %v3953, 0.0
    %v4498 = vmax.f32 %v3955, 0.0
    %v4499 = vmax.f32 %v4339, 0.0
    %v4500 = vmax.f32 %v4341, 0.0
    %v4501 = vmax.f32 %v3957, 0.0
    %v4502 = vmax.f32 %v3959, 0.0
    %v4503 = vmax.f32 %v4343, 0.0
    %v4504 = vmax.f32 %v4345, 0.0
    %v4505 = vmax.f32 %v3963, 0.0
    %v4506 = vmax.f32 %v3965, 0.0
    %v4507 = vmax.f32 %v4349, 0.0
    %v4508 = vmax.f32 %v4351, 0.0
    %v4509 = vmax.f32 %v3967, 0.0
    %v4510 = vmax.f32 %v3969, 0.0
    %v4511 = vmax.f32 %v4353, 0.0
    %v4512 = vmax.f32 %v4355, 0.0
    %v4513 = vmax.f32 %v3973, 0.0
    %v4514 = vmax.f32 %v3975, 0.0
    %v4515 = vmax.f32 %v4359, 0.0
    %v4516 = vmax.f32 %v4361, 0.0
    %v4517 = vmax.f32 %v3977, 0.0
    %v4518 = vmax.f32 %v3979, 0.0
    %v4519 = vmax.f32 %v4363, 0.0
    %v4520 = vmax.f32 %v4365, 0.0
    %v4521 = vmax.f32 %v3983, 0.0
    %v4522 = vmax.f32 %v3985, 0.0
    %v4523 = vmax.f32 %v4369, 0.0
    %v4524 = vmax.f32 %v4371, 0.0
    %v4525 = vmax.f32 %v3987, 0.0
    %v4526 = vmax.f32 %v3989, 0.0
    %v4527 = vmax.f32 %v4373, 0.0
    %v4528 = vmax.f32 %v4375, 0.0
    %v4529 = vmax.f32 %v3993, 0.0
    %v4530 = vmax.f32 %v3995, 0.0
    %v4531 = vmax.f32 %v4379, 0.0
    %v4532 = vmax.f32 %v4381, 0.0
    %v4533 = vmax.f32 %v3997, 0.0
    %v4534 = vmax.f32 %v3999, 0.0
    %v4535 = vmax.f32 %v4383, 0.0
    %v4536 = vmax.f32 %v4385, 0.0
    %v4537 = vmax.f32 %v4003, 0.0
    %v4538 = vmax.f32 %v4005, 0.0
    %v4539 = vmax.f32 %v4389, 0.0
    %v4540 = vmax.f32 %v4391, 0.0
    %v4541 = vmax.f32 %v4007, 0.0
    %v4542 = vmax.f32 %v4009, 0.0
    %v4543 = vmax.f32 %v4393, 0.0
    %v4544 = vmax.f32 %v4395, 0.0
    %v4545 = vmax.f32 %v4013, 0.0
    %v4546 = vmax.f32 %v4015, 0.0
    %v4547 = vmax.f32 %v4399, 0.0
    %v4548 = vmax.f32 %v4401, 0.0
    %v4549 = vmax.f32 %v4017, 0.0
    %v4550 = vmax.f32 %v4019, 0.0
    %v4551 = vmax.f32 %v4403, 0.0
    %v4552 = vmax.f32 %v4405, 0.0
    %v4553 = vmax.f32 %v4023, 0.0
    %v4554 = vmax.f32 %v4025, 0.0
    %v4555 = vmax.f32 %v4409, 0.0
    %v4556 = vmax.f32 %v4411, 0.0
    %v4557 = vmax.f32 %v4027, 0.0
    %v4558 = vmax.f32 %v4029, 0.0
    %v4559 = vmax.f32 %v4413, 0.0
    %v4560 = vmax.f32 %v4415, 0.0
    %v4561 = vmax.f32 %v4033, 0.0
    %v4562 = vmax.f32 %v4035, 0.0
    %v4563 = vmax.f32 %v4419, 0.0
    %v4564 = vmax.f32 %v4421, 0.0
    %v4565 = vmax.f32 %v4037, 0.0
    %v4566 = vmax.f32 %v4039, 0.0
    %v4567 = vmax.f32 %v4423, 0.0
    %v4568 = vmax.f32 %v4425, 0.0
    %v4569 = vmax.f32 %v4043, 0.0
    %v4570 = vmax.f32 %v4045, 0.0
    %v4571 = vmax.f32 %v4429, 0.0
    %v4572 = vmax.f32 %v4431, 0.0
    %v4573 = vmax.f32 %v4047, 0.0
    %v4574 = vmax.f32 %v4049, 0.0
    %v4575 = vmax.f32 %v4433, 0.0
    %v4576 = vmax.f32 %v4435, 0.0
    %v4577 = vmax.f32 %v4053, 0.0
    %v4578 = vmax.f32 %v4055, 0.0
    %v4579 = vmax.f32 %v4439, 0.0
    %v4580 = vmax.f32 %v4441, 0.0
    %v4581 = vmax.f32 %v4057, 0.0
    %v4582 = vmax.f32 %v4059, 0.0
    %v4583 = vmax.f32 %v4443, 0.0
    %v4584 = vmax.f32 %v4445, 0.0
    %v4585 = vmax.f32 %v4063, 0.0
    %v4586 = vmax.f32 %v4065, 0.0
    %v4587 = vmax.f32 %v4449, 0.0
    %v4588 = vmax.f32 %v4451, 0.0
    %v4589 = vmax.f32 %v4067, 0.0
    %v4590 = vmax.f32 %v4069, 0.0
    %v4591 = vmax.f32 %v4453, 0.0
    %v4592 = vmax.f32 %v4455, 0.0
    %v4593 = vmax.f32 %v4073, 0.0
    %v4594 = vmax.f32 %v4075, 0.0
    %v4595 = vmax.f32 %v4459, 0.0
    %v4596 = vmax.f32 %v4461, 0.0
    %v4597 = vmax.f32 %v4077, 0.0
    %v4598 = vmax.f32 %v4079, 0.0
    %v4599 = vmax.f32 %v4463, 0.0
    %v4600 = vmax.f32 %v4465, 0.0
    %v4601 = vmax.f32 %v4083, 0.0
    %v4602 = vmax.f32 %v4085, 0.0
    %v4603 = vmax.f32 %v4469, 0.0
    %v4604 = vmax.f32 %v4471, 0.0
    %v4605 = vmax.f32 %v4087, 0.0
    %v4606 = vmax.f32 %v4089, 0.0
    %v4607 = vmax.f32 %v4473, 0.0
    %v4608 = vmax.f32 %v4475, 0.0
    %v4609 = vmax.f32 %v4093, 0.0
    %v4610 = vmax.f32 %v4095, 0.0
    %v4611 = vmax.f32 %v4479, 0.0
    %v4612 = vmax.f32 %v4481, 0.0
    %v4613 = vmax.f32 %v4097, 0.0
    %v4614 = vmax.f32 %v4099, 0.0
    %v4615 = vmax.f32 %v4483, 0.0
    %v4616 = vmax.f32 %v4485, 0.0
    %v4617 = vmax.f32 %v4103, 0.0
    %v4618 = vmax.f32 %v4105, 0.0
    %v4619 = vmax.f32 %v4489, 0.0
    %v4620 = vmax.f32 %v4491, 0.0
    %v4621 = vmax.f32 %v4107, 0.0
    %v4622 = vmax.f32 %v4109, 0.0
    %v4623 = vmax.f32 %v4493, 0.0
    %v4624 = vmax.f32 %v4495, 0.0
    %v4625 = vpack.c.bf16 %v4501, %v4497
    %v4626 = vpack.c.bf16 %v4502, %v4498
    %v4627 = vpack.c.bf16 %v4503, %v4499
    %v4628 = vpack.c.bf16 %v4504, %v4500
    %v4629 = vpack.c.bf16 %v4509, %v4505
    %v4630 = vpack.c.bf16 %v4510, %v4506
    %v4631 = vpack.c.bf16 %v4511, %v4507
    %v4632 = vpack.c.bf16 %v4512, %v4508
    %v4633 = vpack.c.bf16 %v4517, %v4513
    %v4634 = vpack.c.bf16 %v4518, %v4514
    %v4635 = vpack.c.bf16 %v4519, %v4515
    %v4636 = vpack.c.bf16 %v4520, %v4516
    %v4637 = vpack.c.bf16 %v4525, %v4521
    %v4638 = vpack.c.bf16 %v4526, %v4522
    %v4639 = vpack.c.bf16 %v4527, %v4523
    %v4640 = vpack.c.bf16 %v4528, %v4524
    %v4641 = vpack.c.bf16 %v4533, %v4529
    %v4642 = vpack.c.bf16 %v4534, %v4530
    %v4643 = vpack.c.bf16 %v4535, %v4531
    %v4644 = vpack.c.bf16 %v4536, %v4532
    %v4645 = vpack.c.bf16 %v4541, %v4537
    %v4646 = vpack.c.bf16 %v4542, %v4538
    %v4647 = vpack.c.bf16 %v4543, %v4539
    %v4648 = vpack.c.bf16 %v4544, %v4540
    %v4649 = vpack.c.bf16 %v4549, %v4545
    %v4650 = vpack.c.bf16 %v4550, %v4546
    %v4651 = vpack.c.bf16 %v4551, %v4547
    %v4652 = vpack.c.bf16 %v4552, %v4548
    %v4653 = vpack.c.bf16 %v4557, %v4553
    %v4654 = vpack.c.bf16 %v4558, %v4554
    %v4655 = vpack.c.bf16 %v4559, %v4555
    %v4656 = vpack.c.bf16 %v4560, %v4556
    %v4657 = vpack.c.bf16 %v4565, %v4561
    %v4658 = vpack.c.bf16 %v4566, %v4562
    %v4659 = vpack.c.bf16 %v4567, %v4563
    %v4660 = vpack.c.bf16 %v4568, %v4564
    %v4661 = vpack.c.bf16 %v4573, %v4569
    %v4662 = vpack.c.bf16 %v4574, %v4570
    %v4663 = vpack.c.bf16 %v4575, %v4571
    %v4664 = vpack.c.bf16 %v4576, %v4572
    %v4665 = vpack.c.bf16 %v4581, %v4577
    %v4666 = vpack.c.bf16 %v4582, %v4578
    %v4667 = vpack.c.bf16 %v4583, %v4579
    %v4668 = vpack.c.bf16 %v4584, %v4580
    %v4669 = vpack.c.bf16 %v4589, %v4585
    %v4670 = vpack.c.bf16 %v4590, %v4586
    %v4671 = vpack.c.bf16 %v4591, %v4587
    %v4672 = vpack.c.bf16 %v4592, %v4588
    %v4673 = vpack.c.bf16 %v4597, %v4593
    %v4674 = vpack.c.bf16 %v4598, %v4594
    %v4675 = vpack.c.bf16 %v4599, %v4595
    %v4676 = vpack.c.bf16 %v4600, %v4596
    %v4677 = vpack.c.bf16 %v4605, %v4601
    %v4678 = vpack.c.bf16 %v4606, %v4602
    %v4679 = vpack.c.bf16 %v4607, %v4603
    %v4680 = vpack.c.bf16 %v4608, %v4604
    %v4681 = vpack.c.bf16 %v4613, %v4609
    %v4682 = vpack.c.bf16 %v4614, %v4610
    %v4683 = vpack.c.bf16 %v4615, %v4611
    %v4684 = vpack.c.bf16 %v4616, %v4612
    %v4685 = vpack.c.bf16 %v4621, %v4617
    %v4686 = vpack.c.bf16 %v4622, %v4618
    %v4687 = vpack.c.bf16 %v4623, %v4619
    %v4688 = vpack.c.bf16 %v4624, %v4620
    %v4689 = vld [vmem:[%s7] sm:$0xf]
    %v4690 = vld [vmem:[%s7 + $0x4] sm:$0xf]
    %v4691 = vld [vmem:[%s7 + $0x8] sm:$0xf]
    %v4692 = vld [vmem:[%s7 + $0xc] sm:$0xf]
    %v4693 = vld [vmem:[%s7 + $0x10] sm:$0xf]
    %v4694 = vld [vmem:[%s7 + $0x14] sm:$0xf]
    %v4695 = vld [vmem:[%s7 + $0x18] sm:$0xf]
    %v4696 = vld [vmem:[%s7 + $0x1c] sm:$0xf]
    %v4697 = vld [vmem:[%s7 + $0x20] sm:$0xf]
    %v4698 = vld [vmem:[%s7 + $0x24] sm:$0xf]
    %v4699 = vld [vmem:[%s7 + $0x28] sm:$0xf]
    %v4700 = vld [vmem:[%s7 + $0x2c] sm:$0xf]
    %v4701 = vld [vmem:[%s7 + $0x30] sm:$0xf]
    %v4702 = vld [vmem:[%s7 + $0x34] sm:$0xf]
    %v4703 = vld [vmem:[%s7 + $0x38] sm:$0xf]
    %v4704 = vld [vmem:[%s7 + $0x3c] sm:$0xf]
    %v4705 = vld [vmem:[%s7 + $0x40] sm:$0xf]
    %v4706 = vld [vmem:[%s7 + $0x44] sm:$0xf]
    %v4707 = vld [vmem:[%s7 + $0x48] sm:$0xf]
    %v4708 = vld [vmem:[%s7 + $0x4c] sm:$0xf]
    %v4709 = vld [vmem:[%s7 + $0x50] sm:$0xf]
    %v4710 = vld [vmem:[%s7 + $0x54] sm:$0xf]
    %v4711 = vld [vmem:[%s7 + $0x58] sm:$0xf]
    %v4712 = vld [vmem:[%s7 + $0x5c] sm:$0xf]
    %v4713 = vld [vmem:[%s7 + $0x60] sm:$0xf]
    %v4714 = vld [vmem:[%s7 + $0x64] sm:$0xf]
    %v4715 = vld [vmem:[%s7 + $0x68] sm:$0xf]
    %v4716 = vld [vmem:[%s7 + $0x6c] sm:$0xf]
    %v4717 = vld [vmem:[%s7 + $0x70] sm:$0xf]
    %v4718 = vld [vmem:[%s7 + $0x74] sm:$0xf]
    %v4719 = vld [vmem:[%s7 + $0x78] sm:$0xf]
    %v4720 = vld [vmem:[%s7 + $0x7c] sm:$0xf]
    %v4721 = vld [vmem:[%s7 + $0x80] sm:$0xf]
    %v4722 = vld [vmem:[%s7 + $0x84] sm:$0xf]
    %v4723 = vld [vmem:[%s7 + $0x88] sm:$0xf]
    %v4724 = vld [vmem:[%s7 + $0x8c] sm:$0xf]
    %v4725 = vld [vmem:[%s7 + $0x90] sm:$0xf]
    %v4726 = vld [vmem:[%s7 + $0x94] sm:$0xf]
    %v4727 = vld [vmem:[%s7 + $0x98] sm:$0xf]
    %v4728 = vld [vmem:[%s7 + $0x9c] sm:$0xf]
    %v4729 = vld [vmem:[%s7 + $0xa0] sm:$0xf]
    %v4730 = vld [vmem:[%s7 + $0xa4] sm:$0xf]
    %v4731 = vld [vmem:[%s7 + $0xa8] sm:$0xf]
    %v4732 = vld [vmem:[%s7 + $0xac] sm:$0xf]
    %v4733 = vld [vmem:[%s7 + $0xb0] sm:$0xf]
    %v4734 = vld [vmem:[%s7 + $0xb4] sm:$0xf]
    %v4735 = vld [vmem:[%s7 + $0xb8] sm:$0xf]
    %v4736 = vld [vmem:[%s7 + $0xbc] sm:$0xf]
    %v4737 = vld [vmem:[%s7 + $0xc0] sm:$0xf]
    %v4738 = vld [vmem:[%s7 + $0xc4] sm:$0xf]
    %v4739 = vld [vmem:[%s7 + $0xc8] sm:$0xf]
    %v4740 = vld [vmem:[%s7 + $0xcc] sm:$0xf]
    %v4741 = vld [vmem:[%s7 + $0xd0] sm:$0xf]
    %v4742 = vld [vmem:[%s7 + $0xd4] sm:$0xf]
    %v4743 = vld [vmem:[%s7 + $0xd8] sm:$0xf]
    %v4744 = vld [vmem:[%s7 + $0xdc] sm:$0xf]
    %v4745 = vld [vmem:[%s7 + $0xe0] sm:$0xf]
    %v4746 = vld [vmem:[%s7 + $0xe4] sm:$0xf]
    %v4747 = vld [vmem:[%s7 + $0xe8] sm:$0xf]
    %v4748 = vld [vmem:[%s7 + $0xec] sm:$0xf]
    %v4749 = vld [vmem:[%s7 + $0xf0] sm:$0xf]
    %v4750 = vld [vmem:[%s7 + $0xf4] sm:$0xf]
    %v4751 = vld [vmem:[%s7 + $0xf8] sm:$0xf]
    %v4752 = vld [vmem:[%s7 + $0xfc] sm:$0xf]
    %v4753 = vld [vmem:[%s8] sm:$0x1]
    %v4755 = vlaneseq
    %v4756 = vshrl.u32 %v4755, 7
    %v4757 = vsub.s32 0, %v4756
    %v4758 = vrot.slane %v4753, %v4757
    %v4824 = vunpack.c.l.b16 %v4689
    %v4825 = vunpack.c.l.b16 %v4690
    %v4826 = vunpack.c.l.b16 %v4691
    %v4827 = vunpack.c.l.b16 %v4692
    %v4828 = vunpack.c.l.b16 %v4693
    %v4829 = vunpack.c.l.b16 %v4694
    %v4830 = vunpack.c.l.b16 %v4695
    %v4831 = vunpack.c.l.b16 %v4696
    %v4832 = vunpack.c.l.b16 %v4697
    %v4833 = vunpack.c.l.b16 %v4698
    %v4834 = vunpack.c.l.b16 %v4699
    %v4835 = vunpack.c.l.b16 %v4700
    %v4836 = vunpack.c.l.b16 %v4701
    %v4837 = vunpack.c.l.b16 %v4702
    %v4838 = vunpack.c.l.b16 %v4703
    %v4839 = vunpack.c.l.b16 %v4704
    %v4840 = vunpack.c.l.b16 %v4705
    %v4841 = vunpack.c.l.b16 %v4706
    %v4842 = vunpack.c.l.b16 %v4707
    %v4843 = vunpack.c.l.b16 %v4708
    %v4844 = vunpack.c.l.b16 %v4709
    %v4845 = vunpack.c.l.b16 %v4710
    %v4846 = vunpack.c.l.b16 %v4711
    %v4847 = vunpack.c.l.b16 %v4712
    %v4848 = vunpack.c.l.b16 %v4713
    %v4849 = vunpack.c.l.b16 %v4714
    %v4850 = vunpack.c.l.b16 %v4715
    %v4851 = vunpack.c.l.b16 %v4716
    %v4852 = vunpack.c.l.b16 %v4717
    %v4853 = vunpack.c.l.b16 %v4718
    %v4854 = vunpack.c.l.b16 %v4719
    %v4855 = vunpack.c.l.b16 %v4720
    %v4856 = vunpack.c.l.b16 %v4721
    %v4857 = vunpack.c.l.b16 %v4722
    %v4858 = vunpack.c.l.b16 %v4723
    %v4859 = vunpack.c.l.b16 %v4724
    %v4860 = vunpack.c.l.b16 %v4725
    %v4861 = vunpack.c.l.b16 %v4726
    %v4862 = vunpack.c.l.b16 %v4727
    %v4863 = vunpack.c.l.b16 %v4728
    %v4864 = vunpack.c.l.b16 %v4729
    %v4865 = vunpack.c.l.b16 %v4730
    %v4866 = vunpack.c.l.b16 %v4731
    %v4867 = vunpack.c.l.b16 %v4732
    %v4868 = vunpack.c.l.b16 %v4733
    %v4869 = vunpack.c.l.b16 %v4734
    %v4870 = vunpack.c.l.b16 %v4735
    %v4871 = vunpack.c.l.b16 %v4736
    %v4872 = vunpack.c.l.b16 %v4737
    %v4873 = vunpack.c.l.b16 %v4738
    %v4874 = vunpack.c.l.b16 %v4739
    %v4875 = vunpack.c.l.b16 %v4740
    %v4876 = vunpack.c.l.b16 %v4741
    %v4877 = vunpack.c.l.b16 %v4742
    %v4878 = vunpack.c.l.b16 %v4743
    %v4879 = vunpack.c.l.b16 %v4744
    %v4880 = vunpack.c.l.b16 %v4745
    %v4881 = vunpack.c.l.b16 %v4746
    %v4882 = vunpack.c.l.b16 %v4747
    %v4883 = vunpack.c.l.b16 %v4748
    %v4884 = vunpack.c.l.b16 %v4749
    %v4885 = vunpack.c.l.b16 %v4750
    %v4886 = vunpack.c.l.b16 %v4751
    %v4887 = vunpack.c.l.b16 %v4752
    %v4888 = vpack.c.b16 %v4825, %v4824
    %v4889 = vpack.c.b16 %v4827, %v4826
    %v4890 = vpack.c.b16 %v4829, %v4828
    %v4891 = vpack.c.b16 %v4831, %v4830
    %v4892 = vpack.c.b16 %v4833, %v4832
    %v4893 = vpack.c.b16 %v4835, %v4834
    %v4894 = vpack.c.b16 %v4837, %v4836
    %v4895 = vpack.c.b16 %v4839, %v4838
    %v4896 = vpack.c.b16 %v4841, %v4840
    %v4897 = vpack.c.b16 %v4843, %v4842
    %v4898 = vpack.c.b16 %v4845, %v4844
    %v4899 = vpack.c.b16 %v4847, %v4846
    %v4900 = vpack.c.b16 %v4849, %v4848
    %v4901 = vpack.c.b16 %v4851, %v4850
    %v4902 = vpack.c.b16 %v4853, %v4852
    %v4903 = vpack.c.b16 %v4855, %v4854
    %v4904 = vpack.c.b16 %v4857, %v4856
    %v4905 = vpack.c.b16 %v4859, %v4858
    %v4906 = vpack.c.b16 %v4861, %v4860
    %v4907 = vpack.c.b16 %v4863, %v4862
    %v4908 = vpack.c.b16 %v4865, %v4864
    %v4909 = vpack.c.b16 %v4867, %v4866
    %v4910 = vpack.c.b16 %v4869, %v4868
    %v4911 = vpack.c.b16 %v4871, %v4870
    %v4912 = vpack.c.b16 %v4873, %v4872
    %v4913 = vpack.c.b16 %v4875, %v4874
    %v4914 = vpack.c.b16 %v4877, %v4876
    %v4915 = vpack.c.b16 %v4879, %v4878
    %v4916 = vpack.c.b16 %v4881, %v4880
    %v4917 = vpack.c.b16 %v4883, %v4882
    %v4918 = vpack.c.b16 %v4885, %v4884
    %v4919 = vpack.c.b16 %v4887, %v4886
    %4952 = vmatprep.subr.bf16.mxu0 0
    %4953 = vmatpush1.bf16.msra.mxu0 %v4888
    %4954 = vmatprep.subr.bf16.mxu0 0
    %4955 = vmatpush1.bf16.msra.mxu0 %v4889
    %4956 = vmatprep.subr.bf16.mxu0 0
    %4957 = vmatpush1.bf16.msra.mxu0 %v4890
    %4958 = vmatprep.subr.bf16.mxu0 0
    %4959 = vmatpush1.bf16.msra.mxu0 %v4891
    %4960 = vmatprep.subr.bf16.mxu0 0
    %4961 = vmatpush1.bf16.msra.mxu0 %v4892
    %4962 = vmatprep.subr.bf16.mxu0 0
    %4963 = vmatpush1.bf16.msra.mxu0 %v4893
    %4964 = vmatprep.subr.bf16.mxu0 0
    %4965 = vmatpush1.bf16.msra.mxu0 %v4894
    %4966 = vmatprep.subr.bf16.mxu0 0
    %4967 = vmatpush1.bf16.msra.mxu0 %v4895
    %4968 = vmatprep.subr.bf16.mxu0 0
    %4969 = vmatpush1.bf16.msra.mxu0 %v4896
    %4970 = vmatprep.subr.bf16.mxu0 0
    %4971 = vmatpush1.bf16.msra.mxu0 %v4897
    %4972 = vmatprep.subr.bf16.mxu0 0
    %4973 = vmatpush1.bf16.msra.mxu0 %v4898
    %4974 = vmatprep.subr.bf16.mxu0 0
    %4975 = vmatpush1.bf16.msra.mxu0 %v4899
    %4976 = vmatprep.subr.bf16.mxu0 0
    %4977 = vmatpush1.bf16.msra.mxu0 %v4900
    %4978 = vmatprep.subr.bf16.mxu0 0
    %4979 = vmatpush1.bf16.msra.mxu0 %v4901
    %4980 = vmatprep.subr.bf16.mxu0 0
    %4981 = vmatpush1.bf16.msra.mxu0 %v4902
    %4982 = vmatprep.subr.bf16.mxu0 0
    %4983 = vmatpush1.bf16.msra.mxu0 %v4903
    %4984 = vmatprep.mubr.bf16.mxu0 %v4626
    %4985 = vmatmul.mubr.bf16.gmra.mrb[0].mxu0 %v4625
    %v4986 = vpop.f32.mrb[0].mxu0
    %v4987 = vadd.f32 %v4758, %v4986
    %v4988 = vpop.f32.mrb[0].mxu0
    %v4989 = vpop.f32.mrb[0].mxu0
    %v4990 = vadd.f32 %v4758, %v4989
    %v4991 = vpop.f32.mrb[0].mxu0
    %4992 = vmatprep.mubr.bf16.mxu0 %v4630
    %4993 = vmatmul.mubr.bf16.gmra.mrb[0].mxu0 %v4629
    %v4994 = vpop.f32.mrb[0].mxu0
    %v4995 = vadd.f32 %v4758, %v4994
    %v4996 = vpop.f32.mrb[0].mxu0
    %v4997 = vpop.f32.mrb[0].mxu0
    %v4998 = vadd.f32 %v4758, %v4997
    %v4999 = vpop.f32.mrb[0].mxu0
    %5000 = vmatprep.mubr.bf16.mxu0 %v4634
    %5001 = vmatmul.mubr.bf16.gmra.mrb[0].mxu0 %v4633
    %v5002 = vpop.f32.mrb[0].mxu0
    %v5003 = vadd.f32 %v4758, %v5002
    %v5004 = vpop.f32.mrb[0].mxu0
    %v5005 = vpop.f32.mrb[0].mxu0
    %v5006 = vadd.f32 %v4758, %v5005
    %v5007 = vpop.f32.mrb[0].mxu0
    %5008 = vmatprep.mubr.bf16.mxu0 %v4638
    %5009 = vmatmul.mubr.bf16.gmra.mrb[0].mxu0 %v4637
    %v5010 = vpop.f32.mrb[0].mxu0
    %v5011 = vadd.f32 %v4758, %v5010
    %v5012 = vpop.f32.mrb[0].mxu0
    %v5013 = vpop.f32.mrb[0].mxu0
    %v5014 = vadd.f32 %v4758, %v5013
    %v5015 = vpop.f32.mrb[0].mxu0
    %5016 = vmatprep.mubr.bf16.mxu0 %v4642
    %5017 = vmatmul.mubr.bf16.gmra.mrb[0].mxu0 %v4641
    %v5018 = vpop.f32.mrb[0].mxu0
    %v5019 = vadd.f32 %v4758, %v5018
    %v5020 = vpop.f32.mrb[0].mxu0
    %v5021 = vpop.f32.mrb[0].mxu0
    %v5022 = vadd.f32 %v4758, %v5021
    %v5023 = vpop.f32.mrb[0].mxu0
    %5024 = vmatprep.mubr.bf16.mxu0 %v4646
    %5025 = vmatmul.mubr.bf16.gmra.mrb[0].mxu0 %v4645
    %v5026 = vpop.f32.mrb[0].mxu0
    %v5027 = vadd.f32 %v4758, %v5026
    %v5028 = vpop.f32.mrb[0].mxu0
    %v5029 = vpop.f32.mrb[0].mxu0
    %v5030 = vadd.f32 %v4758, %v5029
    %v5031 = vpop.f32.mrb[0].mxu0
    %5032 = vmatprep.mubr.bf16.mxu0 %v4650
    %5033 = vmatmul.mubr.bf16.gmra.mrb[0].mxu0 %v4649
    %v5034 = vpop.f32.mrb[0].mxu0
    %v5035 = vadd.f32 %v4758, %v5034
    %v5036 = vpop.f32.mrb[0].mxu0
    %v5037 = vpop.f32.mrb[0].mxu0
    %v5038 = vadd.f32 %v4758, %v5037
    %v5039 = vpop.f32.mrb[0].mxu0
    %5040 = vmatprep.mubr.bf16.mxu0 %v4654
    %5041 = vmatmul.mubr.bf16.gmra.mrb[0].mxu0 %v4653
    %v5042 = vpop.f32.mrb[0].mxu0
    %v5043 = vadd.f32 %v4758, %v5042
    %v5044 = vpop.f32.mrb[0].mxu0
    %v5045 = vpop.f32.mrb[0].mxu0
    %v5046 = vadd.f32 %v4758, %v5045
    %v5047 = vpop.f32.mrb[0].mxu0
    %5048 = vmatprep.mubr.bf16.mxu0 %v4658
    %5049 = vmatmul.mubr.bf16.gmra.mrb[0].mxu0 %v4657
    %v5050 = vpop.f32.mrb[0].mxu0
    %v5051 = vadd.f32 %v4758, %v5050
    %v5052 = vpop.f32.mrb[0].mxu0
    %v5053 = vpop.f32.mrb[0].mxu0
    %v5054 = vadd.f32 %v4758, %v5053
    %v5055 = vpop.f32.mrb[0].mxu0
    %5056 = vmatprep.mubr.bf16.mxu0 %v4662
    %5057 = vmatmul.mubr.bf16.gmra.mrb[0].mxu0 %v4661
    %v5058 = vpop.f32.mrb[0].mxu0
    %v5059 = vadd.f32 %v4758, %v5058
    %v5060 = vpop.f32.mrb[0].mxu0
    %v5061 = vpop.f32.mrb[0].mxu0
    %v5062 = vadd.f32 %v4758, %v5061
    %v5063 = vpop.f32.mrb[0].mxu0
    %5064 = vmatprep.mubr.bf16.mxu0 %v4666
    %5065 = vmatmul.mubr.bf16.gmra.mrb[0].mxu0 %v4665
    %v5066 = vpop.f32.mrb[0].mxu0
    %v5067 = vadd.f32 %v4758, %v5066
    %v5068 = vpop.f32.mrb[0].mxu0
    %v5069 = vpop.f32.mrb[0].mxu0
    %v5070 = vadd.f32 %v4758, %v5069
    %v5071 = vpop.f32.mrb[0].mxu0
    %5072 = vmatprep.mubr.bf16.mxu0 %v4670
    %5073 = vmatmul.mubr.bf16.gmra.mrb[0].mxu0 %v4669
    %v5074 = vpop.f32.mrb[0].mxu0
    %v5075 = vadd.f32 %v4758, %v5074
    %v5076 = vpop.f32.mrb[0].mxu0
    %v5077 = vpop.f32.mrb[0].mxu0
    %v5078 = vadd.f32 %v4758, %v5077
    %v5079 = vpop.f32.mrb[0].mxu0
    %5080 = vmatprep.mubr.bf16.mxu0 %v4674
    %5081 = vmatmul.mubr.bf16.gmra.mrb[0].mxu0 %v4673
    %v5082 = vpop.f32.mrb[0].mxu0
    %v5083 = vadd.f32 %v4758, %v5082
    %v5084 = vpop.f32.mrb[0].mxu0
    %v5085 = vpop.f32.mrb[0].mxu0
    %v5086 = vadd.f32 %v4758, %v5085
    %v5087 = vpop.f32.mrb[0].mxu0
    %5088 = vmatprep.mubr.bf16.mxu0 %v4678
    %5089 = vmatmul.mubr.bf16.gmra.mrb[0].mxu0 %v4677
    %v5090 = vpop.f32.mrb[0].mxu0
    %v5091 = vadd.f32 %v4758, %v5090
    %v5092 = vpop.f32.mrb[0].mxu0
    %v5093 = vpop.f32.mrb[0].mxu0
    %v5094 = vadd.f32 %v4758, %v5093
    %v5095 = vpop.f32.mrb[0].mxu0
    %5096 = vmatprep.mubr.bf16.mxu0 %v4682
    %5097 = vmatmul.mubr.bf16.gmra.mrb[0].mxu0 %v4681
    %v5098 = vpop.f32.mrb[0].mxu0
    %v5099 = vadd.f32 %v4758, %v5098
    %v5100 = vpop.f32.mrb[0].mxu0
    %v5101 = vpop.f32.mrb[0].mxu0
    %v5102 = vadd.f32 %v4758, %v5101
    %v5103 = vpop.f32.mrb[0].mxu0
    %5104 = vmatprep.mubr.bf16.mxu0 %v4686
    %5105 = vmatmul.mubr.bf16.gmra.mrb[0].mxu0 %v4685
    %v5106 = vpop.f32.mrb[0].mxu0
    %v5107 = vadd.f32 %v4758, %v5106
    %v5108 = vpop.f32.mrb[0].mxu0
    %v5109 = vpop.f32.mrb[0].mxu0
    %v5110 = vadd.f32 %v4758, %v5109
    %v5111 = vpop.f32.mrb[0].mxu0
    %5112 = vdwg.mxu0
    %5113 = vmatprep.subr.bf16.mxu0 0
    %5114 = vmatpush1.bf16.msra.mxu0 %v4904
    %5115 = vmatprep.subr.bf16.mxu0 0
    %5116 = vmatpush1.bf16.msra.mxu0 %v4905
    %5117 = vmatprep.subr.bf16.mxu0 0
    %5118 = vmatpush1.bf16.msra.mxu0 %v4906
    %5119 = vmatprep.subr.bf16.mxu0 0
    %5120 = vmatpush1.bf16.msra.mxu0 %v4907
    %5121 = vmatprep.subr.bf16.mxu0 0
    %5122 = vmatpush1.bf16.msra.mxu0 %v4908
    %5123 = vmatprep.subr.bf16.mxu0 0
    %5124 = vmatpush1.bf16.msra.mxu0 %v4909
    %5125 = vmatprep.subr.bf16.mxu0 0
    %5126 = vmatpush1.bf16.msra.mxu0 %v4910
    %5127 = vmatprep.subr.bf16.mxu0 0
    %5128 = vmatpush1.bf16.msra.mxu0 %v4911
    %5129 = vmatprep.subr.bf16.mxu0 0
    %5130 = vmatpush1.bf16.msra.mxu0 %v4912
    %5131 = vmatprep.subr.bf16.mxu0 0
    %5132 = vmatpush1.bf16.msra.mxu0 %v4913
    %5133 = vmatprep.subr.bf16.mxu0 0
    %5134 = vmatpush1.bf16.msra.mxu0 %v4914
    %5135 = vmatprep.subr.bf16.mxu0 0
    %5136 = vmatpush1.bf16.msra.mxu0 %v4915
    %5137 = vmatprep.subr.bf16.mxu0 0
    %5138 = vmatpush1.bf16.msra.mxu0 %v4916
    %5139 = vmatprep.subr.bf16.mxu0 0
    %5140 = vmatpush1.bf16.msra.mxu0 %v4917
    %5141 = vmatprep.subr.bf16.mxu0 0
    %5142 = vmatpush1.bf16.msra.mxu0 %v4918
    %5143 = vmatprep.subr.bf16.mxu0 0
    %5144 = vmatpush1.bf16.msra.mxu0 %v4919
    %5145 = vmatprep.mubr.bf16.mxu0 %v4628
    %5146 = vmatmul.mubr.bf16.gmra.mrb[0].mxu0 %v4627
    %v5147 = vpop.f32.mrb[0].mxu0
    %v5148 = vadd.f32 %v4987, %v5147
    %v5149 = vpop.f32.mrb[0].mxu0
    %v5150 = vpop.f32.mrb[0].mxu0
    %v5151 = vadd.f32 %v4990, %v5150
    %v5152 = vpop.f32.mrb[0].mxu0
    %5153 = vmatprep.mubr.bf16.mxu0 %v4632
    %5154 = vmatmul.mubr.bf16.gmra.mrb[0].mxu0 %v4631
    %v5155 = vpop.f32.mrb[0].mxu0
    %v5156 = vadd.f32 %v4995, %v5155
    %v5157 = vpop.f32.mrb[0].mxu0
    %v5158 = vpop.f32.mrb[0].mxu0
    %v5159 = vadd.f32 %v4998, %v5158
    %v5160 = vpop.f32.mrb[0].mxu0
    %5161 = vmatprep.mubr.bf16.mxu0 %v4636
    %5162 = vmatmul.mubr.bf16.gmra.mrb[0].mxu0 %v4635
    %v5163 = vpop.f32.mrb[0].mxu0
    %v5164 = vadd.f32 %v5003, %v5163
    %v5165 = vpop.f32.mrb[0].mxu0
    %v5166 = vpop.f32.mrb[0].mxu0
    %v5167 = vadd.f32 %v5006, %v5166
    %v5168 = vpop.f32.mrb[0].mxu0
    %5169 = vmatprep.mubr.bf16.mxu0 %v4640
    %5170 = vmatmul.mubr.bf16.gmra.mrb[0].mxu0 %v4639
    %v5171 = vpop.f32.mrb[0].mxu0
    %v5172 = vadd.f32 %v5011, %v5171
    %v5173 = vpop.f32.mrb[0].mxu0
    %v5174 = vpop.f32.mrb[0].mxu0
    %v5175 = vadd.f32 %v5014, %v5174
    %v5176 = vpop.f32.mrb[0].mxu0
    %5177 = vmatprep.mubr.bf16.mxu0 %v4644
    %5178 = vmatmul.mubr.bf16.gmra.mrb[0].mxu0 %v4643
    %v5179 = vpop.f32.mrb[0].mxu0
    %v5180 = vadd.f32 %v5019, %v5179
    %v5181 = vpop.f32.mrb[0].mxu0
    %v5182 = vpop.f32.mrb[0].mxu0
    %v5183 = vadd.f32 %v5022, %v5182
    %v5184 = vpop.f32.mrb[0].mxu0
    %5185 = vmatprep.mubr.bf16.mxu0 %v4648
    %5186 = vmatmul.mubr.bf16.gmra.mrb[0].mxu0 %v4647
    %v5187 = vpop.f32.mrb[0].mxu0
    %v5188 = vadd.f32 %v5027, %v5187
    %v5189 = vpop.f32.mrb[0].mxu0
    %v5190 = vpop.f32.mrb[0].mxu0
    %v5191 = vadd.f32 %v5030, %v5190
    %v5192 = vpop.f32.mrb[0].mxu0
    %5193 = vmatprep.mubr.bf16.mxu0 %v4652
    %5194 = vmatmul.mubr.bf16.gmra.mrb[0].mxu0 %v4651
    %v5195 = vpop.f32.mrb[0].mxu0
    %v5196 = vadd.f32 %v5035, %v5195
    %v5197 = vpop.f32.mrb[0].mxu0
    %v5198 = vpop.f32.mrb[0].mxu0
    %v5199 = vadd.f32 %v5038, %v5198
    %v5200 = vpop.f32.mrb[0].mxu0
    %5201 = vmatprep.mubr.bf16.mxu0 %v4656
    %5202 = vmatmul.mubr.bf16.gmra.mrb[0].mxu0 %v4655
    %v5203 = vpop.f32.mrb[0].mxu0
    %v5204 = vadd.f32 %v5043, %v5203
    %v5205 = vpop.f32.mrb[0].mxu0
    %v5206 = vpop.f32.mrb[0].mxu0
    %v5207 = vadd.f32 %v5046, %v5206
    %v5208 = vpop.f32.mrb[0].mxu0
    %5209 = vmatprep.mubr.bf16.mxu0 %v4660
    %5210 = vmatmul.mubr.bf16.gmra.mrb[0].mxu0 %v4659
    %v5211 = vpop.f32.mrb[0].mxu0
    %v5212 = vadd.f32 %v5051, %v5211
    %v5213 = vpop.f32.mrb[0].mxu0
    %v5214 = vpop.f32.mrb[0].mxu0
    %v5215 = vadd.f32 %v5054, %v5214
    %v5216 = vpop.f32.mrb[0].mxu0
    %5217 = vmatprep.mubr.bf16.mxu0 %v4664
    %5218 = vmatmul.mubr.bf16.gmra.mrb[0].mxu0 %v4663
    %v5219 = vpop.f32.mrb[0].mxu0
    %v5220 = vadd.f32 %v5059, %v5219
    %v5221 = vpop.f32.mrb[0].mxu0
    %v5222 = vpop.f32.mrb[0].mxu0
    %v5223 = vadd.f32 %v5062, %v5222
    %v5224 = vpop.f32.mrb[0].mxu0
    %5225 = vmatprep.mubr.bf16.mxu0 %v4668
    %5226 = vmatmul.mubr.bf16.gmra.mrb[0].mxu0 %v4667
    %v5227 = vpop.f32.mrb[0].mxu0
    %v5228 = vadd.f32 %v5067, %v5227
    %v5229 = vpop.f32.mrb[0].mxu0
    %v5230 = vpop.f32.mrb[0].mxu0
    %v5231 = vadd.f32 %v5070, %v5230
    %v5232 = vpop.f32.mrb[0].mxu0
    %5233 = vmatprep.mubr.bf16.mxu0 %v4672
    %5234 = vmatmul.mubr.bf16.gmra.mrb[0].mxu0 %v4671
    %v5235 = vpop.f32.mrb[0].mxu0
    %v5236 = vadd.f32 %v5075, %v5235
    %v5237 = vpop.f32.mrb[0].mxu0
    %v5238 = vpop.f32.mrb[0].mxu0
    %v5239 = vadd.f32 %v5078, %v5238
    %v5240 = vpop.f32.mrb[0].mxu0
    %5241 = vmatprep.mubr.bf16.mxu0 %v4676
    %5242 = vmatmul.mubr.bf16.gmra.mrb[0].mxu0 %v4675
    %v5243 = vpop.f32.mrb[0].mxu0
    %v5244 = vadd.f32 %v5083, %v5243
    %v5245 = vpop.f32.mrb[0].mxu0
    %v5246 = vpop.f32.mrb[0].mxu0
    %v5247 = vadd.f32 %v5086, %v5246
    %v5248 = vpop.f32.mrb[0].mxu0
    %5249 = vmatprep.mubr.bf16.mxu0 %v4680
    %5250 = vmatmul.mubr.bf16.gmra.mrb[0].mxu0 %v4679
    %v5251 = vpop.f32.mrb[0].mxu0
    %v5252 = vadd.f32 %v5091, %v5251
    %v5253 = vpop.f32.mrb[0].mxu0
    %v5254 = vpop.f32.mrb[0].mxu0
    %v5255 = vadd.f32 %v5094, %v5254
    %v5256 = vpop.f32.mrb[0].mxu0
    %5257 = vmatprep.mubr.bf16.mxu0 %v4684
    %5258 = vmatmul.mubr.bf16.gmra.mrb[0].mxu0 %v4683
    %v5259 = vpop.f32.mrb[0].mxu0
    %v5260 = vadd.f32 %v5099, %v5259
    %v5261 = vpop.f32.mrb[0].mxu0
    %v5262 = vpop.f32.mrb[0].mxu0
    %v5263 = vadd.f32 %v5102, %v5262
    %v5264 = vpop.f32.mrb[0].mxu0
    %5265 = vmatprep.mubr.bf16.mxu0 %v4688
    %5266 = vmatmul.mubr.bf16.gmra.mrb[0].mxu0 %v4687
    %v5267 = vpop.f32.mrb[0].mxu0
    %v5268 = vadd.f32 %v5107, %v5267
    %v5269 = vpop.f32.mrb[0].mxu0
    %v5270 = vpop.f32.mrb[0].mxu0
    %v5271 = vadd.f32 %v5110, %v5270
    %v5272 = vpop.f32.mrb[0].mxu0
    %5273 = vdwg.mxu0
    %5274 = vst [vmem:[%s9] sm:$0xff] %v5148
    %5275 = vst [vmem:[%s9 + $0x8] sm:$0xff] %v5151
    %5276 = vst [vmem:[%s9 + $0x10] sm:$0xff] %v5156
    %5277 = vst [vmem:[%s9 + $0x18] sm:$0xff] %v5159
    %5278 = vst [vmem:[%s9 + $0x20] sm:$0xff] %v5164
    %5279 = vst [vmem:[%s9 + $0x28] sm:$0xff] %v5167
    %5280 = vst [vmem:[%s9 + $0x30] sm:$0xff] %v5172
    %5281 = vst [vmem:[%s9 + $0x38] sm:$0xff] %v5175
    %5282 = vst [vmem:[%s9 + $0x40] sm:$0xff] %v5180
    %5283 = vst [vmem:[%s9 + $0x48] sm:$0xff] %v5183
    %5284 = vst [vmem:[%s9 + $0x50] sm:$0xff] %v5188
    %5285 = vst [vmem:[%s9 + $0x58] sm:$0xff] %v5191
    %5286 = vst [vmem:[%s9 + $0x60] sm:$0xff] %v5196
    %5287 = vst [vmem:[%s9 + $0x68] sm:$0xff] %v5199
    %5288 = vst [vmem:[%s9 + $0x70] sm:$0xff] %v5204
    %5289 = vst [vmem:[%s9 + $0x78] sm:$0xff] %v5207
    %5290 = vst [vmem:[%s9 + $0x80] sm:$0xff] %v5212
    %5291 = vst [vmem:[%s9 + $0x88] sm:$0xff] %v5215
    %5292 = vst [vmem:[%s9 + $0x90] sm:$0xff] %v5220
    %5293 = vst [vmem:[%s9 + $0x98] sm:$0xff] %v5223
    %5294 = vst [vmem:[%s9 + $0xa0] sm:$0xff] %v5228
    %5295 = vst [vmem:[%s9 + $0xa8] sm:$0xff] %v5231
    %5296 = vst [vmem:[%s9 + $0xb0] sm:$0xff] %v5236
    %5297 = vst [vmem:[%s9 + $0xb8] sm:$0xff] %v5239
    %5298 = vst [vmem:[%s9 + $0xc0] sm:$0xff] %v5244
    %5299 = vst [vmem:[%s9 + $0xc8] sm:$0xff] %v5247
    %5300 = vst [vmem:[%s9 + $0xd0] sm:$0xff] %v5252
    %5301 = vst [vmem:[%s9 + $0xd8] sm:$0xff] %v5255
    %5302 = vst [vmem:[%s9 + $0xe0] sm:$0xff] %v5260
    %5303 = vst [vmem:[%s9 + $0xe8] sm:$0xff] %v5263
    %5304 = vst [vmem:[%s9 + $0xf0] sm:$0xff] %v5268
    %5305 = vst [vmem:[%s9 + $0xf8] sm:$0xff] %v5271
    // Predicated region
    $region46: #{generator_forward.1} parent=1 // pred_check
      _
    $region47: #{generator_forward.1} parent=1 // pred_check_branch
      %5307 = sbr.rel (0) target = $region49
    $region48: #{generator_forward.1} parent=1 // pred_region
      _
    $region49: #{generator_forward.1} parent=1 // pred_fallthru
      _
    // Predicated region
    $region50: #{generator_forward.1} parent=1 // pred_check
      _
    $region51: #{generator_forward.1} parent=1 // pred_check_branch
      %5309 = sbr.rel (0) target = $region53
    $region52: #{generator_forward.1} parent=1 // pred_region
      _
    $region53: #{generator_forward.1} parent=1 // pred_fallthru
      _
    %5310 = vsyncpa [#allocation3], 1
    %5311 = vsyncpa [#allocation5], 1

</llo_original>
